<compile_context>
chip_gen: v6e
topology: v6e:2x2x1
jax: 0.10.0
libtpu: 0.0.40
codegen_flags: <defaults>
</compile_context>

<pallas_src>
import functools
import math

import jax
import jax.numpy as jnp
from jax.experimental import pallas as pl
from jax.experimental.pallas import tpu as pltpu


# ------------------------------ kernel helpers --------------------------------

def _layernorm(x, g, b, eps=1e-5):
    mu = jnp.mean(x, axis=-1, keepdims=True)
    var = jnp.mean(jnp.square(x - mu), axis=-1, keepdims=True)
    return (x - mu) * jax.lax.rsqrt(var + eps) * g + b


# ------------------------------ fused kernel ----------------------------------

def fused_forward_kernel(x_ref, pw_ref, pb_ref, base_ref,
                         wqkv_ref, bqkv_ref, wo_ref, bo_ref,
                         ln1_g_ref, ln1_b_ref,
                         w1_ref, b1_ref, w2_ref, b2_ref,
                         ln2_g_ref, ln2_b_ref,
                         cls_out_ref, rest_out_ref,
                         *, seq_len, num_heads, n_layers, rows, use_cls):
    S = seq_len
    S1 = S + 1                      # real rows per item: S tokens + class token
    R = rows                        # sublane-padded row count (multiple of 8, >= S1)
    D = pw_ref.shape[1]
    hd = D // num_heads
    f32, bf16 = jnp.float32, jnp.bfloat16

    # ---- input projection for this batch item --------------------------------
    h = jnp.dot(x_ref[...].astype(bf16), pw_ref[...],
                preferred_element_type=f32) + pb_ref[...]            # (S, D) f32

    # ---- token slab: rows [0:S) tokens(+pos[1:]), row S cls(+pos[0]), rest pad 0.
    # base_ref already holds the reordered pos embed + cls (host precomputed), so
    # the only in-kernel step is one aligned zero-pad concat + add.
    if R > S:
        h = jnp.concatenate([h, jnp.zeros((R - S, D), f32)], axis=0)  # (R, D)
    xr = base_ref[...] + h                                            # (R, D) f32

    # ---- key-padding mask: keys at padded rows (>= S1) must not be attended ---
    key_ids = jax.lax.broadcasted_iota(jnp.int32, (1, R), 1)
    key_mask = jnp.where(key_ids < S1, 0.0, -1e30)                    # (1, R) f32

    # ---- transformer encoder layers (post-LN, ReLU FFN, eval-mode dropout) ----
    for li in range(n_layers):
        wqkv_l, bqkv_l = wqkv_ref[li], bqkv_ref[li]
        wo_l, bo_l = wo_ref[li], bo_ref[li]
        g1, be1 = ln1_g_ref[li], ln1_b_ref[li]
        w1_l, b1_l = w1_ref[li], b1_ref[li]
        w2_l, b2_l = w2_ref[li], b2_ref[li]
        g2, be2 = ln2_g_ref[li], ln2_b_ref[li]

        # fused QKV projection; 1/sqrt(hd) is already folded into the Q columns
        qkv = jnp.dot(xr.astype(bf16), wqkv_l,
                      preferred_element_type=f32) + bqkv_l            # (R, 3D) f32
        qkv_b = qkv.astype(bf16)

        # per-head attention on aligned 8-lane slices (2-D ops only)
        heads = []
        for hh in range(num_heads):
            q_h = qkv_b[:, hh * hd:(hh + 1) * hd]
            k_h = qkv_b[:, D + hh * hd:D + (hh + 1) * hd]
            v_h = qkv_b[:, 2 * D + hh * hd:2 * D + (hh + 1) * hd]
            s = jax.lax.dot_general(q_h, k_h, (((1,), (1,)), ((), ())),
                                    preferred_element_type=f32)       # (R, R) f32
            s = s + key_mask
            p = jnp.exp(s - jnp.max(s, axis=-1, keepdims=True))
            p = p * pl.reciprocal(jnp.sum(p, axis=-1, keepdims=True), approx=True)
            heads.append(jnp.dot(p.astype(bf16), v_h,
                                 preferred_element_type=f32))         # (R, hd)

        # single output-projection contraction; bias added once (no broadcast slab)
        o = jnp.concatenate(heads, axis=-1)                           # (R, D) f32
        attn = jnp.dot(o.astype(bf16), wo_l,
                       preferred_element_type=f32) + bo_l             # (R, D)

        x1 = _layernorm(xr + attn, g1, be1)

        h1 = jnp.dot(x1.astype(bf16), w1_l, preferred_element_type=f32) + b1_l
        h1 = jnp.maximum(h1, 0.0)                                     # ReLU
        h2 = jnp.dot(h1.astype(bf16), w2_l, preferred_element_type=f32) + b2_l

        xr = _layernorm(x1 + h2, g2, be2)

    # ---- outputs: tokens are rows [0:S) (aligned view), class token is row S ---
    rest_out_ref[...] = xr[0:S, :].reshape(1, S, D).astype(rest_out_ref.dtype)
    if use_cls:
        cls = xr[S:S + 1, :]
    else:
        cls = jnp.mean(xr[0:S1, :], axis=0, keepdims=True)  # mean over all S1 real tokens
    cls_out_ref[...] = cls.reshape(1, 1, D).astype(cls_out_ref.dtype)


# -------------------------------- wrapper --------------------------------------

def _rep_spec(shape):
    n = len(shape)
    return pl.BlockSpec(shape, lambda b, _n=n: (0,) * _n)


def my_av_subnet_forward(x, params, num_heads, ensemble_depth=1):
    """x: (B, seq_len, in_size) -> (x_cls (B, D), x_rest (B, seq_len, D))."""
    B, S, Din = x.shape
    Dp, D = params["proj_w"].shape
    L = params["wqkv"].shape[0]
    H4 = params["w1"].shape[2]
    S1 = S + 1
    R = ((S1 + 7) // 8) * 8                 # sublane-padded per-item row count
    hd = D // num_heads

    # flatten batch*seq into rows; zero-pad the tiny feature dim to the padded weight rows
    x2d = x.reshape(B * S, Din).astype(jnp.float32)
    if Dp > Din:
        x2d = jnp.pad(x2d, ((0, 0), (0, Dp - Din)))

    # host-built base slab: rows [0:S) = pos[1:], row S = cls + pos[0], rows [S1:R) = 0
    pos = params["pos_embed"].reshape(S1, D).astype(jnp.float32)
    cls_tok = params["cls_token"].reshape(1, D).astype(jnp.float32)
    base = jnp.concatenate(
        [pos[1:], cls_tok + pos[0:1], jnp.zeros((R - S1, D), jnp.float32)], axis=0)

    inputs = (x2d, params["proj_w"], params["proj_b"], base,
              params["wqkv"], params["bqkv"], params["wo"], params["bo"],
              params["ln1_g"], params["ln1_b"],
              params["w1"], params["b1"], params["w2"], params["b2"],
              params["ln2_g"], params["ln2_b"])

    kern = functools.partial(
        fused_forward_kernel, seq_len=S, num_heads=num_heads,
        n_layers=L, rows=R, use_cls=(ensemble_depth == 1))

    flops = B * (2 * S * Dp * D + L * (
        2 * R * D * (3 * D)                  # fused QKV
        + 4 * num_heads * R * R * hd         # scores + p@v
        + 2 * R * D * D                      # output projection
        + 4 * R * D * H4))                   # FFN
    bytes_accessed = sum(int(a.size) * a.dtype.itemsize for a in inputs) \
        + (B * D + B * S * D) * 4
    cost = pl.CostEstimate(flops=int(flops),
                           transcendentals=int(B * L * num_heads * R * R),
                           bytes_accessed=int(bytes_accessed))

    out_shapes = (jax.ShapeDtypeStruct((B, 1, D), jnp.float32),
                  jax.ShapeDtypeStruct((B, S, D), jnp.float32))

    in_specs = ([pl.BlockSpec((S, Dp), lambda b: (b, 0))]
                + [_rep_spec(a.shape) for a in inputs[1:]])

    cls3, rest = pl.pallas_call(
        kern,
        out_shape=out_shapes,
        grid=(B,),
        in_specs=in_specs,
        out_specs=(pl.BlockSpec((1, 1, D), lambda b: (b, 0, 0)),
                   pl.BlockSpec((1, S, D), lambda b: (b, 0, 0))),
        compiler_params=pltpu.CompilerParams(
            dimension_semantics=("parallel",)),   # v7x: one sequence per TensorCore
        cost_estimate=cost,
    )(*inputs)

    return cls3[:, 0, :], rest


# ----------------------------- parameter init ----------------------------------

def _xavier(key, shape):
    limit = math.sqrt(6.0 / (shape[-2] + shape[-1]))
    return jax.random.uniform(key, shape, jnp.float32, -limit, limit)


def init_params(key, seq_len, in_size, hidden_size, num_heads, n_layers):
    D = hidden_size
    H = 4 * D
    hd = D // num_heads
    Dp = ((in_size + 7) // 8) * 8           # pad projection input dim to a sublane multiple
    keys = jax.random.split(key, 7)

    proj_w = jnp.zeros((Dp, D), jnp.float32).at[:in_size].set(
        _xavier(keys[0], (in_size, D)))

    # attention scale 1/sqrt(hd) folded into the Q columns of wqkv / bqkv (perf review);
    # bqkv is zero so scaling it is a no-op but kept for generality.
    wqkv = _xavier(keys[3], (n_layers, D, 3 * D))
    wqkv = wqkv.at[:, :, :D].multiply(1.0 / math.sqrt(hd))
    bqkv = jnp.zeros((n_layers, 1, 3 * D), jnp.float32)
    bqkv = bqkv.at[:, :, :D].multiply(1.0 / math.sqrt(hd))

    return {
        # matmul weights stored bf16 (MXU-native), biases / LN / embeddings f32
        "proj_w": proj_w.astype(jnp.bfloat16),
        "proj_b": jnp.zeros((1, D), jnp.float32),
        "cls_token": 0.02 * jax.random.normal(keys[1], (1, 1, D), jnp.float32),
        "pos_embed": 0.02 * jax.random.normal(keys[2], (1, seq_len + 1, D), jnp.float32),
        "wqkv": wqkv.astype(jnp.bfloat16),
        "bqkv": bqkv,
        "wo": _xavier(keys[4], (n_layers, D, D)).astype(jnp.bfloat16),
        "bo": jnp.zeros((n_layers, 1, D), jnp.float32),
        "ln1_g": jnp.ones((n_layers, 1, D), jnp.float32),
        "ln1_b": jnp.zeros((n_layers, 1, D), jnp.float32),
        "w1": _xavier(keys[5], (n_layers, D, H)).astype(jnp.bfloat16),
        "b1": jnp.zeros((n_layers, 1, H), jnp.float32),
        "w2": _xavier(keys[6], (n_layers, H, D)).astype(jnp.bfloat16),
        "b2": jnp.zeros((n_layers, 1, D), jnp.float32),
        "ln2_g": jnp.ones((n_layers, 1, D), jnp.float32),
        "ln2_b": jnp.zeros((n_layers, 1, D), jnp.float32),
    }


# ---------------------------------- main ----------------------------------------

if __name__ == "__main__":
    B, seq_len, in_size, hidden_size = 2, 8, 20, 32
    num_heads, n_layers = 4, 2

    key = jax.random.PRNGKey(0)
    kx, kp = jax.random.split(key)
    x = jax.random.normal(kx, (B, seq_len, in_size), jnp.float32)
    params = init_params(kp, seq_len, in_size, hidden_size, num_heads, n_layers)

    fwd = jax.jit(functools.partial(my_av_subnet_forward,
                                    num_heads=num_heads, ensemble_depth=1))
    x_cls, x_rest = fwd(x, params)
    jax.block_until_ready((x_cls, x_rest))

    assert x_cls.shape == (B, hidden_size), x_cls.shape
    assert x_rest.shape == (B, seq_len, hidden_size), x_rest.shape
    assert jnp.all(jnp.isfinite(x_cls)) and jnp.all(jnp.isfinite(x_rest))
    print("KERNEL_OK")
</pallas_src>

<mosaic_0001>
module attributes {stable_mosaic.version = 11 : i64} {
  func.func @fused_forward_kernel(%arg0: i32, %arg1: memref<8x24xf32, #tpu.memory_space<vmem>>, %arg2: memref<24x32xbf16, #tpu.memory_space<vmem>>, %arg3: memref<1x32xf32, #tpu.memory_space<vmem>>, %arg4: memref<16x32xf32, #tpu.memory_space<vmem>>, %arg5: memref<2x32x96xbf16, #tpu.memory_space<vmem>>, %arg6: memref<2x1x96xf32, #tpu.memory_space<vmem>>, %arg7: memref<2x32x32xbf16, #tpu.memory_space<vmem>>, %arg8: memref<2x1x32xf32, #tpu.memory_space<vmem>>, %arg9: memref<2x1x32xf32, #tpu.memory_space<vmem>>, %arg10: memref<2x1x32xf32, #tpu.memory_space<vmem>>, %arg11: memref<2x32x128xbf16, #tpu.memory_space<vmem>>, %arg12: memref<2x1x128xf32, #tpu.memory_space<vmem>>, %arg13: memref<2x128x32xbf16, #tpu.memory_space<vmem>>, %arg14: memref<2x1x32xf32, #tpu.memory_space<vmem>>, %arg15: memref<2x1x32xf32, #tpu.memory_space<vmem>>, %arg16: memref<2x1x32xf32, #tpu.memory_space<vmem>>, %arg17: memref<1x1x32xf32, #tpu.memory_space<vmem>>, %arg18: memref<1x8x32xf32, #tpu.memory_space<vmem>>) attributes {dimension_semantics = [#tpu.dimension_semantics<parallel>], iteration_bounds = array<i64: 2>, scalar_prefetch = 0 : i64, scratch_operands = 0 : i64, tpu.core_type = #tpu.core_type<tc>, window_params = [{transform_indices = @transform_0, window_bounds = array<i64: 8, 24>}, {pipeline_mode = #tpu.pipeline_mode<synchronous>, transform_indices = @transform_1, window_bounds = array<i64: 24, 32>}, {pipeline_mode = #tpu.pipeline_mode<synchronous>, transform_indices = @transform_2, window_bounds = array<i64: 1, 32>}, {pipeline_mode = #tpu.pipeline_mode<synchronous>, transform_indices = @transform_3, window_bounds = array<i64: 16, 32>}, {pipeline_mode = #tpu.pipeline_mode<synchronous>, transform_indices = @transform_4, window_bounds = array<i64: 2, 32, 96>}, {pipeline_mode = #tpu.pipeline_mode<synchronous>, transform_indices = @transform_5, window_bounds = array<i64: 2, 1, 96>}, {pipeline_mode = #tpu.pipeline_mode<synchronous>, transform_indices = @transform_6, window_bounds = array<i64: 2, 32, 32>}, {pipeline_mode = #tpu.pipeline_mode<synchronous>, transform_indices = @transform_7, window_bounds = array<i64: 2, 1, 32>}, {pipeline_mode = #tpu.pipeline_mode<synchronous>, transform_indices = @transform_8, window_bounds = array<i64: 2, 1, 32>}, {pipeline_mode = #tpu.pipeline_mode<synchronous>, transform_indices = @transform_9, window_bounds = array<i64: 2, 1, 32>}, {pipeline_mode = #tpu.pipeline_mode<synchronous>, transform_indices = @transform_10, window_bounds = array<i64: 2, 32, 128>}, {pipeline_mode = #tpu.pipeline_mode<synchronous>, transform_indices = @transform_11, window_bounds = array<i64: 2, 1, 128>}, {pipeline_mode = #tpu.pipeline_mode<synchronous>, transform_indices = @transform_12, window_bounds = array<i64: 2, 128, 32>}, {pipeline_mode = #tpu.pipeline_mode<synchronous>, transform_indices = @transform_13, window_bounds = array<i64: 2, 1, 32>}, {pipeline_mode = #tpu.pipeline_mode<synchronous>, transform_indices = @transform_14, window_bounds = array<i64: 2, 1, 32>}, {pipeline_mode = #tpu.pipeline_mode<synchronous>, transform_indices = @transform_15, window_bounds = array<i64: 2, 1, 32>}, {transform_indices = @transform_16, window_bounds = array<i64: 1, 1, 32>}, {transform_indices = @transform_17, window_bounds = array<i64: 1, 8, 32>}]} {
    %c0 = arith.constant 0 : index
    %c0_0 = arith.constant 0 : index
    %0 = vector.load %arg1[%c0, %c0_0] : memref<8x24xf32, #tpu.memory_space<vmem>>, vector<8x24xf32>
    %1 = arith.truncf %0 : vector<8x24xf32> to vector<8x24xbf16>
    %c0_1 = arith.constant 0 : index
    %c0_2 = arith.constant 0 : index
    %2 = vector.load %arg2[%c0_1, %c0_2] : memref<24x32xbf16, #tpu.memory_space<vmem>>, vector<24x32xbf16>
    %cst = arith.constant dense<0.000000e+00> : vector<8x32xf32>
    %3 = tpu.matmul %1, %2, %cst {dimension_numbers = #tpu.dot_dimension_numbers<[1], [0], [0], [1], [0, 0, 1, 1], [], []>} : vector<8x24xbf16>, vector<24x32xbf16>, vector<8x32xf32> -> vector<8x32xf32>
    %c0_3 = arith.constant 0 : index
    %c0_4 = arith.constant 0 : index
    %4 = vector.load %arg3[%c0_3, %c0_4] : memref<1x32xf32, #tpu.memory_space<vmem>>, vector<1x32xf32>
    %5 = vector.broadcast %4 : vector<1x32xf32> to vector<8x32xf32>
    %6 = arith.addf %3, %5 : vector<8x32xf32>
    %cst_5 = arith.constant 0.000000e+00 : f32
    %7 = vector.broadcast %cst_5 : f32 to vector<8x32xf32>
    %8 = tpu.concatenate %6, %7 in 0 : vector<8x32xf32>, vector<8x32xf32> -> vector<16x32xf32>
    %c0_6 = arith.constant 0 : index
    %c0_7 = arith.constant 0 : index
    %9 = vector.load %arg4[%c0_6, %c0_7] : memref<16x32xf32, #tpu.memory_space<vmem>>, vector<16x32xf32>
    %10 = arith.addf %9, %8 : vector<16x32xf32>
    %11 = tpu.iota {dimensions = array<i32: 1>} : vector<1x16xi32>
    %c9_i32 = arith.constant 9 : i32
    %12 = vector.broadcast %c9_i32 : i32 to vector<1x16xi32>
    %13 = arith.cmpi slt, %11, %12 : vector<1x16xi32>
    %cst_8 = arith.constant 0.000000e+00 : f32
    %cst_9 = arith.constant -1.000000e+30 : f32
    %14 = vector.broadcast %cst_8 : f32 to vector<1x16xf32>
    %15 = vector.broadcast %cst_9 : f32 to vector<1x16xf32>
    %16 = arith.select %13, %14, %15 : vector<1x16xi1>, vector<1x16xf32>
    %c0_10 = arith.constant 0 : index
    %c0_11 = arith.constant 0 : index
    %c0_12 = arith.constant 0 : index
    %17 = vector.load %arg5[%c0_10, %c0_11, %c0_12] : memref<2x32x96xbf16, #tpu.memory_space<vmem>>, vector<1x32x96xbf16>
    %18 = vector.shape_cast %17 : vector<1x32x96xbf16> to vector<32x96xbf16>
    %c0_13 = arith.constant 0 : index
    %c0_14 = arith.constant 0 : index
    %c0_15 = arith.constant 0 : index
    %19 = vector.load %arg6[%c0_13, %c0_14, %c0_15] : memref<2x1x96xf32, #tpu.memory_space<vmem>>, vector<1x1x96xf32>
    %20 = vector.shape_cast %19 : vector<1x1x96xf32> to vector<1x96xf32>
    %c0_16 = arith.constant 0 : index
    %c0_17 = arith.constant 0 : index
    %c0_18 = arith.constant 0 : index
    %21 = vector.load %arg7[%c0_16, %c0_17, %c0_18] : memref<2x32x32xbf16, #tpu.memory_space<vmem>>, vector<1x32x32xbf16>
    %22 = vector.shape_cast %21 : vector<1x32x32xbf16> to vector<32x32xbf16>
    %c0_19 = arith.constant 0 : index
    %c0_20 = arith.constant 0 : index
    %c0_21 = arith.constant 0 : index
    %23 = vector.load %arg8[%c0_19, %c0_20, %c0_21] : memref<2x1x32xf32, #tpu.memory_space<vmem>>, vector<1x1x32xf32>
    %24 = vector.shape_cast %23 : vector<1x1x32xf32> to vector<1x32xf32>
    %c0_22 = arith.constant 0 : index
    %c0_23 = arith.constant 0 : index
    %c0_24 = arith.constant 0 : index
    %25 = vector.load %arg9[%c0_22, %c0_23, %c0_24] : memref<2x1x32xf32, #tpu.memory_space<vmem>>, vector<1x1x32xf32>
    %26 = vector.shape_cast %25 : vector<1x1x32xf32> to vector<1x32xf32>
    %c0_25 = arith.constant 0 : index
    %c0_26 = arith.constant 0 : index
    %c0_27 = arith.constant 0 : index
    %27 = vector.load %arg10[%c0_25, %c0_26, %c0_27] : memref<2x1x32xf32, #tpu.memory_space<vmem>>, vector<1x1x32xf32>
    %28 = vector.shape_cast %27 : vector<1x1x32xf32> to vector<1x32xf32>
    %c0_28 = arith.constant 0 : index
    %c0_29 = arith.constant 0 : index
    %c0_30 = arith.constant 0 : index
    %29 = vector.load %arg11[%c0_28, %c0_29, %c0_30] : memref<2x32x128xbf16, #tpu.memory_space<vmem>>, vector<1x32x128xbf16>
    %30 = vector.shape_cast %29 : vector<1x32x128xbf16> to vector<32x128xbf16>
    %c0_31 = arith.constant 0 : index
    %c0_32 = arith.constant 0 : index
    %c0_33 = arith.constant 0 : index
    %31 = vector.load %arg12[%c0_31, %c0_32, %c0_33] : memref<2x1x128xf32, #tpu.memory_space<vmem>>, vector<1x1x128xf32>
    %32 = vector.shape_cast %31 : vector<1x1x128xf32> to vector<1x128xf32>
    %c0_34 = arith.constant 0 : index
    %c0_35 = arith.constant 0 : index
    %c0_36 = arith.constant 0 : index
    %33 = vector.load %arg13[%c0_34, %c0_35, %c0_36] : memref<2x128x32xbf16, #tpu.memory_space<vmem>>, vector<1x128x32xbf16>
    %34 = vector.shape_cast %33 : vector<1x128x32xbf16> to vector<128x32xbf16>
    %c0_37 = arith.constant 0 : index
    %c0_38 = arith.constant 0 : index
    %c0_39 = arith.constant 0 : index
    %35 = vector.load %arg14[%c0_37, %c0_38, %c0_39] : memref<2x1x32xf32, #tpu.memory_space<vmem>>, vector<1x1x32xf32>
    %36 = vector.shape_cast %35 : vector<1x1x32xf32> to vector<1x32xf32>
    %c0_40 = arith.constant 0 : index
    %c0_41 = arith.constant 0 : index
    %c0_42 = arith.constant 0 : index
    %37 = vector.load %arg15[%c0_40, %c0_41, %c0_42] : memref<2x1x32xf32, #tpu.memory_space<vmem>>, vector<1x1x32xf32>
    %38 = vector.shape_cast %37 : vector<1x1x32xf32> to vector<1x32xf32>
    %c0_43 = arith.constant 0 : index
    %c0_44 = arith.constant 0 : index
    %c0_45 = arith.constant 0 : index
    %39 = vector.load %arg16[%c0_43, %c0_44, %c0_45] : memref<2x1x32xf32, #tpu.memory_space<vmem>>, vector<1x1x32xf32>
    %40 = vector.shape_cast %39 : vector<1x1x32xf32> to vector<1x32xf32>
    %41 = arith.truncf %10 : vector<16x32xf32> to vector<16x32xbf16>
    %cst_46 = arith.constant dense<0.000000e+00> : vector<16x96xf32>
    %42 = tpu.matmul %41, %18, %cst_46 {dimension_numbers = #tpu.dot_dimension_numbers<[1], [0], [0], [1], [0, 0, 1, 1], [], []>} : vector<16x32xbf16>, vector<32x96xbf16>, vector<16x96xf32> -> vector<16x96xf32>
    %43 = vector.broadcast %20 : vector<1x96xf32> to vector<16x96xf32>
    %44 = arith.addf %42, %43 : vector<16x96xf32>
    %45 = arith.truncf %44 : vector<16x96xf32> to vector<16x96xbf16>
    %46 = vector.extract_strided_slice %45 {offsets = [0, 0], sizes = [16, 8], strides = [1, 1]} : vector<16x96xbf16> to vector<16x8xbf16>
    %47 = vector.extract_strided_slice %45 {offsets = [0, 32], sizes = [16, 8], strides = [1, 1]} : vector<16x96xbf16> to vector<16x8xbf16>
    %48 = vector.extract_strided_slice %45 {offsets = [0, 64], sizes = [16, 8], strides = [1, 1]} : vector<16x96xbf16> to vector<16x8xbf16>
    %cst_47 = arith.constant dense<0.000000e+00> : vector<16x16xf32>
    %49 = tpu.matmul %46, %47, %cst_47 {dimension_numbers = #tpu.dot_dimension_numbers<[1], [1], [0], [0], [0, 0, 1, 0], [], []>} : vector<16x8xbf16>, vector<16x8xbf16>, vector<16x16xf32> -> vector<16x16xf32>
    %50 = vector.broadcast %16 : vector<1x16xf32> to vector<16x16xf32>
    %51 = arith.addf %49, %50 : vector<16x16xf32>
    %cst_48 = arith.constant dense<0xFF800000> : vector<16xf32>
    %52 = vector.multi_reduction <maximumf>, %51, %cst_48 [1] : vector<16x16xf32> to vector<16xf32>
    %53 = vector.shape_cast %52 : vector<16xf32> to vector<16x1xf32>
    %54 = vector.broadcast %53 : vector<16x1xf32> to vector<16x16xf32>
    %55 = arith.subf %51, %54 : vector<16x16xf32>
    %56 = math.exp %55 : vector<16x16xf32>
    %cst_49 = arith.constant dense<0.000000e+00> : vector<16xf32>
    %57 = vector.multi_reduction <add>, %56, %cst_49 [1] : vector<16x16xf32> to vector<16xf32>
    %58 = vector.shape_cast %57 : vector<16xf32> to vector<16x1xf32>
    %59 = tpu.reciprocal %58 {approx = true} : vector<16x1xf32> -> vector<16x1xf32>
    %60 = vector.broadcast %59 : vector<16x1xf32> to vector<16x16xf32>
    %61 = arith.mulf %56, %60 : vector<16x16xf32>
    %62 = arith.truncf %61 : vector<16x16xf32> to vector<16x16xbf16>
    %cst_50 = arith.constant dense<0.000000e+00> : vector<16x8xf32>
    %63 = tpu.matmul %62, %48, %cst_50 {dimension_numbers = #tpu.dot_dimension_numbers<[1], [0], [0], [1], [0, 0, 1, 1], [], []>} : vector<16x16xbf16>, vector<16x8xbf16>, vector<16x8xf32> -> vector<16x8xf32>
    %64 = vector.extract_strided_slice %45 {offsets = [0, 8], sizes = [16, 8], strides = [1, 1]} : vector<16x96xbf16> to vector<16x8xbf16>
    %65 = vector.extract_strided_slice %45 {offsets = [0, 40], sizes = [16, 8], strides = [1, 1]} : vector<16x96xbf16> to vector<16x8xbf16>
    %66 = vector.extract_strided_slice %45 {offsets = [0, 72], sizes = [16, 8], strides = [1, 1]} : vector<16x96xbf16> to vector<16x8xbf16>
    %cst_51 = arith.constant dense<0.000000e+00> : vector<16x16xf32>
    %67 = tpu.matmul %64, %65, %cst_51 {dimension_numbers = #tpu.dot_dimension_numbers<[1], [1], [0], [0], [0, 0, 1, 0], [], []>} : vector<16x8xbf16>, vector<16x8xbf16>, vector<16x16xf32> -> vector<16x16xf32>
    %68 = vector.broadcast %16 : vector<1x16xf32> to vector<16x16xf32>
    %69 = arith.addf %67, %68 : vector<16x16xf32>
    %cst_52 = arith.constant dense<0xFF800000> : vector<16xf32>
    %70 = vector.multi_reduction <maximumf>, %69, %cst_52 [1] : vector<16x16xf32> to vector<16xf32>
    %71 = vector.shape_cast %70 : vector<16xf32> to vector<16x1xf32>
    %72 = vector.broadcast %71 : vector<16x1xf32> to vector<16x16xf32>
    %73 = arith.subf %69, %72 : vector<16x16xf32>
    %74 = math.exp %73 : vector<16x16xf32>
    %cst_53 = arith.constant dense<0.000000e+00> : vector<16xf32>
    %75 = vector.multi_reduction <add>, %74, %cst_53 [1] : vector<16x16xf32> to vector<16xf32>
    %76 = vector.shape_cast %75 : vector<16xf32> to vector<16x1xf32>
    %77 = tpu.reciprocal %76 {approx = true} : vector<16x1xf32> -> vector<16x1xf32>
    %78 = vector.broadcast %77 : vector<16x1xf32> to vector<16x16xf32>
    %79 = arith.mulf %74, %78 : vector<16x16xf32>
    %80 = arith.truncf %79 : vector<16x16xf32> to vector<16x16xbf16>
    %cst_54 = arith.constant dense<0.000000e+00> : vector<16x8xf32>
    %81 = tpu.matmul %80, %66, %cst_54 {dimension_numbers = #tpu.dot_dimension_numbers<[1], [0], [0], [1], [0, 0, 1, 1], [], []>} : vector<16x16xbf16>, vector<16x8xbf16>, vector<16x8xf32> -> vector<16x8xf32>
    %82 = vector.extract_strided_slice %45 {offsets = [0, 16], sizes = [16, 8], strides = [1, 1]} : vector<16x96xbf16> to vector<16x8xbf16>
    %83 = vector.extract_strided_slice %45 {offsets = [0, 48], sizes = [16, 8], strides = [1, 1]} : vector<16x96xbf16> to vector<16x8xbf16>
    %84 = vector.extract_strided_slice %45 {offsets = [0, 80], sizes = [16, 8], strides = [1, 1]} : vector<16x96xbf16> to vector<16x8xbf16>
    %cst_55 = arith.constant dense<0.000000e+00> : vector<16x16xf32>
    %85 = tpu.matmul %82, %83, %cst_55 {dimension_numbers = #tpu.dot_dimension_numbers<[1], [1], [0], [0], [0, 0, 1, 0], [], []>} : vector<16x8xbf16>, vector<16x8xbf16>, vector<16x16xf32> -> vector<16x16xf32>
    %86 = vector.broadcast %16 : vector<1x16xf32> to vector<16x16xf32>
    %87 = arith.addf %85, %86 : vector<16x16xf32>
    %cst_56 = arith.constant dense<0xFF800000> : vector<16xf32>
    %88 = vector.multi_reduction <maximumf>, %87, %cst_56 [1] : vector<16x16xf32> to vector<16xf32>
    %89 = vector.shape_cast %88 : vector<16xf32> to vector<16x1xf32>
    %90 = vector.broadcast %89 : vector<16x1xf32> to vector<16x16xf32>
    %91 = arith.subf %87, %90 : vector<16x16xf32>
    %92 = math.exp %91 : vector<16x16xf32>
    %cst_57 = arith.constant dense<0.000000e+00> : vector<16xf32>
    %93 = vector.multi_reduction <add>, %92, %cst_57 [1] : vector<16x16xf32> to vector<16xf32>
    %94 = vector.shape_cast %93 : vector<16xf32> to vector<16x1xf32>
    %95 = tpu.reciprocal %94 {approx = true} : vector<16x1xf32> -> vector<16x1xf32>
    %96 = vector.broadcast %95 : vector<16x1xf32> to vector<16x16xf32>
    %97 = arith.mulf %92, %96 : vector<16x16xf32>
    %98 = arith.truncf %97 : vector<16x16xf32> to vector<16x16xbf16>
    %cst_58 = arith.constant dense<0.000000e+00> : vector<16x8xf32>
    %99 = tpu.matmul %98, %84, %cst_58 {dimension_numbers = #tpu.dot_dimension_numbers<[1], [0], [0], [1], [0, 0, 1, 1], [], []>} : vector<16x16xbf16>, vector<16x8xbf16>, vector<16x8xf32> -> vector<16x8xf32>
    %100 = vector.extract_strided_slice %45 {offsets = [0, 24], sizes = [16, 8], strides = [1, 1]} : vector<16x96xbf16> to vector<16x8xbf16>
    %101 = vector.extract_strided_slice %45 {offsets = [0, 56], sizes = [16, 8], strides = [1, 1]} : vector<16x96xbf16> to vector<16x8xbf16>
    %102 = vector.extract_strided_slice %45 {offsets = [0, 88], sizes = [16, 8], strides = [1, 1]} : vector<16x96xbf16> to vector<16x8xbf16>
    %cst_59 = arith.constant dense<0.000000e+00> : vector<16x16xf32>
    %103 = tpu.matmul %100, %101, %cst_59 {dimension_numbers = #tpu.dot_dimension_numbers<[1], [1], [0], [0], [0, 0, 1, 0], [], []>} : vector<16x8xbf16>, vector<16x8xbf16>, vector<16x16xf32> -> vector<16x16xf32>
    %104 = vector.broadcast %16 : vector<1x16xf32> to vector<16x16xf32>
    %105 = arith.addf %103, %104 : vector<16x16xf32>
    %cst_60 = arith.constant dense<0xFF800000> : vector<16xf32>
    %106 = vector.multi_reduction <maximumf>, %105, %cst_60 [1] : vector<16x16xf32> to vector<16xf32>
    %107 = vector.shape_cast %106 : vector<16xf32> to vector<16x1xf32>
    %108 = vector.broadcast %107 : vector<16x1xf32> to vector<16x16xf32>
    %109 = arith.subf %105, %108 : vector<16x16xf32>
    %110 = math.exp %109 : vector<16x16xf32>
    %cst_61 = arith.constant dense<0.000000e+00> : vector<16xf32>
    %111 = vector.multi_reduction <add>, %110, %cst_61 [1] : vector<16x16xf32> to vector<16xf32>
    %112 = vector.shape_cast %111 : vector<16xf32> to vector<16x1xf32>
    %113 = tpu.reciprocal %112 {approx = true} : vector<16x1xf32> -> vector<16x1xf32>
    %114 = vector.broadcast %113 : vector<16x1xf32> to vector<16x16xf32>
    %115 = arith.mulf %110, %114 : vector<16x16xf32>
    %116 = arith.truncf %115 : vector<16x16xf32> to vector<16x16xbf16>
    %cst_62 = arith.constant dense<0.000000e+00> : vector<16x8xf32>
    %117 = tpu.matmul %116, %102, %cst_62 {dimension_numbers = #tpu.dot_dimension_numbers<[1], [0], [0], [1], [0, 0, 1, 1], [], []>} : vector<16x16xbf16>, vector<16x8xbf16>, vector<16x8xf32> -> vector<16x8xf32>
    %118 = tpu.concatenate %63, %81, %99, %117 in 1 : vector<16x8xf32>, vector<16x8xf32>, vector<16x8xf32>, vector<16x8xf32> -> vector<16x32xf32>
    %119 = arith.truncf %118 : vector<16x32xf32> to vector<16x32xbf16>
    %cst_63 = arith.constant dense<0.000000e+00> : vector<16x32xf32>
    %120 = tpu.matmul %119, %22, %cst_63 {dimension_numbers = #tpu.dot_dimension_numbers<[1], [0], [0], [1], [0, 0, 1, 1], [], []>} : vector<16x32xbf16>, vector<32x32xbf16>, vector<16x32xf32> -> vector<16x32xf32>
    %121 = vector.broadcast %24 : vector<1x32xf32> to vector<16x32xf32>
    %122 = arith.addf %120, %121 : vector<16x32xf32>
    %123 = arith.addf %10, %122 : vector<16x32xf32>
    %cst_64 = arith.constant dense<0.000000e+00> : vector<16xf32>
    %124 = vector.multi_reduction <add>, %123, %cst_64 [1] : vector<16x32xf32> to vector<16xf32>
    %125 = vector.shape_cast %124 : vector<16xf32> to vector<16x1xf32>
    %cst_65 = arith.constant 3.200000e+01 : f32
    %126 = vector.broadcast %cst_65 : f32 to vector<16x1xf32>
    %127 = arith.divf %125, %126 : vector<16x1xf32>
    %128 = vector.broadcast %127 : vector<16x1xf32> to vector<16x32xf32>
    %129 = arith.subf %123, %128 : vector<16x32xf32>
    %130 = arith.mulf %129, %129 : vector<16x32xf32>
    %cst_66 = arith.constant dense<0.000000e+00> : vector<16xf32>
    %131 = vector.multi_reduction <add>, %130, %cst_66 [1] : vector<16x32xf32> to vector<16xf32>
    %132 = vector.shape_cast %131 : vector<16xf32> to vector<16x1xf32>
    %cst_67 = arith.constant 3.200000e+01 : f32
    %133 = vector.broadcast %cst_67 : f32 to vector<16x1xf32>
    %134 = arith.divf %132, %133 : vector<16x1xf32>
    %135 = vector.broadcast %127 : vector<16x1xf32> to vector<16x32xf32>
    %136 = arith.subf %123, %135 : vector<16x32xf32>
    %cst_68 = arith.constant 9.99999974E-6 : f32
    %137 = vector.broadcast %cst_68 : f32 to vector<16x1xf32>
    %138 = arith.addf %134, %137 : vector<16x1xf32>
    %139 = math.rsqrt %138 : vector<16x1xf32>
    %140 = vector.broadcast %139 : vector<16x1xf32> to vector<16x32xf32>
    %141 = arith.mulf %136, %140 : vector<16x32xf32>
    %142 = vector.broadcast %26 : vector<1x32xf32> to vector<16x32xf32>
    %143 = arith.mulf %141, %142 : vector<16x32xf32>
    %144 = vector.broadcast %28 : vector<1x32xf32> to vector<16x32xf32>
    %145 = arith.addf %143, %144 : vector<16x32xf32>
    %146 = arith.truncf %145 : vector<16x32xf32> to vector<16x32xbf16>
    %cst_69 = arith.constant dense<0.000000e+00> : vector<16x128xf32>
    %147 = tpu.matmul %146, %30, %cst_69 {dimension_numbers = #tpu.dot_dimension_numbers<[1], [0], [0], [1], [0, 0, 1, 1], [], []>} : vector<16x32xbf16>, vector<32x128xbf16>, vector<16x128xf32> -> vector<16x128xf32>
    %148 = vector.broadcast %32 : vector<1x128xf32> to vector<16x128xf32>
    %149 = arith.addf %147, %148 : vector<16x128xf32>
    %cst_70 = arith.constant 0.000000e+00 : f32
    %150 = vector.broadcast %cst_70 : f32 to vector<16x128xf32>
    %151 = arith.maximumf %149, %150 : vector<16x128xf32>
    %152 = arith.truncf %151 : vector<16x128xf32> to vector<16x128xbf16>
    %cst_71 = arith.constant dense<0.000000e+00> : vector<16x32xf32>
    %153 = tpu.matmul %152, %34, %cst_71 {dimension_numbers = #tpu.dot_dimension_numbers<[1], [0], [0], [1], [0, 0, 1, 1], [], []>} : vector<16x128xbf16>, vector<128x32xbf16>, vector<16x32xf32> -> vector<16x32xf32>
    %154 = vector.broadcast %36 : vector<1x32xf32> to vector<16x32xf32>
    %155 = arith.addf %153, %154 : vector<16x32xf32>
    %156 = arith.addf %145, %155 : vector<16x32xf32>
    %cst_72 = arith.constant dense<0.000000e+00> : vector<16xf32>
    %157 = vector.multi_reduction <add>, %156, %cst_72 [1] : vector<16x32xf32> to vector<16xf32>
    %158 = vector.shape_cast %157 : vector<16xf32> to vector<16x1xf32>
    %cst_73 = arith.constant 3.200000e+01 : f32
    %159 = vector.broadcast %cst_73 : f32 to vector<16x1xf32>
    %160 = arith.divf %158, %159 : vector<16x1xf32>
    %161 = vector.broadcast %160 : vector<16x1xf32> to vector<16x32xf32>
    %162 = arith.subf %156, %161 : vector<16x32xf32>
    %163 = arith.mulf %162, %162 : vector<16x32xf32>
    %cst_74 = arith.constant dense<0.000000e+00> : vector<16xf32>
    %164 = vector.multi_reduction <add>, %163, %cst_74 [1] : vector<16x32xf32> to vector<16xf32>
    %165 = vector.shape_cast %164 : vector<16xf32> to vector<16x1xf32>
    %cst_75 = arith.constant 3.200000e+01 : f32
    %166 = vector.broadcast %cst_75 : f32 to vector<16x1xf32>
    %167 = arith.divf %165, %166 : vector<16x1xf32>
    %168 = vector.broadcast %160 : vector<16x1xf32> to vector<16x32xf32>
    %169 = arith.subf %156, %168 : vector<16x32xf32>
    %cst_76 = arith.constant 9.99999974E-6 : f32
    %170 = vector.broadcast %cst_76 : f32 to vector<16x1xf32>
    %171 = arith.addf %167, %170 : vector<16x1xf32>
    %172 = math.rsqrt %171 : vector<16x1xf32>
    %173 = vector.broadcast %172 : vector<16x1xf32> to vector<16x32xf32>
    %174 = arith.mulf %169, %173 : vector<16x32xf32>
    %175 = vector.broadcast %38 : vector<1x32xf32> to vector<16x32xf32>
    %176 = arith.mulf %174, %175 : vector<16x32xf32>
    %177 = vector.broadcast %40 : vector<1x32xf32> to vector<16x32xf32>
    %178 = arith.addf %176, %177 : vector<16x32xf32>
    %c1 = arith.constant 1 : index
    %c0_77 = arith.constant 0 : index
    %c0_78 = arith.constant 0 : index
    %179 = vector.load %arg5[%c1, %c0_77, %c0_78] : memref<2x32x96xbf16, #tpu.memory_space<vmem>>, vector<1x32x96xbf16>
    %180 = vector.shape_cast %179 : vector<1x32x96xbf16> to vector<32x96xbf16>
    %c1_79 = arith.constant 1 : index
    %c0_80 = arith.constant 0 : index
    %c0_81 = arith.constant 0 : index
    %181 = vector.load %arg6[%c1_79, %c0_80, %c0_81] : memref<2x1x96xf32, #tpu.memory_space<vmem>>, vector<1x1x96xf32>
    %182 = vector.shape_cast %181 : vector<1x1x96xf32> to vector<1x96xf32>
    %c1_82 = arith.constant 1 : index
    %c0_83 = arith.constant 0 : index
    %c0_84 = arith.constant 0 : index
    %183 = vector.load %arg7[%c1_82, %c0_83, %c0_84] : memref<2x32x32xbf16, #tpu.memory_space<vmem>>, vector<1x32x32xbf16>
    %184 = vector.shape_cast %183 : vector<1x32x32xbf16> to vector<32x32xbf16>
    %c1_85 = arith.constant 1 : index
    %c0_86 = arith.constant 0 : index
    %c0_87 = arith.constant 0 : index
    %185 = vector.load %arg8[%c1_85, %c0_86, %c0_87] : memref<2x1x32xf32, #tpu.memory_space<vmem>>, vector<1x1x32xf32>
    %186 = vector.shape_cast %185 : vector<1x1x32xf32> to vector<1x32xf32>
    %c1_88 = arith.constant 1 : index
    %c0_89 = arith.constant 0 : index
    %c0_90 = arith.constant 0 : index
    %187 = vector.load %arg9[%c1_88, %c0_89, %c0_90] : memref<2x1x32xf32, #tpu.memory_space<vmem>>, vector<1x1x32xf32>
    %188 = vector.shape_cast %187 : vector<1x1x32xf32> to vector<1x32xf32>
    %c1_91 = arith.constant 1 : index
    %c0_92 = arith.constant 0 : index
    %c0_93 = arith.constant 0 : index
    %189 = vector.load %arg10[%c1_91, %c0_92, %c0_93] : memref<2x1x32xf32, #tpu.memory_space<vmem>>, vector<1x1x32xf32>
    %190 = vector.shape_cast %189 : vector<1x1x32xf32> to vector<1x32xf32>
    %c1_94 = arith.constant 1 : index
    %c0_95 = arith.constant 0 : index
    %c0_96 = arith.constant 0 : index
    %191 = vector.load %arg11[%c1_94, %c0_95, %c0_96] : memref<2x32x128xbf16, #tpu.memory_space<vmem>>, vector<1x32x128xbf16>
    %192 = vector.shape_cast %191 : vector<1x32x128xbf16> to vector<32x128xbf16>
    %c1_97 = arith.constant 1 : index
    %c0_98 = arith.constant 0 : index
    %c0_99 = arith.constant 0 : index
    %193 = vector.load %arg12[%c1_97, %c0_98, %c0_99] : memref<2x1x128xf32, #tpu.memory_space<vmem>>, vector<1x1x128xf32>
    %194 = vector.shape_cast %193 : vector<1x1x128xf32> to vector<1x128xf32>
    %c1_100 = arith.constant 1 : index
    %c0_101 = arith.constant 0 : index
    %c0_102 = arith.constant 0 : index
    %195 = vector.load %arg13[%c1_100, %c0_101, %c0_102] : memref<2x128x32xbf16, #tpu.memory_space<vmem>>, vector<1x128x32xbf16>
    %196 = vector.shape_cast %195 : vector<1x128x32xbf16> to vector<128x32xbf16>
    %c1_103 = arith.constant 1 : index
    %c0_104 = arith.constant 0 : index
    %c0_105 = arith.constant 0 : index
    %197 = vector.load %arg14[%c1_103, %c0_104, %c0_105] : memref<2x1x32xf32, #tpu.memory_space<vmem>>, vector<1x1x32xf32>
    %198 = vector.shape_cast %197 : vector<1x1x32xf32> to vector<1x32xf32>
    %c1_106 = arith.constant 1 : index
    %c0_107 = arith.constant 0 : index
    %c0_108 = arith.constant 0 : index
    %199 = vector.load %arg15[%c1_106, %c0_107, %c0_108] : memref<2x1x32xf32, #tpu.memory_space<vmem>>, vector<1x1x32xf32>
    %200 = vector.shape_cast %199 : vector<1x1x32xf32> to vector<1x32xf32>
    %c1_109 = arith.constant 1 : index
    %c0_110 = arith.constant 0 : index
    %c0_111 = arith.constant 0 : index
    %201 = vector.load %arg16[%c1_109, %c0_110, %c0_111] : memref<2x1x32xf32, #tpu.memory_space<vmem>>, vector<1x1x32xf32>
    %202 = vector.shape_cast %201 : vector<1x1x32xf32> to vector<1x32xf32>
    %203 = arith.truncf %178 : vector<16x32xf32> to vector<16x32xbf16>
    %cst_112 = arith.constant dense<0.000000e+00> : vector<16x96xf32>
    %204 = tpu.matmul %203, %180, %cst_112 {dimension_numbers = #tpu.dot_dimension_numbers<[1], [0], [0], [1], [0, 0, 1, 1], [], []>} : vector<16x32xbf16>, vector<32x96xbf16>, vector<16x96xf32> -> vector<16x96xf32>
    %205 = vector.broadcast %182 : vector<1x96xf32> to vector<16x96xf32>
    %206 = arith.addf %204, %205 : vector<16x96xf32>
    %207 = arith.truncf %206 : vector<16x96xf32> to vector<16x96xbf16>
    %208 = vector.extract_strided_slice %207 {offsets = [0, 0], sizes = [16, 8], strides = [1, 1]} : vector<16x96xbf16> to vector<16x8xbf16>
    %209 = vector.extract_strided_slice %207 {offsets = [0, 32], sizes = [16, 8], strides = [1, 1]} : vector<16x96xbf16> to vector<16x8xbf16>
    %210 = vector.extract_strided_slice %207 {offsets = [0, 64], sizes = [16, 8], strides = [1, 1]} : vector<16x96xbf16> to vector<16x8xbf16>
    %cst_113 = arith.constant dense<0.000000e+00> : vector<16x16xf32>
    %211 = tpu.matmul %208, %209, %cst_113 {dimension_numbers = #tpu.dot_dimension_numbers<[1], [1], [0], [0], [0, 0, 1, 0], [], []>} : vector<16x8xbf16>, vector<16x8xbf16>, vector<16x16xf32> -> vector<16x16xf32>
    %212 = vector.broadcast %16 : vector<1x16xf32> to vector<16x16xf32>
    %213 = arith.addf %211, %212 : vector<16x16xf32>
    %cst_114 = arith.constant dense<0xFF800000> : vector<16xf32>
    %214 = vector.multi_reduction <maximumf>, %213, %cst_114 [1] : vector<16x16xf32> to vector<16xf32>
    %215 = vector.shape_cast %214 : vector<16xf32> to vector<16x1xf32>
    %216 = vector.broadcast %215 : vector<16x1xf32> to vector<16x16xf32>
    %217 = arith.subf %213, %216 : vector<16x16xf32>
    %218 = math.exp %217 : vector<16x16xf32>
    %cst_115 = arith.constant dense<0.000000e+00> : vector<16xf32>
    %219 = vector.multi_reduction <add>, %218, %cst_115 [1] : vector<16x16xf32> to vector<16xf32>
    %220 = vector.shape_cast %219 : vector<16xf32> to vector<16x1xf32>
    %221 = tpu.reciprocal %220 {approx = true} : vector<16x1xf32> -> vector<16x1xf32>
    %222 = vector.broadcast %221 : vector<16x1xf32> to vector<16x16xf32>
    %223 = arith.mulf %218, %222 : vector<16x16xf32>
    %224 = arith.truncf %223 : vector<16x16xf32> to vector<16x16xbf16>
    %cst_116 = arith.constant dense<0.000000e+00> : vector<16x8xf32>
    %225 = tpu.matmul %224, %210, %cst_116 {dimension_numbers = #tpu.dot_dimension_numbers<[1], [0], [0], [1], [0, 0, 1, 1], [], []>} : vector<16x16xbf16>, vector<16x8xbf16>, vector<16x8xf32> -> vector<16x8xf32>
    %226 = vector.extract_strided_slice %207 {offsets = [0, 8], sizes = [16, 8], strides = [1, 1]} : vector<16x96xbf16> to vector<16x8xbf16>
    %227 = vector.extract_strided_slice %207 {offsets = [0, 40], sizes = [16, 8], strides = [1, 1]} : vector<16x96xbf16> to vector<16x8xbf16>
    %228 = vector.extract_strided_slice %207 {offsets = [0, 72], sizes = [16, 8], strides = [1, 1]} : vector<16x96xbf16> to vector<16x8xbf16>
    %cst_117 = arith.constant dense<0.000000e+00> : vector<16x16xf32>
    %229 = tpu.matmul %226, %227, %cst_117 {dimension_numbers = #tpu.dot_dimension_numbers<[1], [1], [0], [0], [0, 0, 1, 0], [], []>} : vector<16x8xbf16>, vector<16x8xbf16>, vector<16x16xf32> -> vector<16x16xf32>
    %230 = vector.broadcast %16 : vector<1x16xf32> to vector<16x16xf32>
    %231 = arith.addf %229, %230 : vector<16x16xf32>
    %cst_118 = arith.constant dense<0xFF800000> : vector<16xf32>
    %232 = vector.multi_reduction <maximumf>, %231, %cst_118 [1] : vector<16x16xf32> to vector<16xf32>
    %233 = vector.shape_cast %232 : vector<16xf32> to vector<16x1xf32>
    %234 = vector.broadcast %233 : vector<16x1xf32> to vector<16x16xf32>
    %235 = arith.subf %231, %234 : vector<16x16xf32>
    %236 = math.exp %235 : vector<16x16xf32>
    %cst_119 = arith.constant dense<0.000000e+00> : vector<16xf32>
    %237 = vector.multi_reduction <add>, %236, %cst_119 [1] : vector<16x16xf32> to vector<16xf32>
    %238 = vector.shape_cast %237 : vector<16xf32> to vector<16x1xf32>
    %239 = tpu.reciprocal %238 {approx = true} : vector<16x1xf32> -> vector<16x1xf32>
    %240 = vector.broadcast %239 : vector<16x1xf32> to vector<16x16xf32>
    %241 = arith.mulf %236, %240 : vector<16x16xf32>
    %242 = arith.truncf %241 : vector<16x16xf32> to vector<16x16xbf16>
    %cst_120 = arith.constant dense<0.000000e+00> : vector<16x8xf32>
    %243 = tpu.matmul %242, %228, %cst_120 {dimension_numbers = #tpu.dot_dimension_numbers<[1], [0], [0], [1], [0, 0, 1, 1], [], []>} : vector<16x16xbf16>, vector<16x8xbf16>, vector<16x8xf32> -> vector<16x8xf32>
    %244 = vector.extract_strided_slice %207 {offsets = [0, 16], sizes = [16, 8], strides = [1, 1]} : vector<16x96xbf16> to vector<16x8xbf16>
    %245 = vector.extract_strided_slice %207 {offsets = [0, 48], sizes = [16, 8], strides = [1, 1]} : vector<16x96xbf16> to vector<16x8xbf16>
    %246 = vector.extract_strided_slice %207 {offsets = [0, 80], sizes = [16, 8], strides = [1, 1]} : vector<16x96xbf16> to vector<16x8xbf16>
    %cst_121 = arith.constant dense<0.000000e+00> : vector<16x16xf32>
    %247 = tpu.matmul %244, %245, %cst_121 {dimension_numbers = #tpu.dot_dimension_numbers<[1], [1], [0], [0], [0, 0, 1, 0], [], []>} : vector<16x8xbf16>, vector<16x8xbf16>, vector<16x16xf32> -> vector<16x16xf32>
    %248 = vector.broadcast %16 : vector<1x16xf32> to vector<16x16xf32>
    %249 = arith.addf %247, %248 : vector<16x16xf32>
    %cst_122 = arith.constant dense<0xFF800000> : vector<16xf32>
    %250 = vector.multi_reduction <maximumf>, %249, %cst_122 [1] : vector<16x16xf32> to vector<16xf32>
    %251 = vector.shape_cast %250 : vector<16xf32> to vector<16x1xf32>
    %252 = vector.broadcast %251 : vector<16x1xf32> to vector<16x16xf32>
    %253 = arith.subf %249, %252 : vector<16x16xf32>
    %254 = math.exp %253 : vector<16x16xf32>
    %cst_123 = arith.constant dense<0.000000e+00> : vector<16xf32>
    %255 = vector.multi_reduction <add>, %254, %cst_123 [1] : vector<16x16xf32> to vector<16xf32>
    %256 = vector.shape_cast %255 : vector<16xf32> to vector<16x1xf32>
    %257 = tpu.reciprocal %256 {approx = true} : vector<16x1xf32> -> vector<16x1xf32>
    %258 = vector.broadcast %257 : vector<16x1xf32> to vector<16x16xf32>
    %259 = arith.mulf %254, %258 : vector<16x16xf32>
    %260 = arith.truncf %259 : vector<16x16xf32> to vector<16x16xbf16>
    %cst_124 = arith.constant dense<0.000000e+00> : vector<16x8xf32>
    %261 = tpu.matmul %260, %246, %cst_124 {dimension_numbers = #tpu.dot_dimension_numbers<[1], [0], [0], [1], [0, 0, 1, 1], [], []>} : vector<16x16xbf16>, vector<16x8xbf16>, vector<16x8xf32> -> vector<16x8xf32>
    %262 = vector.extract_strided_slice %207 {offsets = [0, 24], sizes = [16, 8], strides = [1, 1]} : vector<16x96xbf16> to vector<16x8xbf16>
    %263 = vector.extract_strided_slice %207 {offsets = [0, 56], sizes = [16, 8], strides = [1, 1]} : vector<16x96xbf16> to vector<16x8xbf16>
    %264 = vector.extract_strided_slice %207 {offsets = [0, 88], sizes = [16, 8], strides = [1, 1]} : vector<16x96xbf16> to vector<16x8xbf16>
    %cst_125 = arith.constant dense<0.000000e+00> : vector<16x16xf32>
    %265 = tpu.matmul %262, %263, %cst_125 {dimension_numbers = #tpu.dot_dimension_numbers<[1], [1], [0], [0], [0, 0, 1, 0], [], []>} : vector<16x8xbf16>, vector<16x8xbf16>, vector<16x16xf32> -> vector<16x16xf32>
    %266 = vector.broadcast %16 : vector<1x16xf32> to vector<16x16xf32>
    %267 = arith.addf %265, %266 : vector<16x16xf32>
    %cst_126 = arith.constant dense<0xFF800000> : vector<16xf32>
    %268 = vector.multi_reduction <maximumf>, %267, %cst_126 [1] : vector<16x16xf32> to vector<16xf32>
    %269 = vector.shape_cast %268 : vector<16xf32> to vector<16x1xf32>
    %270 = vector.broadcast %269 : vector<16x1xf32> to vector<16x16xf32>
    %271 = arith.subf %267, %270 : vector<16x16xf32>
    %272 = math.exp %271 : vector<16x16xf32>
    %cst_127 = arith.constant dense<0.000000e+00> : vector<16xf32>
    %273 = vector.multi_reduction <add>, %272, %cst_127 [1] : vector<16x16xf32> to vector<16xf32>
    %274 = vector.shape_cast %273 : vector<16xf32> to vector<16x1xf32>
    %275 = tpu.reciprocal %274 {approx = true} : vector<16x1xf32> -> vector<16x1xf32>
    %276 = vector.broadcast %275 : vector<16x1xf32> to vector<16x16xf32>
    %277 = arith.mulf %272, %276 : vector<16x16xf32>
    %278 = arith.truncf %277 : vector<16x16xf32> to vector<16x16xbf16>
    %cst_128 = arith.constant dense<0.000000e+00> : vector<16x8xf32>
    %279 = tpu.matmul %278, %264, %cst_128 {dimension_numbers = #tpu.dot_dimension_numbers<[1], [0], [0], [1], [0, 0, 1, 1], [], []>} : vector<16x16xbf16>, vector<16x8xbf16>, vector<16x8xf32> -> vector<16x8xf32>
    %280 = tpu.concatenate %225, %243, %261, %279 in 1 : vector<16x8xf32>, vector<16x8xf32>, vector<16x8xf32>, vector<16x8xf32> -> vector<16x32xf32>
    %281 = arith.truncf %280 : vector<16x32xf32> to vector<16x32xbf16>
    %cst_129 = arith.constant dense<0.000000e+00> : vector<16x32xf32>
    %282 = tpu.matmul %281, %184, %cst_129 {dimension_numbers = #tpu.dot_dimension_numbers<[1], [0], [0], [1], [0, 0, 1, 1], [], []>} : vector<16x32xbf16>, vector<32x32xbf16>, vector<16x32xf32> -> vector<16x32xf32>
    %283 = vector.broadcast %186 : vector<1x32xf32> to vector<16x32xf32>
    %284 = arith.addf %282, %283 : vector<16x32xf32>
    %285 = arith.addf %178, %284 : vector<16x32xf32>
    %cst_130 = arith.constant dense<0.000000e+00> : vector<16xf32>
    %286 = vector.multi_reduction <add>, %285, %cst_130 [1] : vector<16x32xf32> to vector<16xf32>
    %287 = vector.shape_cast %286 : vector<16xf32> to vector<16x1xf32>
    %cst_131 = arith.constant 3.200000e+01 : f32
    %288 = vector.broadcast %cst_131 : f32 to vector<16x1xf32>
    %289 = arith.divf %287, %288 : vector<16x1xf32>
    %290 = vector.broadcast %289 : vector<16x1xf32> to vector<16x32xf32>
    %291 = arith.subf %285, %290 : vector<16x32xf32>
    %292 = arith.mulf %291, %291 : vector<16x32xf32>
    %cst_132 = arith.constant dense<0.000000e+00> : vector<16xf32>
    %293 = vector.multi_reduction <add>, %292, %cst_132 [1] : vector<16x32xf32> to vector<16xf32>
    %294 = vector.shape_cast %293 : vector<16xf32> to vector<16x1xf32>
    %cst_133 = arith.constant 3.200000e+01 : f32
    %295 = vector.broadcast %cst_133 : f32 to vector<16x1xf32>
    %296 = arith.divf %294, %295 : vector<16x1xf32>
    %297 = vector.broadcast %289 : vector<16x1xf32> to vector<16x32xf32>
    %298 = arith.subf %285, %297 : vector<16x32xf32>
    %cst_134 = arith.constant 9.99999974E-6 : f32
    %299 = vector.broadcast %cst_134 : f32 to vector<16x1xf32>
    %300 = arith.addf %296, %299 : vector<16x1xf32>
    %301 = math.rsqrt %300 : vector<16x1xf32>
    %302 = vector.broadcast %301 : vector<16x1xf32> to vector<16x32xf32>
    %303 = arith.mulf %298, %302 : vector<16x32xf32>
    %304 = vector.broadcast %188 : vector<1x32xf32> to vector<16x32xf32>
    %305 = arith.mulf %303, %304 : vector<16x32xf32>
    %306 = vector.broadcast %190 : vector<1x32xf32> to vector<16x32xf32>
    %307 = arith.addf %305, %306 : vector<16x32xf32>
    %308 = arith.truncf %307 : vector<16x32xf32> to vector<16x32xbf16>
    %cst_135 = arith.constant dense<0.000000e+00> : vector<16x128xf32>
    %309 = tpu.matmul %308, %192, %cst_135 {dimension_numbers = #tpu.dot_dimension_numbers<[1], [0], [0], [1], [0, 0, 1, 1], [], []>} : vector<16x32xbf16>, vector<32x128xbf16>, vector<16x128xf32> -> vector<16x128xf32>
    %310 = vector.broadcast %194 : vector<1x128xf32> to vector<16x128xf32>
    %311 = arith.addf %309, %310 : vector<16x128xf32>
    %cst_136 = arith.constant 0.000000e+00 : f32
    %312 = vector.broadcast %cst_136 : f32 to vector<16x128xf32>
    %313 = arith.maximumf %311, %312 : vector<16x128xf32>
    %314 = arith.truncf %313 : vector<16x128xf32> to vector<16x128xbf16>
    %cst_137 = arith.constant dense<0.000000e+00> : vector<16x32xf32>
    %315 = tpu.matmul %314, %196, %cst_137 {dimension_numbers = #tpu.dot_dimension_numbers<[1], [0], [0], [1], [0, 0, 1, 1], [], []>} : vector<16x128xbf16>, vector<128x32xbf16>, vector<16x32xf32> -> vector<16x32xf32>
    %316 = vector.broadcast %198 : vector<1x32xf32> to vector<16x32xf32>
    %317 = arith.addf %315, %316 : vector<16x32xf32>
    %318 = arith.addf %307, %317 : vector<16x32xf32>
    %cst_138 = arith.constant dense<0.000000e+00> : vector<16xf32>
    %319 = vector.multi_reduction <add>, %318, %cst_138 [1] : vector<16x32xf32> to vector<16xf32>
    %320 = vector.shape_cast %319 : vector<16xf32> to vector<16x1xf32>
    %cst_139 = arith.constant 3.200000e+01 : f32
    %321 = vector.broadcast %cst_139 : f32 to vector<16x1xf32>
    %322 = arith.divf %320, %321 : vector<16x1xf32>
    %323 = vector.broadcast %322 : vector<16x1xf32> to vector<16x32xf32>
    %324 = arith.subf %318, %323 : vector<16x32xf32>
    %325 = arith.mulf %324, %324 : vector<16x32xf32>
    %cst_140 = arith.constant dense<0.000000e+00> : vector<16xf32>
    %326 = vector.multi_reduction <add>, %325, %cst_140 [1] : vector<16x32xf32> to vector<16xf32>
    %327 = vector.shape_cast %326 : vector<16xf32> to vector<16x1xf32>
    %cst_141 = arith.constant 3.200000e+01 : f32
    %328 = vector.broadcast %cst_141 : f32 to vector<16x1xf32>
    %329 = arith.divf %327, %328 : vector<16x1xf32>
    %330 = vector.broadcast %322 : vector<16x1xf32> to vector<16x32xf32>
    %331 = arith.subf %318, %330 : vector<16x32xf32>
    %cst_142 = arith.constant 9.99999974E-6 : f32
    %332 = vector.broadcast %cst_142 : f32 to vector<16x1xf32>
    %333 = arith.addf %329, %332 : vector<16x1xf32>
    %334 = math.rsqrt %333 : vector<16x1xf32>
    %335 = vector.broadcast %334 : vector<16x1xf32> to vector<16x32xf32>
    %336 = arith.mulf %331, %335 : vector<16x32xf32>
    %337 = vector.broadcast %200 : vector<1x32xf32> to vector<16x32xf32>
    %338 = arith.mulf %336, %337 : vector<16x32xf32>
    %339 = vector.broadcast %202 : vector<1x32xf32> to vector<16x32xf32>
    %340 = arith.addf %338, %339 : vector<16x32xf32>
    %341 = vector.extract_strided_slice %340 {offsets = [0, 0], sizes = [8, 32], strides = [1, 1]} : vector<16x32xf32> to vector<8x32xf32>
    %342 = vector.shape_cast %341 : vector<8x32xf32> to vector<1x8x32xf32>
    %c0_143 = arith.constant 0 : index
    %c0_144 = arith.constant 0 : index
    %c0_145 = arith.constant 0 : index
    %343 = vector.load %arg18[%c0_143, %c0_144, %c0_145] : memref<1x8x32xf32, #tpu.memory_space<vmem>>, vector<1x8x32xf32>
    tpu.vector_store %arg18[%c0_143, %c0_144, %c0_145], %342 {strides = array<i32>} : memref<1x8x32xf32, #tpu.memory_space<vmem>>, vector<1x8x32xf32>,
    %344 = vector.extract_strided_slice %340 {offsets = [8, 0], sizes = [1, 32], strides = [1, 1]} : vector<16x32xf32> to vector<1x32xf32>
    %345 = vector.shape_cast %344 : vector<1x32xf32> to vector<1x1x32xf32>
    %c0_146 = arith.constant 0 : index
    %c0_147 = arith.constant 0 : index
    %c0_148 = arith.constant 0 : index
    %346 = vector.load %arg17[%c0_146, %c0_147, %c0_148] : memref<1x1x32xf32, #tpu.memory_space<vmem>>, vector<1x1x32xf32>
    tpu.vector_store %arg17[%c0_146, %c0_147, %c0_148], %345 {strides = array<i32>} : memref<1x1x32xf32, #tpu.memory_space<vmem>>, vector<1x1x32xf32>,
    return
  }
  func.func @transform_0(%arg0: i32) -> (i32, i32) {
    %c0_i32 = arith.constant 0 : i32
    %c0_i32_0 = arith.constant 0 : i32
    return %arg0, %c0_i32 : i32, i32
  }
  func.func @transform_1(%arg0: i32) -> (i32, i32) {
    %c0_i32 = arith.constant 0 : i32
    %c0_i32_0 = arith.constant 0 : i32
    %c0_i32_1 = arith.constant 0 : i32
    return %c0_i32, %c0_i32_0 : i32, i32
  }
  func.func @transform_2(%arg0: i32) -> (i32, i32) {
    %c0_i32 = arith.constant 0 : i32
    %c0_i32_0 = arith.constant 0 : i32
    %c0_i32_1 = arith.constant 0 : i32
    return %c0_i32, %c0_i32_0 : i32, i32
  }
  func.func @transform_3(%arg0: i32) -> (i32, i32) {
    %c0_i32 = arith.constant 0 : i32
    %c0_i32_0 = arith.constant 0 : i32
    %c0_i32_1 = arith.constant 0 : i32
    return %c0_i32, %c0_i32_0 : i32, i32
  }
  func.func @transform_4(%arg0: i32) -> (i32, i32, i32) {
    %c0_i32 = arith.constant 0 : i32
    %c0_i32_0 = arith.constant 0 : i32
    %c0_i32_1 = arith.constant 0 : i32
    %c0_i32_2 = arith.constant 0 : i32
    return %c0_i32, %c0_i32_0, %c0_i32_1 : i32, i32, i32
  }
  func.func @transform_5(%arg0: i32) -> (i32, i32, i32) {
    %c0_i32 = arith.constant 0 : i32
    %c0_i32_0 = arith.constant 0 : i32
    %c0_i32_1 = arith.constant 0 : i32
    %c0_i32_2 = arith.constant 0 : i32
    return %c0_i32, %c0_i32_0, %c0_i32_1 : i32, i32, i32
  }
  func.func @transform_6(%arg0: i32) -> (i32, i32, i32) {
    %c0_i32 = arith.constant 0 : i32
    %c0_i32_0 = arith.constant 0 : i32
    %c0_i32_1 = arith.constant 0 : i32
    %c0_i32_2 = arith.constant 0 : i32
    return %c0_i32, %c0_i32_0, %c0_i32_1 : i32, i32, i32
  }
  func.func @transform_7(%arg0: i32) -> (i32, i32, i32) {
    %c0_i32 = arith.constant 0 : i32
    %c0_i32_0 = arith.constant 0 : i32
    %c0_i32_1 = arith.constant 0 : i32
    %c0_i32_2 = arith.constant 0 : i32
    return %c0_i32, %c0_i32_0, %c0_i32_1 : i32, i32, i32
  }
  func.func @transform_8(%arg0: i32) -> (i32, i32, i32) {
    %c0_i32 = arith.constant 0 : i32
    %c0_i32_0 = arith.constant 0 : i32
    %c0_i32_1 = arith.constant 0 : i32
    %c0_i32_2 = arith.constant 0 : i32
    return %c0_i32, %c0_i32_0, %c0_i32_1 : i32, i32, i32
  }
  func.func @transform_9(%arg0: i32) -> (i32, i32, i32) {
    %c0_i32 = arith.constant 0 : i32
    %c0_i32_0 = arith.constant 0 : i32
    %c0_i32_1 = arith.constant 0 : i32
    %c0_i32_2 = arith.constant 0 : i32
    return %c0_i32, %c0_i32_0, %c0_i32_1 : i32, i32, i32
  }
  func.func @transform_10(%arg0: i32) -> (i32, i32, i32) {
    %c0_i32 = arith.constant 0 : i32
    %c0_i32_0 = arith.constant 0 : i32
    %c0_i32_1 = arith.constant 0 : i32
    %c0_i32_2 = arith.constant 0 : i32
    return %c0_i32, %c0_i32_0, %c0_i32_1 : i32, i32, i32
  }
  func.func @transform_11(%arg0: i32) -> (i32, i32, i32) {
    %c0_i32 = arith.constant 0 : i32
    %c0_i32_0 = arith.constant 0 : i32
    %c0_i32_1 = arith.constant 0 : i32
    %c0_i32_2 = arith.constant 0 : i32
    return %c0_i32, %c0_i32_0, %c0_i32_1 : i32, i32, i32
  }
  func.func @transform_12(%arg0: i32) -> (i32, i32, i32) {
    %c0_i32 = arith.constant 0 : i32
    %c0_i32_0 = arith.constant 0 : i32
    %c0_i32_1 = arith.constant 0 : i32
    %c0_i32_2 = arith.constant 0 : i32
    return %c0_i32, %c0_i32_0, %c0_i32_1 : i32, i32, i32
  }
  func.func @transform_13(%arg0: i32) -> (i32, i32, i32) {
    %c0_i32 = arith.constant 0 : i32
    %c0_i32_0 = arith.constant 0 : i32
    %c0_i32_1 = arith.constant 0 : i32
    %c0_i32_2 = arith.constant 0 : i32
    return %c0_i32, %c0_i32_0, %c0_i32_1 : i32, i32, i32
  }
  func.func @transform_14(%arg0: i32) -> (i32, i32, i32) {
    %c0_i32 = arith.constant 0 : i32
    %c0_i32_0 = arith.constant 0 : i32
    %c0_i32_1 = arith.constant 0 : i32
    %c0_i32_2 = arith.constant 0 : i32
    return %c0_i32, %c0_i32_0, %c0_i32_1 : i32, i32, i32
  }
  func.func @transform_15(%arg0: i32) -> (i32, i32, i32) {
    %c0_i32 = arith.constant 0 : i32
    %c0_i32_0 = arith.constant 0 : i32
    %c0_i32_1 = arith.constant 0 : i32
    %c0_i32_2 = arith.constant 0 : i32
    return %c0_i32, %c0_i32_0, %c0_i32_1 : i32, i32, i32
  }
  func.func @transform_16(%arg0: i32) -> (i32, i32, i32) {
    %c0_i32 = arith.constant 0 : i32
    %c0_i32_0 = arith.constant 0 : i32
    %c0_i32_1 = arith.constant 0 : i32
    return %arg0, %c0_i32, %c0_i32_0 : i32, i32, i32
  }
  func.func @transform_17(%arg0: i32) -> (i32, i32, i32) {
    %c0_i32 = arith.constant 0 : i32
    %c0_i32_0 = arith.constant 0 : i32
    %c0_i32_1 = arith.constant 0 : i32
    return %arg0, %c0_i32, %c0_i32_0 : i32, i32, i32
  }
}

</mosaic_0001>

<llo_original>
// kernel: my_av_subnet_forward.1
$region0: #{my_av_subnet_forward.1}
  #allocation0 [shape = 'u32[]', space=smem, size = 0x4, offset = 0x4, fixed_abs, tag = 'smem constant byte address 0x4 - core index']
  #allocation1 [shape = 'u32[144,128]{1,0:T(1,128)}', space=vmem, size = 0x12000, scoped, tag = 'internal scratch']
  %s0 = inlined_call_operand.vmem [shape: f32[16,24], index: 0, kind: input, shape index: {}]
  %s1 = inlined_call_operand.vmem [shape: bf16[24,32], index: 1, kind: input, shape index: {}]
  %s2 = inlined_call_operand.vmem [shape: f32[1,32], index: 2, kind: input, shape index: {}]
  %s3 = inlined_call_operand.vmem [shape: f32[16,32], index: 3, kind: input, shape index: {}]
  %s4 = inlined_call_operand.vmem [shape: bf16[2,32,96], index: 4, kind: input, shape index: {}]
  %s5 = inlined_call_operand.vmem [shape: f32[2,1,96], index: 5, kind: input, shape index: {}]
  %s6 = inlined_call_operand.vmem [shape: bf16[2,32,32], index: 6, kind: input, shape index: {}]
  %s7 = inlined_call_operand.vmem [shape: f32[2,1,32], index: 7, kind: input, shape index: {}]
  %s8 = inlined_call_operand.vmem [shape: f32[2,1,32], index: 8, kind: input, shape index: {}]
  %s9 = inlined_call_operand.vmem [shape: f32[2,1,32], index: 9, kind: input, shape index: {}]
  %s10 = inlined_call_operand.vmem [shape: bf16[2,32,128], index: 10, kind: input, shape index: {}]
  %s11 = inlined_call_operand.vmem [shape: f32[2,1,128], index: 11, kind: input, shape index: {}]
  %s12 = inlined_call_operand.vmem [shape: bf16[2,128,32], index: 12, kind: input, shape index: {}]
  %s13 = inlined_call_operand.vmem [shape: f32[2,1,32], index: 13, kind: input, shape index: {}]
  %s14 = inlined_call_operand.vmem [shape: f32[2,1,32], index: 14, kind: input, shape index: {}]
  %s15 = inlined_call_operand.vmem [shape: f32[2,1,32], index: 15, kind: input, shape index: {}]
  %s16 = inlined_call_operand.hbm [shape: f32[2,1,32], index: 16, kind: output, shape index: {0}]
  %s17 = inlined_call_operand.hbm [shape: f32[2,8,32], index: 17, kind: output, shape index: {1}]
  %18 = xla_tuple %s16, %s17
  %s19 = sld [smem:[#allocation0]]
  $region105: #{my_av_subnet_forward.1} parent=0
    _
  %s21 = ssub.s32 1, %s19
  %s22 = scalar_select 0, %s21, %s19
  $region1: #{my_av_subnet_forward.1} parent=0
    #allocation2 [shape = 'u8[1024]{0}', space=vmem, size = 0x400, scoped, tag = 'output window, operand 0']
    #allocation3 [shape = 's32[2]{0}', space=sflag, size = 0x8, scoped, tag = 'scoped memory for my_av_subnet_forward.1']
    #allocation4 [shape = 'u8[8192]{0}', space=vmem, size = 0x2000, scoped, tag = 'output window, operand 1']
    #allocation5 [shape = 's32[2]{0}', space=sflag, size = 0x8, scoped, tag = 'scoped memory for my_av_subnet_forward.1']
    %23 = vsyncpa [#allocation3], 0
    %s24 = scalar_lea.sflag [#allocation3], 1
    %25 = vsyncpa %s24, 0
    %26 = vsyncpa [#allocation5], 0
    %s27 = scalar_lea.sflag [#allocation5], 1
    %28 = vsyncpa %s27, 0
    loop: start=0, step=1, limit=4
    $region2: #{my_av_subnet_forward.1} parent=1 // loop_pre_header
      _
    $region3: #{my_av_subnet_forward.1} parent=1 // loop_header
      %s30 = sphi 0, %s34
      %p31 = scmp.ge.s32.totalorder %s30, 4
      %s40 = sphi 0, %s42
      %s43 = sphi 0, %s40
      %s44 = sphi 0, %s43
      %s60 = sphi 0, %s44
      %s64 = sphi 0, %s64
      %s66 = sphi 0, %s64
      %s67 = sphi 0, %s66
      %s81 = sphi 0, %s67
      %s85 = sphi 0, %s85
      %s87 = sphi 0, %s85
      %s88 = sphi 0, %s87
      %s102 = sphi 0, %s88
      %s106 = sphi 0, %s106
      %s108 = sphi 0, %s106
      %s109 = sphi 0, %s108
      %s123 = sphi 0, %s109
      %s127 = sphi 0, %s127
      %s129 = sphi 0, %s127
      %s130 = sphi 0, %s129
      %s144 = sphi 0, %s130
      %s148 = sphi 0, %s148
      %s150 = sphi 0, %s148
      %s151 = sphi 0, %s150
      %s165 = sphi 0, %s151
      %s169 = sphi 0, %s169
      %s171 = sphi 0, %s169
      %s172 = sphi 0, %s171
      %s186 = sphi 0, %s172
      %s190 = sphi 0, %s190
      %s192 = sphi 0, %s190
      %s193 = sphi 0, %s192
      %s207 = sphi 0, %s193
      %s211 = sphi 0, %s211
      %s213 = sphi 0, %s211
      %s214 = sphi 0, %s213
      %s228 = sphi 0, %s214
      %s232 = sphi 0, %s232
      %s234 = sphi 0, %s232
      %s235 = sphi 0, %s234
      %s249 = sphi 0, %s235
      %s253 = sphi 0, %s253
      %s255 = sphi 0, %s253
      %s256 = sphi 0, %s255
      %s270 = sphi 0, %s256
      %s274 = sphi 0, %s274
      %s276 = sphi 0, %s274
      %s277 = sphi 0, %s276
      %s291 = sphi 0, %s277
      %s295 = sphi 0, %s295
      %s297 = sphi 0, %s295
      %s298 = sphi 0, %s297
      %s312 = sphi 0, %s298
      %s316 = sphi 0, %s316
      %s318 = sphi 0, %s316
      %s319 = sphi 0, %s318
      %s333 = sphi 0, %s319
      %s337 = sphi 0, %s337
      %s339 = sphi 0, %s337
      %s340 = sphi 0, %s339
      %s354 = sphi 0, %s340
      %s358 = sphi 0, %s358
      %s360 = sphi 0, %s358
      %s361 = sphi 0, %s360
      %s375 = sphi 0, %s361
      %s381 = sphi 0, %s383
      %s384 = sphi 0, %s381
      %s385 = sphi 0, %s384
      %s401 = sphi 0, %s385
      %s407 = sphi 0, %s409
      %s410 = sphi 0, %s407
      %s411 = sphi 0, %s410
      %s427 = sphi 0, %s411
    $region4: #{my_av_subnet_forward.1} parent=1 // loop_header_branch
      %33 = sbr.rel (%p31) target = $region8
    $region5: #{my_av_subnet_forward.1} parent=1 // loop_body
      %s35 = ssub.s32 %s30, 1
      %s36 = ssub.s32 %s30, 2
      %s37 = sadd.s32 %s30, 1
      %s38 = ssub.s32 %s30, %s37
      %p39 = scmp.eq.s32.totalorder %s38, 0
      %s41 = sadd.s32 %s40, 1
      %s42 = scalar_select %p39, %s40, %s41
      %p45 = pneg %p39
      %p46 = scmp.eq.s32.totalorder %s30, 1
      %p47 = por %p45, %p46
      %p48 = scmp.ne.s32.totalorder %s40, %s43
      %p49 = scmp.eq.s32.totalorder %s30, 0
      %p50 = por %p48, %p49
      %p51 = scmp.ne.s32.totalorder %s40, %s43
      %p52 = scmp.eq.s32.totalorder %s35, 1
      %p53 = por %p51, %p52
      %p54 = scmp.ne.s32.totalorder %s43, %s44
      %p55 = scmp.eq.s32.totalorder %s35, 0
      %p56 = por %p54, %p55
      %p57 = scmp.ne.s32.totalorder %s43, %s44
      %p58 = scmp.eq.s32.totalorder %s36, 1
      %p59 = por %p57, %p58
      %p61 = scmp.ne.s32.totalorder %s44, %s60
      %p62 = scmp.eq.s32.totalorder %s36, 0
      %p63 = por %p61, %p62
      %s65 = sadd.s32 %s64, 1
      %p68 = scmp.eq.s32.totalorder %s30, 1
      %p69 = scmp.ne.s32.totalorder %s64, %s66
      %p70 = scmp.eq.s32.totalorder %s30, 0
      %p71 = por %p69, %p70
      %p72 = scmp.ne.s32.totalorder %s64, %s66
      %p73 = scmp.eq.s32.totalorder %s35, 1
      %p74 = por %p72, %p73
      %p75 = scmp.ne.s32.totalorder %s66, %s67
      %p76 = scmp.eq.s32.totalorder %s35, 0
      %p77 = por %p75, %p76
      %p78 = scmp.ne.s32.totalorder %s66, %s67
      %p79 = scmp.eq.s32.totalorder %s36, 1
      %p80 = por %p78, %p79
      %p82 = scmp.ne.s32.totalorder %s67, %s81
      %p83 = scmp.eq.s32.totalorder %s36, 0
      %p84 = por %p82, %p83
      %s86 = sadd.s32 %s85, 1
      %p89 = scmp.eq.s32.totalorder %s30, 1
      %p90 = scmp.ne.s32.totalorder %s85, %s87
      %p91 = scmp.eq.s32.totalorder %s30, 0
      %p92 = por %p90, %p91
      %p93 = scmp.ne.s32.totalorder %s85, %s87
      %p94 = scmp.eq.s32.totalorder %s35, 1
      %p95 = por %p93, %p94
      %p96 = scmp.ne.s32.totalorder %s87, %s88
      %p97 = scmp.eq.s32.totalorder %s35, 0
      %p98 = por %p96, %p97
      %p99 = scmp.ne.s32.totalorder %s87, %s88
      %p100 = scmp.eq.s32.totalorder %s36, 1
      %p101 = por %p99, %p100
      %p103 = scmp.ne.s32.totalorder %s88, %s102
      %p104 = scmp.eq.s32.totalorder %s36, 0
      %p105 = por %p103, %p104
      %s107 = sadd.s32 %s106, 1
      %p110 = scmp.eq.s32.totalorder %s30, 1
      %p111 = scmp.ne.s32.totalorder %s106, %s108
      %p112 = scmp.eq.s32.totalorder %s30, 0
      %p113 = por %p111, %p112
      %p114 = scmp.ne.s32.totalorder %s106, %s108
      %p115 = scmp.eq.s32.totalorder %s35, 1
      %p116 = por %p114, %p115
      %p117 = scmp.ne.s32.totalorder %s108, %s109
      %p118 = scmp.eq.s32.totalorder %s35, 0
      %p119 = por %p117, %p118
      %p120 = scmp.ne.s32.totalorder %s108, %s109
      %p121 = scmp.eq.s32.totalorder %s36, 1
      %p122 = por %p120, %p121
      %p124 = scmp.ne.s32.totalorder %s109, %s123
      %p125 = scmp.eq.s32.totalorder %s36, 0
      %p126 = por %p124, %p125
      %s128 = sadd.s32 %s127, 1
      %p131 = scmp.eq.s32.totalorder %s30, 1
      %p132 = scmp.ne.s32.totalorder %s127, %s129
      %p133 = scmp.eq.s32.totalorder %s30, 0
      %p134 = por %p132, %p133
      %p135 = scmp.ne.s32.totalorder %s127, %s129
      %p136 = scmp.eq.s32.totalorder %s35, 1
      %p137 = por %p135, %p136
      %p138 = scmp.ne.s32.totalorder %s129, %s130
      %p139 = scmp.eq.s32.totalorder %s35, 0
      %p140 = por %p138, %p139
      %p141 = scmp.ne.s32.totalorder %s129, %s130
      %p142 = scmp.eq.s32.totalorder %s36, 1
      %p143 = por %p141, %p142
      %p145 = scmp.ne.s32.totalorder %s130, %s144
      %p146 = scmp.eq.s32.totalorder %s36, 0
      %p147 = por %p145, %p146
      %s149 = sadd.s32 %s148, 1
      %p152 = scmp.eq.s32.totalorder %s30, 1
      %p153 = scmp.ne.s32.totalorder %s148, %s150
      %p154 = scmp.eq.s32.totalorder %s30, 0
      %p155 = por %p153, %p154
      %p156 = scmp.ne.s32.totalorder %s148, %s150
      %p157 = scmp.eq.s32.totalorder %s35, 1
      %p158 = por %p156, %p157
      %p159 = scmp.ne.s32.totalorder %s150, %s151
      %p160 = scmp.eq.s32.totalorder %s35, 0
      %p161 = por %p159, %p160
      %p162 = scmp.ne.s32.totalorder %s150, %s151
      %p163 = scmp.eq.s32.totalorder %s36, 1
      %p164 = por %p162, %p163
      %p166 = scmp.ne.s32.totalorder %s151, %s165
      %p167 = scmp.eq.s32.totalorder %s36, 0
      %p168 = por %p166, %p167
      %s170 = sadd.s32 %s169, 1
      %p173 = scmp.eq.s32.totalorder %s30, 1
      %p174 = scmp.ne.s32.totalorder %s169, %s171
      %p175 = scmp.eq.s32.totalorder %s30, 0
      %p176 = por %p174, %p175
      %p177 = scmp.ne.s32.totalorder %s169, %s171
      %p178 = scmp.eq.s32.totalorder %s35, 1
      %p179 = por %p177, %p178
      %p180 = scmp.ne.s32.totalorder %s171, %s172
      %p181 = scmp.eq.s32.totalorder %s35, 0
      %p182 = por %p180, %p181
      %p183 = scmp.ne.s32.totalorder %s171, %s172
      %p184 = scmp.eq.s32.totalorder %s36, 1
      %p185 = por %p183, %p184
      %p187 = scmp.ne.s32.totalorder %s172, %s186
      %p188 = scmp.eq.s32.totalorder %s36, 0
      %p189 = por %p187, %p188
      %s191 = sadd.s32 %s190, 1
      %p194 = scmp.eq.s32.totalorder %s30, 1
      %p195 = scmp.ne.s32.totalorder %s190, %s192
      %p196 = scmp.eq.s32.totalorder %s30, 0
      %p197 = por %p195, %p196
      %p198 = scmp.ne.s32.totalorder %s190, %s192
      %p199 = scmp.eq.s32.totalorder %s35, 1
      %p200 = por %p198, %p199
      %p201 = scmp.ne.s32.totalorder %s192, %s193
      %p202 = scmp.eq.s32.totalorder %s35, 0
      %p203 = por %p201, %p202
      %p204 = scmp.ne.s32.totalorder %s192, %s193
      %p205 = scmp.eq.s32.totalorder %s36, 1
      %p206 = por %p204, %p205
      %p208 = scmp.ne.s32.totalorder %s193, %s207
      %p209 = scmp.eq.s32.totalorder %s36, 0
      %p210 = por %p208, %p209
      %s212 = sadd.s32 %s211, 1
      %p215 = scmp.eq.s32.totalorder %s30, 1
      %p216 = scmp.ne.s32.totalorder %s211, %s213
      %p217 = scmp.eq.s32.totalorder %s30, 0
      %p218 = por %p216, %p217
      %p219 = scmp.ne.s32.totalorder %s211, %s213
      %p220 = scmp.eq.s32.totalorder %s35, 1
      %p221 = por %p219, %p220
      %p222 = scmp.ne.s32.totalorder %s213, %s214
      %p223 = scmp.eq.s32.totalorder %s35, 0
      %p224 = por %p222, %p223
      %p225 = scmp.ne.s32.totalorder %s213, %s214
      %p226 = scmp.eq.s32.totalorder %s36, 1
      %p227 = por %p225, %p226
      %p229 = scmp.ne.s32.totalorder %s214, %s228
      %p230 = scmp.eq.s32.totalorder %s36, 0
      %p231 = por %p229, %p230
      %s233 = sadd.s32 %s232, 1
      %p236 = scmp.eq.s32.totalorder %s30, 1
      %p237 = scmp.ne.s32.totalorder %s232, %s234
      %p238 = scmp.eq.s32.totalorder %s30, 0
      %p239 = por %p237, %p238
      %p240 = scmp.ne.s32.totalorder %s232, %s234
      %p241 = scmp.eq.s32.totalorder %s35, 1
      %p242 = por %p240, %p241
      %p243 = scmp.ne.s32.totalorder %s234, %s235
      %p244 = scmp.eq.s32.totalorder %s35, 0
      %p245 = por %p243, %p244
      %p246 = scmp.ne.s32.totalorder %s234, %s235
      %p247 = scmp.eq.s32.totalorder %s36, 1
      %p248 = por %p246, %p247
      %p250 = scmp.ne.s32.totalorder %s235, %s249
      %p251 = scmp.eq.s32.totalorder %s36, 0
      %p252 = por %p250, %p251
      %s254 = sadd.s32 %s253, 1
      %p257 = scmp.eq.s32.totalorder %s30, 1
      %p258 = scmp.ne.s32.totalorder %s253, %s255
      %p259 = scmp.eq.s32.totalorder %s30, 0
      %p260 = por %p258, %p259
      %p261 = scmp.ne.s32.totalorder %s253, %s255
      %p262 = scmp.eq.s32.totalorder %s35, 1
      %p263 = por %p261, %p262
      %p264 = scmp.ne.s32.totalorder %s255, %s256
      %p265 = scmp.eq.s32.totalorder %s35, 0
      %p266 = por %p264, %p265
      %p267 = scmp.ne.s32.totalorder %s255, %s256
      %p268 = scmp.eq.s32.totalorder %s36, 1
      %p269 = por %p267, %p268
      %p271 = scmp.ne.s32.totalorder %s256, %s270
      %p272 = scmp.eq.s32.totalorder %s36, 0
      %p273 = por %p271, %p272
      %s275 = sadd.s32 %s274, 1
      %p278 = scmp.eq.s32.totalorder %s30, 1
      %p279 = scmp.ne.s32.totalorder %s274, %s276
      %p280 = scmp.eq.s32.totalorder %s30, 0
      %p281 = por %p279, %p280
      %p282 = scmp.ne.s32.totalorder %s274, %s276
      %p283 = scmp.eq.s32.totalorder %s35, 1
      %p284 = por %p282, %p283
      %p285 = scmp.ne.s32.totalorder %s276, %s277
      %p286 = scmp.eq.s32.totalorder %s35, 0
      %p287 = por %p285, %p286
      %p288 = scmp.ne.s32.totalorder %s276, %s277
      %p289 = scmp.eq.s32.totalorder %s36, 1
      %p290 = por %p288, %p289
      %p292 = scmp.ne.s32.totalorder %s277, %s291
      %p293 = scmp.eq.s32.totalorder %s36, 0
      %p294 = por %p292, %p293
      %s296 = sadd.s32 %s295, 1
      %p299 = scmp.eq.s32.totalorder %s30, 1
      %p300 = scmp.ne.s32.totalorder %s295, %s297
      %p301 = scmp.eq.s32.totalorder %s30, 0
      %p302 = por %p300, %p301
      %p303 = scmp.ne.s32.totalorder %s295, %s297
      %p304 = scmp.eq.s32.totalorder %s35, 1
      %p305 = por %p303, %p304
      %p306 = scmp.ne.s32.totalorder %s297, %s298
      %p307 = scmp.eq.s32.totalorder %s35, 0
      %p308 = por %p306, %p307
      %p309 = scmp.ne.s32.totalorder %s297, %s298
      %p310 = scmp.eq.s32.totalorder %s36, 1
      %p311 = por %p309, %p310
      %p313 = scmp.ne.s32.totalorder %s298, %s312
      %p314 = scmp.eq.s32.totalorder %s36, 0
      %p315 = por %p313, %p314
      %s317 = sadd.s32 %s316, 1
      %p320 = scmp.eq.s32.totalorder %s30, 1
      %p321 = scmp.ne.s32.totalorder %s316, %s318
      %p322 = scmp.eq.s32.totalorder %s30, 0
      %p323 = por %p321, %p322
      %p324 = scmp.ne.s32.totalorder %s316, %s318
      %p325 = scmp.eq.s32.totalorder %s35, 1
      %p326 = por %p324, %p325
      %p327 = scmp.ne.s32.totalorder %s318, %s319
      %p328 = scmp.eq.s32.totalorder %s35, 0
      %p329 = por %p327, %p328
      %p330 = scmp.ne.s32.totalorder %s318, %s319
      %p331 = scmp.eq.s32.totalorder %s36, 1
      %p332 = por %p330, %p331
      %p334 = scmp.ne.s32.totalorder %s319, %s333
      %p335 = scmp.eq.s32.totalorder %s36, 0
      %p336 = por %p334, %p335
      %s338 = sadd.s32 %s337, 1
      %p341 = scmp.eq.s32.totalorder %s30, 1
      %p342 = scmp.ne.s32.totalorder %s337, %s339
      %p343 = scmp.eq.s32.totalorder %s30, 0
      %p344 = por %p342, %p343
      %p345 = scmp.ne.s32.totalorder %s337, %s339
      %p346 = scmp.eq.s32.totalorder %s35, 1
      %p347 = por %p345, %p346
      %p348 = scmp.ne.s32.totalorder %s339, %s340
      %p349 = scmp.eq.s32.totalorder %s35, 0
      %p350 = por %p348, %p349
      %p351 = scmp.ne.s32.totalorder %s339, %s340
      %p352 = scmp.eq.s32.totalorder %s36, 1
      %p353 = por %p351, %p352
      %p355 = scmp.ne.s32.totalorder %s340, %s354
      %p356 = scmp.eq.s32.totalorder %s36, 0
      %p357 = por %p355, %p356
      %s359 = sadd.s32 %s358, 1
      %p362 = scmp.eq.s32.totalorder %s30, 1
      %p363 = scmp.ne.s32.totalorder %s358, %s360
      %p364 = scmp.eq.s32.totalorder %s30, 0
      %p365 = por %p363, %p364
      %p366 = scmp.ne.s32.totalorder %s358, %s360
      %p367 = scmp.eq.s32.totalorder %s35, 1
      %p368 = por %p366, %p367
      %p369 = scmp.ne.s32.totalorder %s360, %s361
      %p370 = scmp.eq.s32.totalorder %s35, 0
      %p371 = por %p369, %p370
      %p372 = scmp.ne.s32.totalorder %s360, %s361
      %p373 = scmp.eq.s32.totalorder %s36, 1
      %p374 = por %p372, %p373
      %p376 = scmp.ne.s32.totalorder %s361, %s375
      %p377 = scmp.eq.s32.totalorder %s36, 0
      %p378 = por %p376, %p377
      %s379 = ssub.s32 %s30, %s37
      %p380 = scmp.eq.s32.totalorder %s379, 0
      %s382 = sadd.s32 %s381, 1
      %s383 = scalar_select %p380, %s381, %s382
      %p386 = pneg %p380
      %p387 = scmp.eq.s32.totalorder %s30, 1
      %p388 = por %p386, %p387
      %p389 = scmp.ne.s32.totalorder %s381, %s384
      %p390 = scmp.eq.s32.totalorder %s30, 0
      %p391 = por %p389, %p390
      %p392 = scmp.ne.s32.totalorder %s381, %s384
      %p393 = scmp.eq.s32.totalorder %s35, 1
      %p394 = por %p392, %p393
      %p395 = scmp.ne.s32.totalorder %s384, %s385
      %p396 = scmp.eq.s32.totalorder %s35, 0
      %p397 = por %p395, %p396
      %p398 = scmp.ne.s32.totalorder %s384, %s385
      %p399 = scmp.eq.s32.totalorder %s36, 1
      %p400 = por %p398, %p399
      %p402 = scmp.ne.s32.totalorder %s385, %s401
      %p403 = scmp.eq.s32.totalorder %s36, 0
      %p404 = por %p402, %p403
      %s405 = ssub.s32 %s30, %s37
      %p406 = scmp.eq.s32.totalorder %s405, 0
      %s408 = sadd.s32 %s407, 1
      %s409 = scalar_select %p406, %s407, %s408
      %p412 = pneg %p406
      %p413 = scmp.eq.s32.totalorder %s30, 1
      %p414 = por %p412, %p413
      %p415 = scmp.ne.s32.totalorder %s407, %s410
      %p416 = scmp.eq.s32.totalorder %s30, 0
      %p417 = por %p415, %p416
      %p418 = scmp.ne.s32.totalorder %s407, %s410
      %p419 = scmp.eq.s32.totalorder %s35, 1
      %p420 = por %p418, %p419
      %p421 = scmp.ne.s32.totalorder %s410, %s411
      %p422 = scmp.eq.s32.totalorder %s35, 0
      %p423 = por %p421, %p422
      %p424 = scmp.ne.s32.totalorder %s410, %s411
      %p425 = scmp.eq.s32.totalorder %s36, 1
      %p426 = por %p424, %p425
      %p428 = scmp.ne.s32.totalorder %s411, %s427
      %p429 = scmp.eq.s32.totalorder %s36, 0
      %p430 = por %p428, %p429
      %p431 = scmp.le.s32.totalorder 1, %s30
      %p432 = scmp.lt.s32.totalorder %s30, 3
      %p433 = pnand %p431, %p432
      %p434 = pneg %p433
      // Predicated region
      $region9: #{my_av_subnet_forward.1} parent=5 // pred_check
        _
      $region10: #{my_av_subnet_forward.1} parent=5 // pred_check_branch
        %436 = sbr.rel (%p433) target = $region12
      $region11: #{my_av_subnet_forward.1} parent=5 // pred_region
        %s437 = ssub.s32 %s30, 1
        // Predicated region
        $region13: #{my_av_subnet_forward.1} parent=11 // pred_check
          %p438 = pneg %p77
        $region14: #{my_av_subnet_forward.1} parent=11 // pred_check_branch
          %440 = sbr.rel (%p438) target = $region16
        $region15: #{my_av_subnet_forward.1} parent=11 // pred_region
          _
        $region16: #{my_av_subnet_forward.1} parent=11 // pred_fallthru
          _
        // Predicated region
        $region17: #{my_av_subnet_forward.1} parent=11 // pred_check
          %p441 = pneg %p98
        $region18: #{my_av_subnet_forward.1} parent=11 // pred_check_branch
          %443 = sbr.rel (%p441) target = $region20
        $region19: #{my_av_subnet_forward.1} parent=11 // pred_region
          _
        $region20: #{my_av_subnet_forward.1} parent=11 // pred_fallthru
          _
        // Predicated region
        $region21: #{my_av_subnet_forward.1} parent=11 // pred_check
          %p444 = pneg %p119
        $region22: #{my_av_subnet_forward.1} parent=11 // pred_check_branch
          %446 = sbr.rel (%p444) target = $region24
        $region23: #{my_av_subnet_forward.1} parent=11 // pred_region
          _
        $region24: #{my_av_subnet_forward.1} parent=11 // pred_fallthru
          _
        // Predicated region
        $region25: #{my_av_subnet_forward.1} parent=11 // pred_check
          %p447 = pneg %p140
        $region26: #{my_av_subnet_forward.1} parent=11 // pred_check_branch
          %449 = sbr.rel (%p447) target = $region28
        $region27: #{my_av_subnet_forward.1} parent=11 // pred_region
          _
        $region28: #{my_av_subnet_forward.1} parent=11 // pred_fallthru
          _
        // Predicated region
        $region29: #{my_av_subnet_forward.1} parent=11 // pred_check
          %p450 = pneg %p161
        $region30: #{my_av_subnet_forward.1} parent=11 // pred_check_branch
          %452 = sbr.rel (%p450) target = $region32
        $region31: #{my_av_subnet_forward.1} parent=11 // pred_region
          _
        $region32: #{my_av_subnet_forward.1} parent=11 // pred_fallthru
          _
        // Predicated region
        $region33: #{my_av_subnet_forward.1} parent=11 // pred_check
          %p453 = pneg %p182
        $region34: #{my_av_subnet_forward.1} parent=11 // pred_check_branch
          %455 = sbr.rel (%p453) target = $region36
        $region35: #{my_av_subnet_forward.1} parent=11 // pred_region
          _
        $region36: #{my_av_subnet_forward.1} parent=11 // pred_fallthru
          _
        // Predicated region
        $region37: #{my_av_subnet_forward.1} parent=11 // pred_check
          %p456 = pneg %p203
        $region38: #{my_av_subnet_forward.1} parent=11 // pred_check_branch
          %458 = sbr.rel (%p456) target = $region40
        $region39: #{my_av_subnet_forward.1} parent=11 // pred_region
          _
        $region40: #{my_av_subnet_forward.1} parent=11 // pred_fallthru
          _
        // Predicated region
        $region41: #{my_av_subnet_forward.1} parent=11 // pred_check
          %p459 = pneg %p224
        $region42: #{my_av_subnet_forward.1} parent=11 // pred_check_branch
          %461 = sbr.rel (%p459) target = $region44
        $region43: #{my_av_subnet_forward.1} parent=11 // pred_region
          _
        $region44: #{my_av_subnet_forward.1} parent=11 // pred_fallthru
          _
        // Predicated region
        $region45: #{my_av_subnet_forward.1} parent=11 // pred_check
          %p462 = pneg %p245
        $region46: #{my_av_subnet_forward.1} parent=11 // pred_check_branch
          %464 = sbr.rel (%p462) target = $region48
        $region47: #{my_av_subnet_forward.1} parent=11 // pred_region
          _
        $region48: #{my_av_subnet_forward.1} parent=11 // pred_fallthru
          _
        // Predicated region
        $region49: #{my_av_subnet_forward.1} parent=11 // pred_check
          %p465 = pneg %p266
        $region50: #{my_av_subnet_forward.1} parent=11 // pred_check_branch
          %467 = sbr.rel (%p465) target = $region52
        $region51: #{my_av_subnet_forward.1} parent=11 // pred_region
          _
        $region52: #{my_av_subnet_forward.1} parent=11 // pred_fallthru
          _
        // Predicated region
        $region53: #{my_av_subnet_forward.1} parent=11 // pred_check
          %p468 = pneg %p287
        $region54: #{my_av_subnet_forward.1} parent=11 // pred_check_branch
          %470 = sbr.rel (%p468) target = $region56
        $region55: #{my_av_subnet_forward.1} parent=11 // pred_region
          _
        $region56: #{my_av_subnet_forward.1} parent=11 // pred_fallthru
          _
        // Predicated region
        $region57: #{my_av_subnet_forward.1} parent=11 // pred_check
          %p471 = pneg %p308
        $region58: #{my_av_subnet_forward.1} parent=11 // pred_check_branch
          %473 = sbr.rel (%p471) target = $region60
        $region59: #{my_av_subnet_forward.1} parent=11 // pred_region
          _
        $region60: #{my_av_subnet_forward.1} parent=11 // pred_fallthru
          _
        // Predicated region
        $region61: #{my_av_subnet_forward.1} parent=11 // pred_check
          %p474 = pneg %p329
        $region62: #{my_av_subnet_forward.1} parent=11 // pred_check_branch
          %476 = sbr.rel (%p474) target = $region64
        $region63: #{my_av_subnet_forward.1} parent=11 // pred_region
          _
        $region64: #{my_av_subnet_forward.1} parent=11 // pred_fallthru
          _
        // Predicated region
        $region65: #{my_av_subnet_forward.1} parent=11 // pred_check
          %p477 = pneg %p350
        $region66: #{my_av_subnet_forward.1} parent=11 // pred_check_branch
          %479 = sbr.rel (%p477) target = $region68
        $region67: #{my_av_subnet_forward.1} parent=11 // pred_region
          _
        $region68: #{my_av_subnet_forward.1} parent=11 // pred_fallthru
          _
        // Predicated region
        $region69: #{my_av_subnet_forward.1} parent=11 // pred_check
          %p480 = pneg %p371
        $region70: #{my_av_subnet_forward.1} parent=11 // pred_check_branch
          %482 = sbr.rel (%p480) target = $region72
        $region71: #{my_av_subnet_forward.1} parent=11 // pred_region
          _
        $region72: #{my_av_subnet_forward.1} parent=11 // pred_fallthru
          _
      $region12: #{my_av_subnet_forward.1} parent=5 // pred_fallthru
        _
      %p483 = scmp.lt.s32.totalorder %s30, 2
      // Predicated region
      $region73: #{my_av_subnet_forward.1} parent=5 // pred_check
        %p484 = pneg %p483
      $region74: #{my_av_subnet_forward.1} parent=5 // pred_check_branch
        %486 = sbr.rel (%p484) target = $region76
      $region75: #{my_av_subnet_forward.1} parent=5 // pred_region
        // Predicated region
        $region77: #{my_av_subnet_forward.1} parent=75 // pred_check
          %p487 = pneg %p50
        $region78: #{my_av_subnet_forward.1} parent=75 // pred_check_branch
          %489 = sbr.rel (%p487) target = $region80
        $region79: #{my_av_subnet_forward.1} parent=75 // pred_region
          %p490 = scmp.lt.s32.totalorder %s30, 1
          %s491 = scalar_select %p490, %s30, 1
          %s492 = smul.addr %s491, 8
          %s493 = scalar_lea.vmem %s0, %s492
        $region80: #{my_av_subnet_forward.1} parent=75 // pred_fallthru
          _
      $region76: #{my_av_subnet_forward.1} parent=5 // pred_fallthru
        _
      %p494 = scmp.le.s32.totalorder 1, %s30
      %p495 = scmp.lt.s32.totalorder %s30, 3
      %p496 = pnand %p494, %p495
      %p497 = pneg %p496
      // Predicated region
      $region81: #{my_av_subnet_forward.1} parent=5 // pred_check
        _
      $region82: #{my_av_subnet_forward.1} parent=5 // pred_check_branch
        %499 = sbr.rel (%p496) target = $region84
      $region83: #{my_av_subnet_forward.1} parent=5 // pred_region
        %s500 = ssub.s32 %s30, 1
        %p501 = scmp.lt.s32.totalorder %s35, 1
        %s502 = scalar_select %p501, %s35, 1
        %s503 = smul.addr %s502, 8
        %s504 = scalar_lea.vmem %s0, %s503
        %p505 = pneg %p56
        %p506 = pneg %p53
        %p507 = pneg %p77
        %p508 = pneg %p74
        %p509 = pneg %p98
        %p510 = pneg %p95
        %p511 = pneg %p119
        %p512 = pneg %p116
        %p513 = pneg %p140
        %p514 = pneg %p137
        %p515 = pneg %p161
        %p516 = pneg %p158
        %p517 = pneg %p182
        %p518 = pneg %p179
        %p519 = pneg %p203
        %p520 = pneg %p200
        %p521 = pneg %p224
        %p522 = pneg %p221
        %p523 = pneg %p245
        %p524 = pneg %p242
        %p525 = pneg %p266
        %p526 = pneg %p263
        %p527 = pneg %p287
        %p528 = pneg %p284
        %p529 = pneg %p308
        %p530 = pneg %p305
        %p531 = pneg %p329
        %p532 = pneg %p326
        %p533 = pneg %p350
        %p534 = pneg %p347
        %p535 = pneg %p371
        %p536 = pneg %p368
        %p537 = pneg %p397
        %p538 = pneg %p394
        %s539 = sand.u32 %s384, 1
        %s540 = scalar_lea.sflag [#allocation3], %s539
        %s541 = sand.u32 %s384, 1
        %s542 = scalar_lea.vmem [#allocation2], %s541
        %p543 = pneg %p423
        %p544 = pneg %p420
        %s545 = sand.u32 %s410, 1
        %s546 = scalar_lea.sflag [#allocation5], %s545
        %s547 = sand.u32 %s410, 1
        %s548 = smul.addr %s547, 8
        %s549 = scalar_lea.vmem [#allocation4], %s548
        %p550 = scmp.lt.s32.totalorder %s35, 1
        %s551 = scalar_select %p550, %s35, 1
        %s552 = smul.addr %s551, 8
        %s553 = scalar_lea.vmem %s0, %s552
        %v555 = vld [vmem:[%s553] sm:$0xff]
        %v556 = vpack.c.bf16 %v555, %v555
        %v557 = vld [vmem:[%s1] sm:$0xf]
        %v558 = vld [vmem:[%s1 + $0x4] sm:$0xf]
        %v559 = vld [vmem:[%s1 + $0x8] sm:$0xf]
        %v560 = vld [vmem:[%s2] sm:$0x1]
        %v562 = vlaneseq
        %v563 = vshrl.u32 %v562, 7
        %v564 = vsub.s32 0, %v563
        %v565 = vrot.slane %v560, %v564
        %v570 = vunpack.c.l.b16 %v557
        %v571 = vunpack.c.l.b16 %v558
        %v572 = vunpack.c.l.b16 %v559
        %v573 = vpack.c.b16 %v571, %v570
        %v574 = vpack.c.b16 %v572, %v572
        %vm576 = vcmask 195584
        %v578 = vsel %vm576, %v556, 0
        %vm580 = vcmask 1043456
        %v582 = vsel %vm580, %v574, 0
        %584 = vmatprep.subr.bf16.mxu0 0
        %585 = vmatpush1.bf16.msra.mxu0 0
        %586 = vmatprep.subr.bf16.mxu0 0
        %587 = vmatpush1.bf16.msra.mxu0 0
        %588 = vmatprep.subr.bf16.mxu0 0
        %589 = vmatpush1.bf16.msra.mxu0 0
        %590 = vmatprep.subr.bf16.mxu0 0
        %591 = vmatpush1.bf16.msra.mxu0 0
        %592 = vmatprep.subr.bf16.mxu0 0
        %593 = vmatpush1.bf16.msra.mxu0 0
        %594 = vmatprep.subr.bf16.mxu0 0
        %595 = vmatpush1.bf16.msra.mxu0 0
        %596 = vmatprep.subr.bf16.mxu0 0
        %597 = vmatpush1.bf16.msra.mxu0 %v582
        %598 = vmatprep.subr.bf16.mxu0 0
        %599 = vmatpush1.bf16.msra.mxu0 %v573
        %600 = vmatprep.subr.bf16.mxu0 0
        %601 = vmatpush2.bf16.msra.mxu0 0
        %602 = vmatprep.subr.bf16.mxu0 0
        %603 = vmatpush2.bf16.msra.mxu0 0
        %604 = vmatprep.subr.bf16.mxu0 0
        %605 = vmatpush2.bf16.msra.mxu0 0
        %606 = vmatprep.subr.bf16.mxu0 0
        %607 = vmatpush2.bf16.msra.mxu0 0
        %608 = vmatprep.subr.bf16.mxu0 0
        %609 = vmatpush2.bf16.msra.mxu0 0
        %610 = vmatprep.subr.bf16.mxu0 0
        %611 = vmatpush2.bf16.msra.mxu0 0
        %612 = vmatprep.subr.bf16.mxu0 0
        %613 = vmatpush2.bf16.msra.mxu0 0
        %614 = vmatprep.subr.bf16.mxu0 0
        %615 = vmatpush2.bf16.msra.mxu0 0
        %616 = vmatprep.mubr.bf16.mxu0 0
        %617 = vmatmul.mubr.bf16.gmra.mxu0 %v578
        %v618 = vpop.f32.mrf.mxu0
        %v619 = vadd.f32 %v565, %v618
        %v620 = vpop.f32.mrf.mxu0
        %v621 = vpop.f32.mrf.mxu0
        %v622 = vpop.f32.mrf.mxu0
        %623 = vdwg.mxu0
        %v624 = vld [vmem:[%s3] sm:$0xff]
        %v625 = vld [vmem:[%s3 + $0x8] sm:$0xff]
        %v626 = vadd.f32 %v624, %v619
        %v627 = vadd.f32 %v625, 0.0
        %v628 = vlaneseq
        %v629 = vand.u32 %v628, 127
        %vm630 = vcmp.lt.s32.totalorder %v629, 9
        %v631 = vsel %vm630, 0.0, -1e+30
        %v632 = vld [vmem:[%s4] sm:$0xf]
        %v633 = vld [vmem:[%s4 + $0x4] sm:$0xf]
        %v634 = vld [vmem:[%s4 + $0x8] sm:$0xf]
        %v635 = vld [vmem:[%s4 + $0xc] sm:$0xf]
        %v636 = vld [vmem:[%s5] sm:$0x1]
        %v637 = vld [vmem:[%s6] sm:$0xf]
        %v638 = vld [vmem:[%s6 + $0x4] sm:$0xf]
        %v639 = vld [vmem:[%s6 + $0x8] sm:$0xf]
        %v640 = vld [vmem:[%s6 + $0xc] sm:$0xf]
        %v641 = vld [vmem:[%s7] sm:$0x1]
        %v642 = vld [vmem:[%s8] sm:$0x1]
        %v643 = vld [vmem:[%s9] sm:$0x1]
        %v644 = vld [vmem:[%s10] sm:$0xf]
        %v645 = vld [vmem:[%s10 + $0x4] sm:$0xf]
        %v646 = vld [vmem:[%s10 + $0x8] sm:$0xf]
        %v647 = vld [vmem:[%s10 + $0xc] sm:$0xf]
        %v648 = vld [vmem:[%s11] sm:$0x1]
        %v649 = vld [vmem:[%s12] sm:$0xf]
        %v650 = vld [vmem:[%s12 + $0x4] sm:$0xf]
        %v651 = vld [vmem:[%s12 + $0x8] sm:$0xf]
        %v652 = vld [vmem:[%s12 + $0xc] sm:$0xf]
        %v653 = vld [vmem:[%s12 + $0x10] sm:$0xf]
        %v654 = vld [vmem:[%s12 + $0x14] sm:$0xf]
        %v655 = vld [vmem:[%s12 + $0x18] sm:$0xf]
        %v656 = vld [vmem:[%s12 + $0x1c] sm:$0xf]
        %v657 = vld [vmem:[%s12 + $0x20] sm:$0xf]
        %v658 = vld [vmem:[%s12 + $0x24] sm:$0xf]
        %v659 = vld [vmem:[%s12 + $0x28] sm:$0xf]
        %v660 = vld [vmem:[%s12 + $0x2c] sm:$0xf]
        %v661 = vld [vmem:[%s12 + $0x30] sm:$0xf]
        %v662 = vld [vmem:[%s12 + $0x34] sm:$0xf]
        %v663 = vld [vmem:[%s12 + $0x38] sm:$0xf]
        %v664 = vld [vmem:[%s12 + $0x3c] sm:$0xf]
        %v665 = vld [vmem:[%s13] sm:$0x1]
        %v666 = vld [vmem:[%s14] sm:$0x1]
        %v667 = vld [vmem:[%s15] sm:$0x1]
        %v668 = vpack.c.bf16 %v627, %v626
        %v670 = vlaneseq
        %v671 = vshrl.u32 %v670, 7
        %v672 = vsub.s32 0, %v671
        %v673 = vrot.slane %v636, %v672
        %v679 = vunpack.c.l.b16 %v632
        %v680 = vunpack.c.l.b16 %v633
        %v681 = vunpack.c.l.b16 %v634
        %v682 = vunpack.c.l.b16 %v635
        %v683 = vpack.c.b16 %v680, %v679
        %v684 = vpack.c.b16 %v682, %v681
        %vm687 = vcmask 261120
        %v689 = vsel %vm687, %v668, 0
        %691 = vmatprep.subr.bf16.mxu0 0
        %692 = vmatpush1.bf16.msra.mxu0 0
        %693 = vmatprep.subr.bf16.mxu0 0
        %694 = vmatpush1.bf16.msra.mxu0 0
        %695 = vmatprep.subr.bf16.mxu0 0
        %696 = vmatpush1.bf16.msra.mxu0 0
        %697 = vmatprep.subr.bf16.mxu0 0
        %698 = vmatpush1.bf16.msra.mxu0 0
        %699 = vmatprep.subr.bf16.mxu0 0
        %700 = vmatpush1.bf16.msra.mxu0 0
        %701 = vmatprep.subr.bf16.mxu0 0
        %702 = vmatpush1.bf16.msra.mxu0 0
        %703 = vmatprep.subr.bf16.mxu0 0
        %704 = vmatpush1.bf16.msra.mxu0 %v684
        %705 = vmatprep.subr.bf16.mxu0 0
        %706 = vmatpush1.bf16.msra.mxu0 %v683
        %707 = vmatprep.subr.bf16.mxu0 0
        %708 = vmatpush2.bf16.msra.mxu0 0
        %709 = vmatprep.subr.bf16.mxu0 0
        %710 = vmatpush2.bf16.msra.mxu0 0
        %711 = vmatprep.subr.bf16.mxu0 0
        %712 = vmatpush2.bf16.msra.mxu0 0
        %713 = vmatprep.subr.bf16.mxu0 0
        %714 = vmatpush2.bf16.msra.mxu0 0
        %715 = vmatprep.subr.bf16.mxu0 0
        %716 = vmatpush2.bf16.msra.mxu0 0
        %717 = vmatprep.subr.bf16.mxu0 0
        %718 = vmatpush2.bf16.msra.mxu0 0
        %719 = vmatprep.subr.bf16.mxu0 0
        %720 = vmatpush2.bf16.msra.mxu0 0
        %721 = vmatprep.subr.bf16.mxu0 0
        %722 = vmatpush2.bf16.msra.mxu0 0
        %723 = vmatprep.mubr.bf16.mxu0 0
        %724 = vmatmul.mubr.bf16.gmra.mxu0 %v689
        %v725 = vpop.f32.mrf.mxu0
        %v726 = vadd.f32 %v673, %v725
        %v727 = vpop.f32.mrf.mxu0
        %v728 = vpop.f32.mrf.mxu0
        %v729 = vadd.f32 %v673, %v728
        %v730 = vpop.f32.mrf.mxu0
        %731 = vdwg.mxu0
        %v732 = vpack.c.bf16 %v729, %v726
        %734 = vrot.lane.b32.xlu0 %v732, 96
        %v735 = vpop.permute.xlu0 %734
        %vm736 = vcmask 64512
        %v738 = vsel %vm736, %v732, 0
        %v741 = vsel %vm736, %v735, 0
        %743 = vmatprep.subr.bf16.mxu0 0
        %744 = vmatpush1.bf16.xpose.msra.mxu0 0
        %745 = vmatprep.subr.bf16.mxu0 0
        %746 = vmatpush1.bf16.xpose.msra.mxu0 0
        %747 = vmatprep.subr.bf16.mxu0 0
        %748 = vmatpush1.bf16.xpose.msra.mxu0 0
        %749 = vmatprep.subr.bf16.mxu0 0
        %750 = vmatpush1.bf16.xpose.msra.mxu0 0
        %751 = vmatprep.subr.bf16.mxu0 0
        %752 = vmatpush1.bf16.xpose.msra.mxu0 0
        %753 = vmatprep.subr.bf16.mxu0 0
        %754 = vmatpush1.bf16.xpose.msra.mxu0 0
        %755 = vmatprep.subr.bf16.mxu0 0
        %756 = vmatpush1.bf16.xpose.msra.mxu0 0
        %757 = vmatprep.subr.bf16.mxu0 0
        %758 = vmatpush1.bf16.xpose.msra.mxu0 %v741
        %759 = vmatprep.subr.bf16.mxu0 0
        %760 = vmatpush2.bf16.xpose.msra.mxu0 0
        %761 = vmatprep.subr.bf16.mxu0 0
        %762 = vmatpush2.bf16.xpose.msra.mxu0 0
        %763 = vmatprep.subr.bf16.mxu0 0
        %764 = vmatpush2.bf16.xpose.msra.mxu0 0
        %765 = vmatprep.subr.bf16.mxu0 0
        %766 = vmatpush2.bf16.xpose.msra.mxu0 0
        %767 = vmatprep.subr.bf16.mxu0 0
        %768 = vmatpush2.bf16.xpose.msra.mxu0 0
        %769 = vmatprep.subr.bf16.mxu0 0
        %770 = vmatpush2.bf16.xpose.msra.mxu0 0
        %771 = vmatprep.subr.bf16.mxu0 0
        %772 = vmatpush2.bf16.xpose.msra.mxu0 0
        %773 = vmatprep.subr.bf16.mxu0 0
        %774 = vmatpush2.bf16.xpose.msra.mxu0 0
        %775 = vmatprep.mubr.bf16.mxu0 0
        %776 = vmatmul.mubr.bf16.gmra.mxu0 %v738
        %v777 = vpop.f32.mrf.mxu0
        %v778 = vadd.f32 %v631, %v777
        %v779 = vpop.f32.mrf.mxu0
        %v780 = vpop.f32.mrf.mxu0
        %v781 = vadd.f32 %v631, %v780
        %v782 = vpop.f32.mrf.mxu0
        %783 = vdwg.mxu0
        %vm784 = vcmask 130048
        %v785 = vsel %vm784, %v778, -inf
        %786 = vmax.xlane.f32.xlu0 %v785
        %v787 = vpop.xlane.xlu0 %786
        %v788 = vsel %vm784, %v781, -inf
        %789 = vmax.xlane.f32.xlu0 %v788
        %v790 = vpop.xlane.xlu0 %789
        %v791 = vsub.f32 %v778, %v787
        %v792 = vsub.f32 %v781, %v790
        %v793 = vmul.f32 %v791, 1.442695
        %v794 = vpow.pop %v793
        %v795 = vmul.f32 %v792, 1.442695
        %v796 = vpow.pop %v795
        %v797 = vsel %vm784, %v794, 0.0
        %798 = vadd.xlane.f32.xlu0 %v797
        %v799 = vpop.xlane.xlu0 %798
        %v800 = vsel %vm784, %v796, 0.0
        %801 = vadd.xlane.f32.xlu0 %v800
        %v802 = vpop.xlane.xlu0 %801
        %v803 = vrcp.pop %v799
        %v804 = vrcp.pop %v802
        %v805 = vmul.f32 %v794, %v803
        %v806 = vmul.f32 %v796, %v804
        %v807 = vpack.c.bf16 %v806, %v805
        %808 = vrot.lane.b32.xlu0 %v732, 64
        %v809 = vpop.permute.xlu0 %808
        %v812 = vsel %vm784, %v807, 0
        %814 = vmatprep.subr.bf16.mxu0 0
        %815 = vmatpush1.bf16.msra.mxu0 0
        %816 = vmatprep.subr.bf16.mxu0 0
        %817 = vmatpush1.bf16.msra.mxu0 0
        %818 = vmatprep.subr.bf16.mxu0 0
        %819 = vmatpush1.bf16.msra.mxu0 0
        %820 = vmatprep.subr.bf16.mxu0 0
        %821 = vmatpush1.bf16.msra.mxu0 0
        %822 = vmatprep.subr.bf16.mxu0 0
        %823 = vmatpush1.bf16.msra.mxu0 0
        %824 = vmatprep.subr.bf16.mxu0 0
        %825 = vmatpush1.bf16.msra.mxu0 0
        %826 = vmatprep.subr.bf16.mxu0 0
        %827 = vmatpush1.bf16.msra.mxu0 0
        %828 = vmatprep.subr.bf16.mxu0 0
        %829 = vmatpush1.bf16.msra.mxu0 %v809
        %830 = vmatprep.subr.bf16.mxu0 0
        %831 = vmatpush2.bf16.msra.mxu0 0
        %832 = vmatprep.subr.bf16.mxu0 0
        %833 = vmatpush2.bf16.msra.mxu0 0
        %834 = vmatprep.subr.bf16.mxu0 0
        %835 = vmatpush2.bf16.msra.mxu0 0
        %836 = vmatprep.subr.bf16.mxu0 0
        %837 = vmatpush2.bf16.msra.mxu0 0
        %838 = vmatprep.subr.bf16.mxu0 0
        %839 = vmatpush2.bf16.msra.mxu0 0
        %840 = vmatprep.subr.bf16.mxu0 0
        %841 = vmatpush2.bf16.msra.mxu0 0
        %842 = vmatprep.subr.bf16.mxu0 0
        %843 = vmatpush2.bf16.msra.mxu0 0
        %844 = vmatprep.subr.bf16.mxu0 0
        %845 = vmatpush2.bf16.msra.mxu0 0
        %846 = vmatprep.mubr.bf16.mxu0 0
        %847 = vmatmul.mubr.bf16.gmra.mxu0 %v812
        %v848 = vpop.f32.mrf.mxu0
        %v849 = vadd.f32 0.0, %v848
        %v850 = vpop.f32.mrf.mxu0
        %v851 = vpop.f32.mrf.mxu0
        %v852 = vadd.f32 0.0, %v851
        %v853 = vpop.f32.mrf.mxu0
        %854 = vdwg.mxu0
        %855 = vrot.lane.b32.xlu0 %v732, 120
        %v856 = vpop.permute.xlu0 %855
        %857 = vrot.lane.b32.xlu0 %v732, 88
        %v858 = vpop.permute.xlu0 %857
        %v860 = vsel %vm736, %v856, 0
        %v863 = vsel %vm736, %v858, 0
        %865 = vmatprep.subr.bf16.mxu0 0
        %866 = vmatpush1.bf16.xpose.msra.mxu0 0
        %867 = vmatprep.subr.bf16.mxu0 0
        %868 = vmatpush1.bf16.xpose.msra.mxu0 0
        %869 = vmatprep.subr.bf16.mxu0 0
        %870 = vmatpush1.bf16.xpose.msra.mxu0 0
        %871 = vmatprep.subr.bf16.mxu0 0
        %872 = vmatpush1.bf16.xpose.msra.mxu0 0
        %873 = vmatprep.subr.bf16.mxu0 0
        %874 = vmatpush1.bf16.xpose.msra.mxu0 0
        %875 = vmatprep.subr.bf16.mxu0 0
        %876 = vmatpush1.bf16.xpose.msra.mxu0 0
        %877 = vmatprep.subr.bf16.mxu0 0
        %878 = vmatpush1.bf16.xpose.msra.mxu0 0
        %879 = vmatprep.subr.bf16.mxu0 0
        %880 = vmatpush1.bf16.xpose.msra.mxu0 %v863
        %881 = vmatprep.subr.bf16.mxu0 0
        %882 = vmatpush2.bf16.xpose.msra.mxu0 0
        %883 = vmatprep.subr.bf16.mxu0 0
        %884 = vmatpush2.bf16.xpose.msra.mxu0 0
        %885 = vmatprep.subr.bf16.mxu0 0
        %886 = vmatpush2.bf16.xpose.msra.mxu0 0
        %887 = vmatprep.subr.bf16.mxu0 0
        %888 = vmatpush2.bf16.xpose.msra.mxu0 0
        %889 = vmatprep.subr.bf16.mxu0 0
        %890 = vmatpush2.bf16.xpose.msra.mxu0 0
        %891 = vmatprep.subr.bf16.mxu0 0
        %892 = vmatpush2.bf16.xpose.msra.mxu0 0
        %893 = vmatprep.subr.bf16.mxu0 0
        %894 = vmatpush2.bf16.xpose.msra.mxu0 0
        %895 = vmatprep.subr.bf16.mxu0 0
        %896 = vmatpush2.bf16.xpose.msra.mxu0 0
        %897 = vmatprep.mubr.bf16.mxu0 0
        %898 = vmatmul.mubr.bf16.gmra.mxu0 %v860
        %v899 = vpop.f32.mrf.mxu0
        %v900 = vadd.f32 %v631, %v899
        %v901 = vpop.f32.mrf.mxu0
        %v902 = vpop.f32.mrf.mxu0
        %v903 = vadd.f32 %v631, %v902
        %v904 = vpop.f32.mrf.mxu0
        %905 = vdwg.mxu0
        %v906 = vsel %vm784, %v900, -inf
        %907 = vmax.xlane.f32.xlu0 %v906
        %v908 = vpop.xlane.xlu0 %907
        %v909 = vsel %vm784, %v903, -inf
        %910 = vmax.xlane.f32.xlu0 %v909
        %v911 = vpop.xlane.xlu0 %910
        %v912 = vsub.f32 %v900, %v908
        %v913 = vsub.f32 %v903, %v911
        %v914 = vmul.f32 %v912, 1.442695
        %v915 = vpow.pop %v914
        %v916 = vmul.f32 %v913, 1.442695
        %v917 = vpow.pop %v916
        %v918 = vsel %vm784, %v915, 0.0
        %919 = vadd.xlane.f32.xlu0 %v918
        %v920 = vpop.xlane.xlu0 %919
        %v921 = vsel %vm784, %v917, 0.0
        %922 = vadd.xlane.f32.xlu0 %v921
        %v923 = vpop.xlane.xlu0 %922
        %v924 = vrcp.pop %v920
        %v925 = vrcp.pop %v923
        %v926 = vmul.f32 %v915, %v924
        %v927 = vmul.f32 %v917, %v925
        %v928 = vpack.c.bf16 %v927, %v926
        %929 = vrot.lane.b32.xlu0 %v732, 56
        %v930 = vpop.permute.xlu0 %929
        %v933 = vsel %vm784, %v928, 0
        %935 = vmatprep.subr.bf16.mxu0 0
        %936 = vmatpush1.bf16.msra.mxu0 0
        %937 = vmatprep.subr.bf16.mxu0 0
        %938 = vmatpush1.bf16.msra.mxu0 0
        %939 = vmatprep.subr.bf16.mxu0 0
        %940 = vmatpush1.bf16.msra.mxu0 0
        %941 = vmatprep.subr.bf16.mxu0 0
        %942 = vmatpush1.bf16.msra.mxu0 0
        %943 = vmatprep.subr.bf16.mxu0 0
        %944 = vmatpush1.bf16.msra.mxu0 0
        %945 = vmatprep.subr.bf16.mxu0 0
        %946 = vmatpush1.bf16.msra.mxu0 0
        %947 = vmatprep.subr.bf16.mxu0 0
        %948 = vmatpush1.bf16.msra.mxu0 0
        %949 = vmatprep.subr.bf16.mxu0 0
        %950 = vmatpush1.bf16.msra.mxu0 %v930
        %951 = vmatprep.subr.bf16.mxu0 0
        %952 = vmatpush2.bf16.msra.mxu0 0
        %953 = vmatprep.subr.bf16.mxu0 0
        %954 = vmatpush2.bf16.msra.mxu0 0
        %955 = vmatprep.subr.bf16.mxu0 0
        %956 = vmatpush2.bf16.msra.mxu0 0
        %957 = vmatprep.subr.bf16.mxu0 0
        %958 = vmatpush2.bf16.msra.mxu0 0
        %959 = vmatprep.subr.bf16.mxu0 0
        %960 = vmatpush2.bf16.msra.mxu0 0
        %961 = vmatprep.subr.bf16.mxu0 0
        %962 = vmatpush2.bf16.msra.mxu0 0
        %963 = vmatprep.subr.bf16.mxu0 0
        %964 = vmatpush2.bf16.msra.mxu0 0
        %965 = vmatprep.subr.bf16.mxu0 0
        %966 = vmatpush2.bf16.msra.mxu0 0
        %967 = vmatprep.mubr.bf16.mxu0 0
        %968 = vmatmul.mubr.bf16.gmra.mxu0 %v933
        %v969 = vpop.f32.mrf.mxu0
        %v970 = vadd.f32 0.0, %v969
        %v971 = vpop.f32.mrf.mxu0
        %v972 = vpop.f32.mrf.mxu0
        %v973 = vadd.f32 0.0, %v972
        %v974 = vpop.f32.mrf.mxu0
        %975 = vdwg.mxu0
        %976 = vrot.lane.b32.xlu0 %v732, 112
        %v977 = vpop.permute.xlu0 %976
        %978 = vrot.lane.b32.xlu0 %v732, 80
        %v979 = vpop.permute.xlu0 %978
        %v981 = vsel %vm736, %v977, 0
        %v984 = vsel %vm736, %v979, 0
        %986 = vmatprep.subr.bf16.mxu0 0
        %987 = vmatpush1.bf16.xpose.msra.mxu0 0
        %988 = vmatprep.subr.bf16.mxu0 0
        %989 = vmatpush1.bf16.xpose.msra.mxu0 0
        %990 = vmatprep.subr.bf16.mxu0 0
        %991 = vmatpush1.bf16.xpose.msra.mxu0 0
        %992 = vmatprep.subr.bf16.mxu0 0
        %993 = vmatpush1.bf16.xpose.msra.mxu0 0
        %994 = vmatprep.subr.bf16.mxu0 0
        %995 = vmatpush1.bf16.xpose.msra.mxu0 0
        %996 = vmatprep.subr.bf16.mxu0 0
        %997 = vmatpush1.bf16.xpose.msra.mxu0 0
        %998 = vmatprep.subr.bf16.mxu0 0
        %999 = vmatpush1.bf16.xpose.msra.mxu0 0
        %1000 = vmatprep.subr.bf16.mxu0 0
        %1001 = vmatpush1.bf16.xpose.msra.mxu0 %v984
        %1002 = vmatprep.subr.bf16.mxu0 0
        %1003 = vmatpush2.bf16.xpose.msra.mxu0 0
        %1004 = vmatprep.subr.bf16.mxu0 0
        %1005 = vmatpush2.bf16.xpose.msra.mxu0 0
        %1006 = vmatprep.subr.bf16.mxu0 0
        %1007 = vmatpush2.bf16.xpose.msra.mxu0 0
        %1008 = vmatprep.subr.bf16.mxu0 0
        %1009 = vmatpush2.bf16.xpose.msra.mxu0 0
        %1010 = vmatprep.subr.bf16.mxu0 0
        %1011 = vmatpush2.bf16.xpose.msra.mxu0 0
        %1012 = vmatprep.subr.bf16.mxu0 0
        %1013 = vmatpush2.bf16.xpose.msra.mxu0 0
        %1014 = vmatprep.subr.bf16.mxu0 0
        %1015 = vmatpush2.bf16.xpose.msra.mxu0 0
        %1016 = vmatprep.subr.bf16.mxu0 0
        %1017 = vmatpush2.bf16.xpose.msra.mxu0 0
        %1018 = vmatprep.mubr.bf16.mxu0 0
        %1019 = vmatmul.mubr.bf16.gmra.mxu0 %v981
        %v1020 = vpop.f32.mrf.mxu0
        %v1021 = vadd.f32 %v631, %v1020
        %v1022 = vpop.f32.mrf.mxu0
        %v1023 = vpop.f32.mrf.mxu0
        %v1024 = vadd.f32 %v631, %v1023
        %v1025 = vpop.f32.mrf.mxu0
        %1026 = vdwg.mxu0
        %v1027 = vsel %vm784, %v1021, -inf
        %1028 = vmax.xlane.f32.xlu0 %v1027
        %v1029 = vpop.xlane.xlu0 %1028
        %v1030 = vsel %vm784, %v1024, -inf
        %1031 = vmax.xlane.f32.xlu0 %v1030
        %v1032 = vpop.xlane.xlu0 %1031
        %v1033 = vsub.f32 %v1021, %v1029
        %v1034 = vsub.f32 %v1024, %v1032
        %v1035 = vmul.f32 %v1033, 1.442695
        %v1036 = vpow.pop %v1035
        %v1037 = vmul.f32 %v1034, 1.442695
        %v1038 = vpow.pop %v1037
        %v1039 = vsel %vm784, %v1036, 0.0
        %1040 = vadd.xlane.f32.xlu0 %v1039
        %v1041 = vpop.xlane.xlu0 %1040
        %v1042 = vsel %vm784, %v1038, 0.0
        %1043 = vadd.xlane.f32.xlu0 %v1042
        %v1044 = vpop.xlane.xlu0 %1043
        %v1045 = vrcp.pop %v1041
        %v1046 = vrcp.pop %v1044
        %v1047 = vmul.f32 %v1036, %v1045
        %v1048 = vmul.f32 %v1038, %v1046
        %v1049 = vpack.c.bf16 %v1048, %v1047
        %1050 = vrot.lane.b32.xlu0 %v732, 48
        %v1051 = vpop.permute.xlu0 %1050
        %v1054 = vsel %vm784, %v1049, 0
        %1056 = vmatprep.subr.bf16.mxu0 0
        %1057 = vmatpush1.bf16.msra.mxu0 0
        %1058 = vmatprep.subr.bf16.mxu0 0
        %1059 = vmatpush1.bf16.msra.mxu0 0
        %1060 = vmatprep.subr.bf16.mxu0 0
        %1061 = vmatpush1.bf16.msra.mxu0 0
        %1062 = vmatprep.subr.bf16.mxu0 0
        %1063 = vmatpush1.bf16.msra.mxu0 0
        %1064 = vmatprep.subr.bf16.mxu0 0
        %1065 = vmatpush1.bf16.msra.mxu0 0
        %1066 = vmatprep.subr.bf16.mxu0 0
        %1067 = vmatpush1.bf16.msra.mxu0 0
        %1068 = vmatprep.subr.bf16.mxu0 0
        %1069 = vmatpush1.bf16.msra.mxu0 0
        %1070 = vmatprep.subr.bf16.mxu0 0
        %1071 = vmatpush1.bf16.msra.mxu0 %v1051
        %1072 = vmatprep.subr.bf16.mxu0 0
        %1073 = vmatpush2.bf16.msra.mxu0 0
        %1074 = vmatprep.subr.bf16.mxu0 0
        %1075 = vmatpush2.bf16.msra.mxu0 0
        %1076 = vmatprep.subr.bf16.mxu0 0
        %1077 = vmatpush2.bf16.msra.mxu0 0
        %1078 = vmatprep.subr.bf16.mxu0 0
        %1079 = vmatpush2.bf16.msra.mxu0 0
        %1080 = vmatprep.subr.bf16.mxu0 0
        %1081 = vmatpush2.bf16.msra.mxu0 0
        %1082 = vmatprep.subr.bf16.mxu0 0
        %1083 = vmatpush2.bf16.msra.mxu0 0
        %1084 = vmatprep.subr.bf16.mxu0 0
        %1085 = vmatpush2.bf16.msra.mxu0 0
        %1086 = vmatprep.subr.bf16.mxu0 0
        %1087 = vmatpush2.bf16.msra.mxu0 0
        %1088 = vmatprep.mubr.bf16.mxu0 0
        %1089 = vmatmul.mubr.bf16.gmra.mxu0 %v1054
        %v1090 = vpop.f32.mrf.mxu0
        %v1091 = vadd.f32 0.0, %v1090
        %v1092 = vpop.f32.mrf.mxu0
        %v1093 = vpop.f32.mrf.mxu0
        %v1094 = vadd.f32 0.0, %v1093
        %v1095 = vpop.f32.mrf.mxu0
        %1096 = vdwg.mxu0
        %1097 = vrot.lane.b32.xlu0 %v732, 104
        %v1098 = vpop.permute.xlu0 %1097
        %1099 = vrot.lane.b32.xlu0 %v732, 72
        %v1100 = vpop.permute.xlu0 %1099
        %v1102 = vsel %vm736, %v1098, 0
        %v1105 = vsel %vm736, %v1100, 0
        %1107 = vmatprep.subr.bf16.mxu0 0
        %1108 = vmatpush1.bf16.xpose.msra.mxu0 0
        %1109 = vmatprep.subr.bf16.mxu0 0
        %1110 = vmatpush1.bf16.xpose.msra.mxu0 0
        %1111 = vmatprep.subr.bf16.mxu0 0
        %1112 = vmatpush1.bf16.xpose.msra.mxu0 0
        %1113 = vmatprep.subr.bf16.mxu0 0
        %1114 = vmatpush1.bf16.xpose.msra.mxu0 0
        %1115 = vmatprep.subr.bf16.mxu0 0
        %1116 = vmatpush1.bf16.xpose.msra.mxu0 0
        %1117 = vmatprep.subr.bf16.mxu0 0
        %1118 = vmatpush1.bf16.xpose.msra.mxu0 0
        %1119 = vmatprep.subr.bf16.mxu0 0
        %1120 = vmatpush1.bf16.xpose.msra.mxu0 0
        %1121 = vmatprep.subr.bf16.mxu0 0
        %1122 = vmatpush1.bf16.xpose.msra.mxu0 %v1105
        %1123 = vmatprep.subr.bf16.mxu0 0
        %1124 = vmatpush2.bf16.xpose.msra.mxu0 0
        %1125 = vmatprep.subr.bf16.mxu0 0
        %1126 = vmatpush2.bf16.xpose.msra.mxu0 0
        %1127 = vmatprep.subr.bf16.mxu0 0
        %1128 = vmatpush2.bf16.xpose.msra.mxu0 0
        %1129 = vmatprep.subr.bf16.mxu0 0
        %1130 = vmatpush2.bf16.xpose.msra.mxu0 0
        %1131 = vmatprep.subr.bf16.mxu0 0
        %1132 = vmatpush2.bf16.xpose.msra.mxu0 0
        %1133 = vmatprep.subr.bf16.mxu0 0
        %1134 = vmatpush2.bf16.xpose.msra.mxu0 0
        %1135 = vmatprep.subr.bf16.mxu0 0
        %1136 = vmatpush2.bf16.xpose.msra.mxu0 0
        %1137 = vmatprep.subr.bf16.mxu0 0
        %1138 = vmatpush2.bf16.xpose.msra.mxu0 0
        %1139 = vmatprep.mubr.bf16.mxu0 0
        %1140 = vmatmul.mubr.bf16.gmra.mxu0 %v1102
        %v1141 = vpop.f32.mrf.mxu0
        %v1142 = vadd.f32 %v631, %v1141
        %v1143 = vpop.f32.mrf.mxu0
        %v1144 = vpop.f32.mrf.mxu0
        %v1145 = vadd.f32 %v631, %v1144
        %v1146 = vpop.f32.mrf.mxu0
        %1147 = vdwg.mxu0
        %v1148 = vsel %vm784, %v1142, -inf
        %1149 = vmax.xlane.f32.xlu0 %v1148
        %v1150 = vpop.xlane.xlu0 %1149
        %v1151 = vsel %vm784, %v1145, -inf
        %1152 = vmax.xlane.f32.xlu0 %v1151
        %v1153 = vpop.xlane.xlu0 %1152
        %v1154 = vsub.f32 %v1142, %v1150
        %v1155 = vsub.f32 %v1145, %v1153
        %v1156 = vmul.f32 %v1154, 1.442695
        %v1157 = vpow.pop %v1156
        %v1158 = vmul.f32 %v1155, 1.442695
        %v1159 = vpow.pop %v1158
        %v1160 = vsel %vm784, %v1157, 0.0
        %1161 = vadd.xlane.f32.xlu0 %v1160
        %v1162 = vpop.xlane.xlu0 %1161
        %v1163 = vsel %vm784, %v1159, 0.0
        %1164 = vadd.xlane.f32.xlu0 %v1163
        %v1165 = vpop.xlane.xlu0 %1164
        %v1166 = vrcp.pop %v1162
        %v1167 = vrcp.pop %v1165
        %v1168 = vmul.f32 %v1157, %v1166
        %v1169 = vmul.f32 %v1159, %v1167
        %v1170 = vpack.c.bf16 %v1169, %v1168
        %1171 = vrot.lane.b32.xlu0 %v732, 40
        %v1172 = vpop.permute.xlu0 %1171
        %v1175 = vsel %vm784, %v1170, 0
        %1177 = vmatprep.subr.bf16.mxu0 0
        %1178 = vmatpush1.bf16.msra.mxu0 0
        %1179 = vmatprep.subr.bf16.mxu0 0
        %1180 = vmatpush1.bf16.msra.mxu0 0
        %1181 = vmatprep.subr.bf16.mxu0 0
        %1182 = vmatpush1.bf16.msra.mxu0 0
        %1183 = vmatprep.subr.bf16.mxu0 0
        %1184 = vmatpush1.bf16.msra.mxu0 0
        %1185 = vmatprep.subr.bf16.mxu0 0
        %1186 = vmatpush1.bf16.msra.mxu0 0
        %1187 = vmatprep.subr.bf16.mxu0 0
        %1188 = vmatpush1.bf16.msra.mxu0 0
        %1189 = vmatprep.subr.bf16.mxu0 0
        %1190 = vmatpush1.bf16.msra.mxu0 0
        %1191 = vmatprep.subr.bf16.mxu0 0
        %1192 = vmatpush1.bf16.msra.mxu0 %v1172
        %1193 = vmatprep.subr.bf16.mxu0 0
        %1194 = vmatpush2.bf16.msra.mxu0 0
        %1195 = vmatprep.subr.bf16.mxu0 0
        %1196 = vmatpush2.bf16.msra.mxu0 0
        %1197 = vmatprep.subr.bf16.mxu0 0
        %1198 = vmatpush2.bf16.msra.mxu0 0
        %1199 = vmatprep.subr.bf16.mxu0 0
        %1200 = vmatpush2.bf16.msra.mxu0 0
        %1201 = vmatprep.subr.bf16.mxu0 0
        %1202 = vmatpush2.bf16.msra.mxu0 0
        %1203 = vmatprep.subr.bf16.mxu0 0
        %1204 = vmatpush2.bf16.msra.mxu0 0
        %1205 = vmatprep.subr.bf16.mxu0 0
        %1206 = vmatpush2.bf16.msra.mxu0 0
        %1207 = vmatprep.subr.bf16.mxu0 0
        %1208 = vmatpush2.bf16.msra.mxu0 0
        %1209 = vmatprep.mubr.bf16.mxu0 0
        %1210 = vmatmul.mubr.bf16.gmra.mxu0 %v1175
        %v1211 = vpop.f32.mrf.mxu0
        %v1212 = vadd.f32 0.0, %v1211
        %v1213 = vpop.f32.mrf.mxu0
        %v1214 = vpop.f32.mrf.mxu0
        %v1215 = vadd.f32 0.0, %v1214
        %v1216 = vpop.f32.mrf.mxu0
        %1217 = vdwg.mxu0
        %1220 = vrot.lane.b32.xlu0 %v970, 8
        %v1221 = vpop.permute.xlu0 %1220
        %1222 = vrot.lane.b32.xlu0 %v973, 8
        %v1223 = vpop.permute.xlu0 %1222
        %1228 = vrot.lane.b32.xlu0 %v1091, 16
        %v1229 = vpop.permute.xlu0 %1228
        %1230 = vrot.lane.b32.xlu0 %v1094, 16
        %v1231 = vpop.permute.xlu0 %1230
        %1236 = vrot.lane.b32.xlu0 %v1212, 24
        %v1237 = vpop.permute.xlu0 %1236
        %1238 = vrot.lane.b32.xlu0 %v1215, 24
        %v1239 = vpop.permute.xlu0 %1238
        %v1242 = vsel %vm736, %v849, %v1221
        %v1243 = vsel %vm736, %v852, %v1223
        %v1244 = vsel %vm784, %v1242, %v1229
        %v1245 = vsel %vm784, %v1243, %v1231
        %v1246 = vsel %vm576, %v1244, %v1237
        %v1247 = vsel %vm576, %v1245, %v1239
        %v1248 = vpack.c.bf16 %v1247, %v1246
        %v1250 = vlaneseq
        %v1251 = vshrl.u32 %v1250, 7
        %v1252 = vsub.s32 0, %v1251
        %v1253 = vrot.slane %v641, %v1252
        %v1259 = vunpack.c.l.b16 %v637
        %v1260 = vunpack.c.l.b16 %v638
        %v1261 = vunpack.c.l.b16 %v639
        %v1262 = vunpack.c.l.b16 %v640
        %v1263 = vpack.c.b16 %v1260, %v1259
        %v1264 = vpack.c.b16 %v1262, %v1261
        %v1268 = vsel %vm687, %v1248, 0
        %1270 = vmatprep.subr.bf16.mxu0 0
        %1271 = vmatpush1.bf16.msra.mxu0 0
        %1272 = vmatprep.subr.bf16.mxu0 0
        %1273 = vmatpush1.bf16.msra.mxu0 0
        %1274 = vmatprep.subr.bf16.mxu0 0
        %1275 = vmatpush1.bf16.msra.mxu0 0
        %1276 = vmatprep.subr.bf16.mxu0 0
        %1277 = vmatpush1.bf16.msra.mxu0 0
        %1278 = vmatprep.subr.bf16.mxu0 0
        %1279 = vmatpush1.bf16.msra.mxu0 0
        %1280 = vmatprep.subr.bf16.mxu0 0
        %1281 = vmatpush1.bf16.msra.mxu0 0
        %1282 = vmatprep.subr.bf16.mxu0 0
        %1283 = vmatpush1.bf16.msra.mxu0 %v1264
        %1284 = vmatprep.subr.bf16.mxu0 0
        %1285 = vmatpush1.bf16.msra.mxu0 %v1263
        %1286 = vmatprep.subr.bf16.mxu0 0
        %1287 = vmatpush2.bf16.msra.mxu0 0
        %1288 = vmatprep.subr.bf16.mxu0 0
        %1289 = vmatpush2.bf16.msra.mxu0 0
        %1290 = vmatprep.subr.bf16.mxu0 0
        %1291 = vmatpush2.bf16.msra.mxu0 0
        %1292 = vmatprep.subr.bf16.mxu0 0
        %1293 = vmatpush2.bf16.msra.mxu0 0
        %1294 = vmatprep.subr.bf16.mxu0 0
        %1295 = vmatpush2.bf16.msra.mxu0 0
        %1296 = vmatprep.subr.bf16.mxu0 0
        %1297 = vmatpush2.bf16.msra.mxu0 0
        %1298 = vmatprep.subr.bf16.mxu0 0
        %1299 = vmatpush2.bf16.msra.mxu0 0
        %1300 = vmatprep.subr.bf16.mxu0 0
        %1301 = vmatpush2.bf16.msra.mxu0 0
        %1302 = vmatprep.mubr.bf16.mxu0 0
        %1303 = vmatmul.mubr.bf16.gmra.mxu0 %v1268
        %v1304 = vpop.f32.mrf.mxu0
        %v1305 = vadd.f32 %v1253, %v1304
        %v1306 = vpop.f32.mrf.mxu0
        %v1307 = vpop.f32.mrf.mxu0
        %v1308 = vadd.f32 %v1253, %v1307
        %v1309 = vpop.f32.mrf.mxu0
        %1310 = vdwg.mxu0
        %v1311 = vadd.f32 %v626, %v1305
        %v1312 = vadd.f32 %v627, %v1308
        %v1313 = vsel %vm687, %v1311, 0.0
        %1314 = vadd.xlane.f32.xlu0 %v1313
        %v1315 = vpop.xlane.xlu0 %1314
        %v1316 = vsel %vm687, %v1312, 0.0
        %1317 = vadd.xlane.f32.xlu0 %v1316
        %v1318 = vpop.xlane.xlu0 %1317
        %v1319 = vrcp.pop 32.0
        %v1320 = vmul.f32 %v1315, %v1319
        %v1321 = vmul.f32 %v1318, %v1319
        %v1322 = vsub.f32 %v1311, %v1320
        %v1323 = vsub.f32 %v1312, %v1321
        %v1324 = vmul.f32 %v1322, %v1322
        %v1325 = vmul.f32 %v1323, %v1323
        %v1326 = vsel %vm687, %v1324, 0.0
        %1327 = vadd.xlane.f32.xlu0 %v1326
        %v1328 = vpop.xlane.xlu0 %1327
        %v1329 = vsel %vm687, %v1325, 0.0
        %1330 = vadd.xlane.f32.xlu0 %v1329
        %v1331 = vpop.xlane.xlu0 %1330
        %v1332 = vmul.f32 %v1328, %v1319
        %v1333 = vmul.f32 %v1331, %v1319
        %v1334 = vadd.f32 %v1332, 1e-05
        %v1335 = vadd.f32 %v1333, 1e-05
        %v1336 = vrsqrt.pop %v1334
        %v1337 = vrsqrt.pop %v1335
        %v1338 = vmul.f32 %v1322, %v1336
        %v1339 = vmul.f32 %v1323, %v1337
        %v1341 = vlaneseq
        %v1342 = vshrl.u32 %v1341, 7
        %v1343 = vsub.s32 0, %v1342
        %v1344 = vrot.slane %v642, %v1343
        %v1346 = vmul.f32 %v1338, %v1344
        %v1347 = vmul.f32 %v1339, %v1344
        %v1349 = vlaneseq
        %v1350 = vshrl.u32 %v1349, 7
        %v1351 = vsub.s32 0, %v1350
        %v1352 = vrot.slane %v643, %v1351
        %v1354 = vadd.f32 %v1346, %v1352
        %v1355 = vadd.f32 %v1347, %v1352
        %v1356 = vpack.c.bf16 %v1355, %v1354
        %v1358 = vlaneseq
        %v1359 = vshrl.u32 %v1358, 7
        %v1360 = vsub.s32 0, %v1359
        %v1361 = vrot.slane %v648, %v1360
        %v1367 = vunpack.c.l.b16 %v644
        %v1368 = vunpack.c.l.b16 %v645
        %v1369 = vunpack.c.l.b16 %v646
        %v1370 = vunpack.c.l.b16 %v647
        %v1371 = vpack.c.b16 %v1368, %v1367
        %v1372 = vpack.c.b16 %v1370, %v1369
        %v1376 = vsel %vm687, %v1356, 0
        %1378 = vmatprep.subr.bf16.mxu0 0
        %1379 = vmatpush1.bf16.msra.mxu0 0
        %1380 = vmatprep.subr.bf16.mxu0 0
        %1381 = vmatpush1.bf16.msra.mxu0 0
        %1382 = vmatprep.subr.bf16.mxu0 0
        %1383 = vmatpush1.bf16.msra.mxu0 0
        %1384 = vmatprep.subr.bf16.mxu0 0
        %1385 = vmatpush1.bf16.msra.mxu0 0
        %1386 = vmatprep.subr.bf16.mxu0 0
        %1387 = vmatpush1.bf16.msra.mxu0 0
        %1388 = vmatprep.subr.bf16.mxu0 0
        %1389 = vmatpush1.bf16.msra.mxu0 0
        %1390 = vmatprep.subr.bf16.mxu0 0
        %1391 = vmatpush1.bf16.msra.mxu0 %v1372
        %1392 = vmatprep.subr.bf16.mxu0 0
        %1393 = vmatpush1.bf16.msra.mxu0 %v1371
        %1394 = vmatprep.subr.bf16.mxu0 0
        %1395 = vmatpush2.bf16.msra.mxu0 0
        %1396 = vmatprep.subr.bf16.mxu0 0
        %1397 = vmatpush2.bf16.msra.mxu0 0
        %1398 = vmatprep.subr.bf16.mxu0 0
        %1399 = vmatpush2.bf16.msra.mxu0 0
        %1400 = vmatprep.subr.bf16.mxu0 0
        %1401 = vmatpush2.bf16.msra.mxu0 0
        %1402 = vmatprep.subr.bf16.mxu0 0
        %1403 = vmatpush2.bf16.msra.mxu0 0
        %1404 = vmatprep.subr.bf16.mxu0 0
        %1405 = vmatpush2.bf16.msra.mxu0 0
        %1406 = vmatprep.subr.bf16.mxu0 0
        %1407 = vmatpush2.bf16.msra.mxu0 0
        %1408 = vmatprep.subr.bf16.mxu0 0
        %1409 = vmatpush2.bf16.msra.mxu0 0
        %1410 = vmatprep.mubr.bf16.mxu0 0
        %1411 = vmatmul.mubr.bf16.gmra.mxu0 %v1376
        %v1412 = vpop.f32.mrf.mxu0
        %v1413 = vadd.f32 %v1361, %v1412
        %v1414 = vpop.f32.mrf.mxu0
        %v1415 = vpop.f32.mrf.mxu0
        %v1416 = vadd.f32 %v1361, %v1415
        %v1417 = vpop.f32.mrf.mxu0
        %1418 = vdwg.mxu0
        %v1419 = vmax.f32 %v1413, 0.0
        %v1420 = vmax.f32 %v1416, 0.0
        %v1421 = vpack.c.bf16 %v1420, %v1419
        %v1423 = vlaneseq
        %v1424 = vshrl.u32 %v1423, 7
        %v1425 = vsub.s32 0, %v1424
        %v1426 = vrot.slane %v665, %v1425
        %v1444 = vunpack.c.l.b16 %v649
        %v1445 = vunpack.c.l.b16 %v650
        %v1446 = vunpack.c.l.b16 %v651
        %v1447 = vunpack.c.l.b16 %v652
        %v1448 = vunpack.c.l.b16 %v653
        %v1449 = vunpack.c.l.b16 %v654
        %v1450 = vunpack.c.l.b16 %v655
        %v1451 = vunpack.c.l.b16 %v656
        %v1452 = vunpack.c.l.b16 %v657
        %v1453 = vunpack.c.l.b16 %v658
        %v1454 = vunpack.c.l.b16 %v659
        %v1455 = vunpack.c.l.b16 %v660
        %v1456 = vunpack.c.l.b16 %v661
        %v1457 = vunpack.c.l.b16 %v662
        %v1458 = vunpack.c.l.b16 %v663
        %v1459 = vunpack.c.l.b16 %v664
        %v1460 = vpack.c.b16 %v1445, %v1444
        %v1461 = vpack.c.b16 %v1447, %v1446
        %v1462 = vpack.c.b16 %v1449, %v1448
        %v1463 = vpack.c.b16 %v1451, %v1450
        %v1464 = vpack.c.b16 %v1453, %v1452
        %v1465 = vpack.c.b16 %v1455, %v1454
        %v1466 = vpack.c.b16 %v1457, %v1456
        %v1467 = vpack.c.b16 %v1459, %v1458
        %1476 = vmatprep.subr.bf16.mxu0 0
        %1477 = vmatpush1.bf16.msra.mxu0 %v1467
        %1478 = vmatprep.subr.bf16.mxu0 0
        %1479 = vmatpush1.bf16.msra.mxu0 %v1466
        %1480 = vmatprep.subr.bf16.mxu0 0
        %1481 = vmatpush1.bf16.msra.mxu0 %v1465
        %1482 = vmatprep.subr.bf16.mxu0 0
        %1483 = vmatpush1.bf16.msra.mxu0 %v1464
        %1484 = vmatprep.subr.bf16.mxu0 0
        %1485 = vmatpush1.bf16.msra.mxu0 %v1463
        %1486 = vmatprep.subr.bf16.mxu0 0
        %1487 = vmatpush1.bf16.msra.mxu0 %v1462
        %1488 = vmatprep.subr.bf16.mxu0 0
        %1489 = vmatpush1.bf16.msra.mxu0 %v1461
        %1490 = vmatprep.subr.bf16.mxu0 0
        %1491 = vmatpush1.bf16.msra.mxu0 %v1460
        %1492 = vmatprep.subr.bf16.mxu0 0
        %1493 = vmatpush2.bf16.msra.mxu0 0
        %1494 = vmatprep.subr.bf16.mxu0 0
        %1495 = vmatpush2.bf16.msra.mxu0 0
        %1496 = vmatprep.subr.bf16.mxu0 0
        %1497 = vmatpush2.bf16.msra.mxu0 0
        %1498 = vmatprep.subr.bf16.mxu0 0
        %1499 = vmatpush2.bf16.msra.mxu0 0
        %1500 = vmatprep.subr.bf16.mxu0 0
        %1501 = vmatpush2.bf16.msra.mxu0 0
        %1502 = vmatprep.subr.bf16.mxu0 0
        %1503 = vmatpush2.bf16.msra.mxu0 0
        %1504 = vmatprep.subr.bf16.mxu0 0
        %1505 = vmatpush2.bf16.msra.mxu0 0
        %1506 = vmatprep.subr.bf16.mxu0 0
        %1507 = vmatpush2.bf16.msra.mxu0 0
        %1508 = vmatprep.mubr.bf16.mxu0 0
        %1509 = vmatmul.mubr.bf16.gmra.mxu0 %v1421
        %v1510 = vpop.f32.mrf.mxu0
        %v1511 = vadd.f32 %v1426, %v1510
        %v1512 = vpop.f32.mrf.mxu0
        %v1513 = vpop.f32.mrf.mxu0
        %v1514 = vadd.f32 %v1426, %v1513
        %v1515 = vpop.f32.mrf.mxu0
        %1516 = vdwg.mxu0
        %v1517 = vadd.f32 %v1354, %v1511
        %v1518 = vadd.f32 %v1355, %v1514
        %v1519 = vsel %vm687, %v1517, 0.0
        %1520 = vadd.xlane.f32.xlu0 %v1519
        %v1521 = vpop.xlane.xlu0 %1520
        %v1522 = vsel %vm687, %v1518, 0.0
        %1523 = vadd.xlane.f32.xlu0 %v1522
        %v1524 = vpop.xlane.xlu0 %1523
        %v1525 = vmul.f32 %v1521, %v1319
        %v1526 = vmul.f32 %v1524, %v1319
        %v1527 = vsub.f32 %v1517, %v1525
        %v1528 = vsub.f32 %v1518, %v1526
        %v1529 = vmul.f32 %v1527, %v1527
        %v1530 = vmul.f32 %v1528, %v1528
        %v1531 = vsel %vm687, %v1529, 0.0
        %1532 = vadd.xlane.f32.xlu0 %v1531
        %v1533 = vpop.xlane.xlu0 %1532
        %v1534 = vsel %vm687, %v1530, 0.0
        %1535 = vadd.xlane.f32.xlu0 %v1534
        %v1536 = vpop.xlane.xlu0 %1535
        %v1537 = vmul.f32 %v1533, %v1319
        %v1538 = vmul.f32 %v1536, %v1319
        %v1539 = vadd.f32 %v1537, 1e-05
        %v1540 = vadd.f32 %v1538, 1e-05
        %v1541 = vrsqrt.pop %v1539
        %v1542 = vrsqrt.pop %v1540
        %v1543 = vmul.f32 %v1527, %v1541
        %v1544 = vmul.f32 %v1528, %v1542
        %v1546 = vlaneseq
        %v1547 = vshrl.u32 %v1546, 7
        %v1548 = vsub.s32 0, %v1547
        %v1549 = vrot.slane %v666, %v1548
        %v1551 = vmul.f32 %v1543, %v1549
        %v1552 = vmul.f32 %v1544, %v1549
        %v1554 = vlaneseq
        %v1555 = vshrl.u32 %v1554, 7
        %v1556 = vsub.s32 0, %v1555
        %v1557 = vrot.slane %v667, %v1556
        %v1559 = vadd.f32 %v1551, %v1557
        %v1560 = vadd.f32 %v1552, %v1557
        %s1561 = scalar_lea.vmem %s4, 16
        %v1562 = vld [vmem:[%s1561] sm:$0xf]
        %v1563 = vld [vmem:[%s1561 + $0x4] sm:$0xf]
        %v1564 = vld [vmem:[%s1561 + $0x8] sm:$0xf]
        %v1565 = vld [vmem:[%s1561 + $0xc] sm:$0xf]
        %s1566 = scalar_lea.vmem %s5, 1
        %v1567 = vld [vmem:[%s1566] sm:$0x1]
        %s1568 = scalar_lea.vmem %s6, 16
        %v1569 = vld [vmem:[%s1568] sm:$0xf]
        %v1570 = vld [vmem:[%s1568 + $0x4] sm:$0xf]
        %v1571 = vld [vmem:[%s1568 + $0x8] sm:$0xf]
        %v1572 = vld [vmem:[%s1568 + $0xc] sm:$0xf]
        %s1573 = scalar_lea.vmem %s7, 1
        %v1574 = vld [vmem:[%s1573] sm:$0x1]
        %s1575 = scalar_lea.vmem %s8, 1
        %v1576 = vld [vmem:[%s1575] sm:$0x1]
        %s1577 = scalar_lea.vmem %s9, 1
        %v1578 = vld [vmem:[%s1577] sm:$0x1]
        %s1579 = scalar_lea.vmem %s10, 16
        %v1580 = vld [vmem:[%s1579] sm:$0xf]
        %v1581 = vld [vmem:[%s1579 + $0x4] sm:$0xf]
        %v1582 = vld [vmem:[%s1579 + $0x8] sm:$0xf]
        %v1583 = vld [vmem:[%s1579 + $0xc] sm:$0xf]
        %s1584 = scalar_lea.vmem %s11, 1
        %v1585 = vld [vmem:[%s1584] sm:$0x1]
        %s1586 = scalar_lea.vmem %s12, 64
        %v1587 = vld [vmem:[%s1586] sm:$0xf]
        %v1588 = vld [vmem:[%s1586 + $0x4] sm:$0xf]
        %v1589 = vld [vmem:[%s1586 + $0x8] sm:$0xf]
        %v1590 = vld [vmem:[%s1586 + $0xc] sm:$0xf]
        %v1591 = vld [vmem:[%s1586 + $0x10] sm:$0xf]
        %v1592 = vld [vmem:[%s1586 + $0x14] sm:$0xf]
        %v1593 = vld [vmem:[%s1586 + $0x18] sm:$0xf]
        %v1594 = vld [vmem:[%s1586 + $0x1c] sm:$0xf]
        %v1595 = vld [vmem:[%s1586 + $0x20] sm:$0xf]
        %v1596 = vld [vmem:[%s1586 + $0x24] sm:$0xf]
        %v1597 = vld [vmem:[%s1586 + $0x28] sm:$0xf]
        %v1598 = vld [vmem:[%s1586 + $0x2c] sm:$0xf]
        %v1599 = vld [vmem:[%s1586 + $0x30] sm:$0xf]
        %v1600 = vld [vmem:[%s1586 + $0x34] sm:$0xf]
        %v1601 = vld [vmem:[%s1586 + $0x38] sm:$0xf]
        %v1602 = vld [vmem:[%s1586 + $0x3c] sm:$0xf]
        %s1603 = scalar_lea.vmem %s13, 1
        %v1604 = vld [vmem:[%s1603] sm:$0x1]
        %s1605 = scalar_lea.vmem %s14, 1
        %v1606 = vld [vmem:[%s1605] sm:$0x1]
        %s1607 = scalar_lea.vmem %s15, 1
        %v1608 = vld [vmem:[%s1607] sm:$0x1]
        %v1609 = vpack.c.bf16 %v1560, %v1559
        %v1611 = vlaneseq
        %v1612 = vshrl.u32 %v1611, 7
        %v1613 = vsub.s32 0, %v1612
        %v1614 = vrot.slane %v1567, %v1613
        %v1620 = vunpack.c.l.b16 %v1562
        %v1621 = vunpack.c.l.b16 %v1563
        %v1622 = vunpack.c.l.b16 %v1564
        %v1623 = vunpack.c.l.b16 %v1565
        %v1624 = vpack.c.b16 %v1621, %v1620
        %v1625 = vpack.c.b16 %v1623, %v1622
        %v1629 = vsel %vm687, %v1609, 0
        %1631 = vmatprep.subr.bf16.mxu0 0
        %1632 = vmatpush1.bf16.msra.mxu0 0
        %1633 = vmatprep.subr.bf16.mxu0 0
        %1634 = vmatpush1.bf16.msra.mxu0 0
        %1635 = vmatprep.subr.bf16.mxu0 0
        %1636 = vmatpush1.bf16.msra.mxu0 0
        %1637 = vmatprep.subr.bf16.mxu0 0
        %1638 = vmatpush1.bf16.msra.mxu0 0
        %1639 = vmatprep.subr.bf16.mxu0 0
        %1640 = vmatpush1.bf16.msra.mxu0 0
        %1641 = vmatprep.subr.bf16.mxu0 0
        %1642 = vmatpush1.bf16.msra.mxu0 0
        %1643 = vmatprep.subr.bf16.mxu0 0
        %1644 = vmatpush1.bf16.msra.mxu0 %v1625
        %1645 = vmatprep.subr.bf16.mxu0 0
        %1646 = vmatpush1.bf16.msra.mxu0 %v1624
        %1647 = vmatprep.subr.bf16.mxu0 0
        %1648 = vmatpush2.bf16.msra.mxu0 0
        %1649 = vmatprep.subr.bf16.mxu0 0
        %1650 = vmatpush2.bf16.msra.mxu0 0
        %1651 = vmatprep.subr.bf16.mxu0 0
        %1652 = vmatpush2.bf16.msra.mxu0 0
        %1653 = vmatprep.subr.bf16.mxu0 0
        %1654 = vmatpush2.bf16.msra.mxu0 0
        %1655 = vmatprep.subr.bf16.mxu0 0
        %1656 = vmatpush2.bf16.msra.mxu0 0
        %1657 = vmatprep.subr.bf16.mxu0 0
        %1658 = vmatpush2.bf16.msra.mxu0 0
        %1659 = vmatprep.subr.bf16.mxu0 0
        %1660 = vmatpush2.bf16.msra.mxu0 0
        %1661 = vmatprep.subr.bf16.mxu0 0
        %1662 = vmatpush2.bf16.msra.mxu0 0
        %1663 = vmatprep.mubr.bf16.mxu0 0
        %1664 = vmatmul.mubr.bf16.gmra.mxu0 %v1629
        %v1665 = vpop.f32.mrf.mxu0
        %v1666 = vadd.f32 %v1614, %v1665
        %v1667 = vpop.f32.mrf.mxu0
        %v1668 = vpop.f32.mrf.mxu0
        %v1669 = vadd.f32 %v1614, %v1668
        %v1670 = vpop.f32.mrf.mxu0
        %1671 = vdwg.mxu0
        %v1672 = vpack.c.bf16 %v1669, %v1666
        %1674 = vrot.lane.b32.xlu0 %v1672, 96
        %v1675 = vpop.permute.xlu0 %1674
        %v1677 = vsel %vm736, %v1672, 0
        %v1680 = vsel %vm736, %v1675, 0
        %1682 = vmatprep.subr.bf16.mxu0 0
        %1683 = vmatpush1.bf16.xpose.msra.mxu0 0
        %1684 = vmatprep.subr.bf16.mxu0 0
        %1685 = vmatpush1.bf16.xpose.msra.mxu0 0
        %1686 = vmatprep.subr.bf16.mxu0 0
        %1687 = vmatpush1.bf16.xpose.msra.mxu0 0
        %1688 = vmatprep.subr.bf16.mxu0 0
        %1689 = vmatpush1.bf16.xpose.msra.mxu0 0
        %1690 = vmatprep.subr.bf16.mxu0 0
        %1691 = vmatpush1.bf16.xpose.msra.mxu0 0
        %1692 = vmatprep.subr.bf16.mxu0 0
        %1693 = vmatpush1.bf16.xpose.msra.mxu0 0
        %1694 = vmatprep.subr.bf16.mxu0 0
        %1695 = vmatpush1.bf16.xpose.msra.mxu0 0
        %1696 = vmatprep.subr.bf16.mxu0 0
        %1697 = vmatpush1.bf16.xpose.msra.mxu0 %v1680
        %1698 = vmatprep.subr.bf16.mxu0 0
        %1699 = vmatpush2.bf16.xpose.msra.mxu0 0
        %1700 = vmatprep.subr.bf16.mxu0 0
        %1701 = vmatpush2.bf16.xpose.msra.mxu0 0
        %1702 = vmatprep.subr.bf16.mxu0 0
        %1703 = vmatpush2.bf16.xpose.msra.mxu0 0
        %1704 = vmatprep.subr.bf16.mxu0 0
        %1705 = vmatpush2.bf16.xpose.msra.mxu0 0
        %1706 = vmatprep.subr.bf16.mxu0 0
        %1707 = vmatpush2.bf16.xpose.msra.mxu0 0
        %1708 = vmatprep.subr.bf16.mxu0 0
        %1709 = vmatpush2.bf16.xpose.msra.mxu0 0
        %1710 = vmatprep.subr.bf16.mxu0 0
        %1711 = vmatpush2.bf16.xpose.msra.mxu0 0
        %1712 = vmatprep.subr.bf16.mxu0 0
        %1713 = vmatpush2.bf16.xpose.msra.mxu0 0
        %1714 = vmatprep.mubr.bf16.mxu0 0
        %1715 = vmatmul.mubr.bf16.gmra.mxu0 %v1677
        %v1716 = vpop.f32.mrf.mxu0
        %v1717 = vadd.f32 %v631, %v1716
        %v1718 = vpop.f32.mrf.mxu0
        %v1719 = vpop.f32.mrf.mxu0
        %v1720 = vadd.f32 %v631, %v1719
        %v1721 = vpop.f32.mrf.mxu0
        %1722 = vdwg.mxu0
        %v1723 = vsel %vm784, %v1717, -inf
        %1724 = vmax.xlane.f32.xlu0 %v1723
        %v1725 = vpop.xlane.xlu0 %1724
        %v1726 = vsel %vm784, %v1720, -inf
        %1727 = vmax.xlane.f32.xlu0 %v1726
        %v1728 = vpop.xlane.xlu0 %1727
        %v1729 = vsub.f32 %v1717, %v1725
        %v1730 = vsub.f32 %v1720, %v1728
        %v1731 = vmul.f32 %v1729, 1.442695
        %v1732 = vpow.pop %v1731
        %v1733 = vmul.f32 %v1730, 1.442695
        %v1734 = vpow.pop %v1733
        %v1735 = vsel %vm784, %v1732, 0.0
        %1736 = vadd.xlane.f32.xlu0 %v1735
        %v1737 = vpop.xlane.xlu0 %1736
        %v1738 = vsel %vm784, %v1734, 0.0
        %1739 = vadd.xlane.f32.xlu0 %v1738
        %v1740 = vpop.xlane.xlu0 %1739
        %v1741 = vrcp.pop %v1737
        %v1742 = vrcp.pop %v1740
        %v1743 = vmul.f32 %v1732, %v1741
        %v1744 = vmul.f32 %v1734, %v1742
        %v1745 = vpack.c.bf16 %v1744, %v1743
        %1746 = vrot.lane.b32.xlu0 %v1672, 64
        %v1747 = vpop.permute.xlu0 %1746
        %v1750 = vsel %vm784, %v1745, 0
        %1752 = vmatprep.subr.bf16.mxu0 0
        %1753 = vmatpush1.bf16.msra.mxu0 0
        %1754 = vmatprep.subr.bf16.mxu0 0
        %1755 = vmatpush1.bf16.msra.mxu0 0
        %1756 = vmatprep.subr.bf16.mxu0 0
        %1757 = vmatpush1.bf16.msra.mxu0 0
        %1758 = vmatprep.subr.bf16.mxu0 0
        %1759 = vmatpush1.bf16.msra.mxu0 0
        %1760 = vmatprep.subr.bf16.mxu0 0
        %1761 = vmatpush1.bf16.msra.mxu0 0
        %1762 = vmatprep.subr.bf16.mxu0 0
        %1763 = vmatpush1.bf16.msra.mxu0 0
        %1764 = vmatprep.subr.bf16.mxu0 0
        %1765 = vmatpush1.bf16.msra.mxu0 0
        %1766 = vmatprep.subr.bf16.mxu0 0
        %1767 = vmatpush1.bf16.msra.mxu0 %v1747
        %1768 = vmatprep.subr.bf16.mxu0 0
        %1769 = vmatpush2.bf16.msra.mxu0 0
        %1770 = vmatprep.subr.bf16.mxu0 0
        %1771 = vmatpush2.bf16.msra.mxu0 0
        %1772 = vmatprep.subr.bf16.mxu0 0
        %1773 = vmatpush2.bf16.msra.mxu0 0
        %1774 = vmatprep.subr.bf16.mxu0 0
        %1775 = vmatpush2.bf16.msra.mxu0 0
        %1776 = vmatprep.subr.bf16.mxu0 0
        %1777 = vmatpush2.bf16.msra.mxu0 0
        %1778 = vmatprep.subr.bf16.mxu0 0
        %1779 = vmatpush2.bf16.msra.mxu0 0
        %1780 = vmatprep.subr.bf16.mxu0 0
        %1781 = vmatpush2.bf16.msra.mxu0 0
        %1782 = vmatprep.subr.bf16.mxu0 0
        %1783 = vmatpush2.bf16.msra.mxu0 0
        %1784 = vmatprep.mubr.bf16.mxu0 0
        %1785 = vmatmul.mubr.bf16.gmra.mxu0 %v1750
        %v1786 = vpop.f32.mrf.mxu0
        %v1787 = vadd.f32 0.0, %v1786
        %v1788 = vpop.f32.mrf.mxu0
        %v1789 = vpop.f32.mrf.mxu0
        %v1790 = vadd.f32 0.0, %v1789
        %v1791 = vpop.f32.mrf.mxu0
        %1792 = vdwg.mxu0
        %1793 = vrot.lane.b32.xlu0 %v1672, 120
        %v1794 = vpop.permute.xlu0 %1793
        %1795 = vrot.lane.b32.xlu0 %v1672, 88
        %v1796 = vpop.permute.xlu0 %1795
        %v1798 = vsel %vm736, %v1794, 0
        %v1801 = vsel %vm736, %v1796, 0
        %1803 = vmatprep.subr.bf16.mxu0 0
        %1804 = vmatpush1.bf16.xpose.msra.mxu0 0
        %1805 = vmatprep.subr.bf16.mxu0 0
        %1806 = vmatpush1.bf16.xpose.msra.mxu0 0
        %1807 = vmatprep.subr.bf16.mxu0 0
        %1808 = vmatpush1.bf16.xpose.msra.mxu0 0
        %1809 = vmatprep.subr.bf16.mxu0 0
        %1810 = vmatpush1.bf16.xpose.msra.mxu0 0
        %1811 = vmatprep.subr.bf16.mxu0 0
        %1812 = vmatpush1.bf16.xpose.msra.mxu0 0
        %1813 = vmatprep.subr.bf16.mxu0 0
        %1814 = vmatpush1.bf16.xpose.msra.mxu0 0
        %1815 = vmatprep.subr.bf16.mxu0 0
        %1816 = vmatpush1.bf16.xpose.msra.mxu0 0
        %1817 = vmatprep.subr.bf16.mxu0 0
        %1818 = vmatpush1.bf16.xpose.msra.mxu0 %v1801
        %1819 = vmatprep.subr.bf16.mxu0 0
        %1820 = vmatpush2.bf16.xpose.msra.mxu0 0
        %1821 = vmatprep.subr.bf16.mxu0 0
        %1822 = vmatpush2.bf16.xpose.msra.mxu0 0
        %1823 = vmatprep.subr.bf16.mxu0 0
        %1824 = vmatpush2.bf16.xpose.msra.mxu0 0
        %1825 = vmatprep.subr.bf16.mxu0 0
        %1826 = vmatpush2.bf16.xpose.msra.mxu0 0
        %1827 = vmatprep.subr.bf16.mxu0 0
        %1828 = vmatpush2.bf16.xpose.msra.mxu0 0
        %1829 = vmatprep.subr.bf16.mxu0 0
        %1830 = vmatpush2.bf16.xpose.msra.mxu0 0
        %1831 = vmatprep.subr.bf16.mxu0 0
        %1832 = vmatpush2.bf16.xpose.msra.mxu0 0
        %1833 = vmatprep.subr.bf16.mxu0 0
        %1834 = vmatpush2.bf16.xpose.msra.mxu0 0
        %1835 = vmatprep.mubr.bf16.mxu0 0
        %1836 = vmatmul.mubr.bf16.gmra.mxu0 %v1798
        %v1837 = vpop.f32.mrf.mxu0
        %v1838 = vadd.f32 %v631, %v1837
        %v1839 = vpop.f32.mrf.mxu0
        %v1840 = vpop.f32.mrf.mxu0
        %v1841 = vadd.f32 %v631, %v1840
        %v1842 = vpop.f32.mrf.mxu0
        %1843 = vdwg.mxu0
        %v1844 = vsel %vm784, %v1838, -inf
        %1845 = vmax.xlane.f32.xlu0 %v1844
        %v1846 = vpop.xlane.xlu0 %1845
        %v1847 = vsel %vm784, %v1841, -inf
        %1848 = vmax.xlane.f32.xlu0 %v1847
        %v1849 = vpop.xlane.xlu0 %1848
        %v1850 = vsub.f32 %v1838, %v1846
        %v1851 = vsub.f32 %v1841, %v1849
        %v1852 = vmul.f32 %v1850, 1.442695
        %v1853 = vpow.pop %v1852
        %v1854 = vmul.f32 %v1851, 1.442695
        %v1855 = vpow.pop %v1854
        %v1856 = vsel %vm784, %v1853, 0.0
        %1857 = vadd.xlane.f32.xlu0 %v1856
        %v1858 = vpop.xlane.xlu0 %1857
        %v1859 = vsel %vm784, %v1855, 0.0
        %1860 = vadd.xlane.f32.xlu0 %v1859
        %v1861 = vpop.xlane.xlu0 %1860
        %v1862 = vrcp.pop %v1858
        %v1863 = vrcp.pop %v1861
        %v1864 = vmul.f32 %v1853, %v1862
        %v1865 = vmul.f32 %v1855, %v1863
        %v1866 = vpack.c.bf16 %v1865, %v1864
        %1867 = vrot.lane.b32.xlu0 %v1672, 56
        %v1868 = vpop.permute.xlu0 %1867
        %v1871 = vsel %vm784, %v1866, 0
        %1873 = vmatprep.subr.bf16.mxu0 0
        %1874 = vmatpush1.bf16.msra.mxu0 0
        %1875 = vmatprep.subr.bf16.mxu0 0
        %1876 = vmatpush1.bf16.msra.mxu0 0
        %1877 = vmatprep.subr.bf16.mxu0 0
        %1878 = vmatpush1.bf16.msra.mxu0 0
        %1879 = vmatprep.subr.bf16.mxu0 0
        %1880 = vmatpush1.bf16.msra.mxu0 0
        %1881 = vmatprep.subr.bf16.mxu0 0
        %1882 = vmatpush1.bf16.msra.mxu0 0
        %1883 = vmatprep.subr.bf16.mxu0 0
        %1884 = vmatpush1.bf16.msra.mxu0 0
        %1885 = vmatprep.subr.bf16.mxu0 0
        %1886 = vmatpush1.bf16.msra.mxu0 0
        %1887 = vmatprep.subr.bf16.mxu0 0
        %1888 = vmatpush1.bf16.msra.mxu0 %v1868
        %1889 = vmatprep.subr.bf16.mxu0 0
        %1890 = vmatpush2.bf16.msra.mxu0 0
        %1891 = vmatprep.subr.bf16.mxu0 0
        %1892 = vmatpush2.bf16.msra.mxu0 0
        %1893 = vmatprep.subr.bf16.mxu0 0
        %1894 = vmatpush2.bf16.msra.mxu0 0
        %1895 = vmatprep.subr.bf16.mxu0 0
        %1896 = vmatpush2.bf16.msra.mxu0 0
        %1897 = vmatprep.subr.bf16.mxu0 0
        %1898 = vmatpush2.bf16.msra.mxu0 0
        %1899 = vmatprep.subr.bf16.mxu0 0
        %1900 = vmatpush2.bf16.msra.mxu0 0
        %1901 = vmatprep.subr.bf16.mxu0 0
        %1902 = vmatpush2.bf16.msra.mxu0 0
        %1903 = vmatprep.subr.bf16.mxu0 0
        %1904 = vmatpush2.bf16.msra.mxu0 0
        %1905 = vmatprep.mubr.bf16.mxu0 0
        %1906 = vmatmul.mubr.bf16.gmra.mxu0 %v1871
        %v1907 = vpop.f32.mrf.mxu0
        %v1908 = vadd.f32 0.0, %v1907
        %v1909 = vpop.f32.mrf.mxu0
        %v1910 = vpop.f32.mrf.mxu0
        %v1911 = vadd.f32 0.0, %v1910
        %v1912 = vpop.f32.mrf.mxu0
        %1913 = vdwg.mxu0
        %1914 = vrot.lane.b32.xlu0 %v1672, 112
        %v1915 = vpop.permute.xlu0 %1914
        %1916 = vrot.lane.b32.xlu0 %v1672, 80
        %v1917 = vpop.permute.xlu0 %1916
        %v1919 = vsel %vm736, %v1915, 0
        %v1922 = vsel %vm736, %v1917, 0
        %1924 = vmatprep.subr.bf16.mxu0 0
        %1925 = vmatpush1.bf16.xpose.msra.mxu0 0
        %1926 = vmatprep.subr.bf16.mxu0 0
        %1927 = vmatpush1.bf16.xpose.msra.mxu0 0
        %1928 = vmatprep.subr.bf16.mxu0 0
        %1929 = vmatpush1.bf16.xpose.msra.mxu0 0
        %1930 = vmatprep.subr.bf16.mxu0 0
        %1931 = vmatpush1.bf16.xpose.msra.mxu0 0
        %1932 = vmatprep.subr.bf16.mxu0 0
        %1933 = vmatpush1.bf16.xpose.msra.mxu0 0
        %1934 = vmatprep.subr.bf16.mxu0 0
        %1935 = vmatpush1.bf16.xpose.msra.mxu0 0
        %1936 = vmatprep.subr.bf16.mxu0 0
        %1937 = vmatpush1.bf16.xpose.msra.mxu0 0
        %1938 = vmatprep.subr.bf16.mxu0 0
        %1939 = vmatpush1.bf16.xpose.msra.mxu0 %v1922
        %1940 = vmatprep.subr.bf16.mxu0 0
        %1941 = vmatpush2.bf16.xpose.msra.mxu0 0
        %1942 = vmatprep.subr.bf16.mxu0 0
        %1943 = vmatpush2.bf16.xpose.msra.mxu0 0
        %1944 = vmatprep.subr.bf16.mxu0 0
        %1945 = vmatpush2.bf16.xpose.msra.mxu0 0
        %1946 = vmatprep.subr.bf16.mxu0 0
        %1947 = vmatpush2.bf16.xpose.msra.mxu0 0
        %1948 = vmatprep.subr.bf16.mxu0 0
        %1949 = vmatpush2.bf16.xpose.msra.mxu0 0
        %1950 = vmatprep.subr.bf16.mxu0 0
        %1951 = vmatpush2.bf16.xpose.msra.mxu0 0
        %1952 = vmatprep.subr.bf16.mxu0 0
        %1953 = vmatpush2.bf16.xpose.msra.mxu0 0
        %1954 = vmatprep.subr.bf16.mxu0 0
        %1955 = vmatpush2.bf16.xpose.msra.mxu0 0
        %1956 = vmatprep.mubr.bf16.mxu0 0
        %1957 = vmatmul.mubr.bf16.gmra.mxu0 %v1919
        %v1958 = vpop.f32.mrf.mxu0
        %v1959 = vadd.f32 %v631, %v1958
        %v1960 = vpop.f32.mrf.mxu0
        %v1961 = vpop.f32.mrf.mxu0
        %v1962 = vadd.f32 %v631, %v1961
        %v1963 = vpop.f32.mrf.mxu0
        %1964 = vdwg.mxu0
        %v1965 = vsel %vm784, %v1959, -inf
        %1966 = vmax.xlane.f32.xlu0 %v1965
        %v1967 = vpop.xlane.xlu0 %1966
        %v1968 = vsel %vm784, %v1962, -inf
        %1969 = vmax.xlane.f32.xlu0 %v1968
        %v1970 = vpop.xlane.xlu0 %1969
        %v1971 = vsub.f32 %v1959, %v1967
        %v1972 = vsub.f32 %v1962, %v1970
        %v1973 = vmul.f32 %v1971, 1.442695
        %v1974 = vpow.pop %v1973
        %v1975 = vmul.f32 %v1972, 1.442695
        %v1976 = vpow.pop %v1975
        %v1977 = vsel %vm784, %v1974, 0.0
        %1978 = vadd.xlane.f32.xlu0 %v1977
        %v1979 = vpop.xlane.xlu0 %1978
        %v1980 = vsel %vm784, %v1976, 0.0
        %1981 = vadd.xlane.f32.xlu0 %v1980
        %v1982 = vpop.xlane.xlu0 %1981
        %v1983 = vrcp.pop %v1979
        %v1984 = vrcp.pop %v1982
        %v1985 = vmul.f32 %v1974, %v1983
        %v1986 = vmul.f32 %v1976, %v1984
        %v1987 = vpack.c.bf16 %v1986, %v1985
        %1988 = vrot.lane.b32.xlu0 %v1672, 48
        %v1989 = vpop.permute.xlu0 %1988
        %v1992 = vsel %vm784, %v1987, 0
        %1994 = vmatprep.subr.bf16.mxu0 0
        %1995 = vmatpush1.bf16.msra.mxu0 0
        %1996 = vmatprep.subr.bf16.mxu0 0
        %1997 = vmatpush1.bf16.msra.mxu0 0
        %1998 = vmatprep.subr.bf16.mxu0 0
        %1999 = vmatpush1.bf16.msra.mxu0 0
        %2000 = vmatprep.subr.bf16.mxu0 0
        %2001 = vmatpush1.bf16.msra.mxu0 0
        %2002 = vmatprep.subr.bf16.mxu0 0
        %2003 = vmatpush1.bf16.msra.mxu0 0
        %2004 = vmatprep.subr.bf16.mxu0 0
        %2005 = vmatpush1.bf16.msra.mxu0 0
        %2006 = vmatprep.subr.bf16.mxu0 0
        %2007 = vmatpush1.bf16.msra.mxu0 0
        %2008 = vmatprep.subr.bf16.mxu0 0
        %2009 = vmatpush1.bf16.msra.mxu0 %v1989
        %2010 = vmatprep.subr.bf16.mxu0 0
        %2011 = vmatpush2.bf16.msra.mxu0 0
        %2012 = vmatprep.subr.bf16.mxu0 0
        %2013 = vmatpush2.bf16.msra.mxu0 0
        %2014 = vmatprep.subr.bf16.mxu0 0
        %2015 = vmatpush2.bf16.msra.mxu0 0
        %2016 = vmatprep.subr.bf16.mxu0 0
        %2017 = vmatpush2.bf16.msra.mxu0 0
        %2018 = vmatprep.subr.bf16.mxu0 0
        %2019 = vmatpush2.bf16.msra.mxu0 0
        %2020 = vmatprep.subr.bf16.mxu0 0
        %2021 = vmatpush2.bf16.msra.mxu0 0
        %2022 = vmatprep.subr.bf16.mxu0 0
        %2023 = vmatpush2.bf16.msra.mxu0 0
        %2024 = vmatprep.subr.bf16.mxu0 0
        %2025 = vmatpush2.bf16.msra.mxu0 0
        %2026 = vmatprep.mubr.bf16.mxu0 0
        %2027 = vmatmul.mubr.bf16.gmra.mxu0 %v1992
        %v2028 = vpop.f32.mrf.mxu0
        %v2029 = vadd.f32 0.0, %v2028
        %v2030 = vpop.f32.mrf.mxu0
        %v2031 = vpop.f32.mrf.mxu0
        %v2032 = vadd.f32 0.0, %v2031
        %v2033 = vpop.f32.mrf.mxu0
        %2034 = vdwg.mxu0
        %2035 = vrot.lane.b32.xlu0 %v1672, 104
        %v2036 = vpop.permute.xlu0 %2035
        %2037 = vrot.lane.b32.xlu0 %v1672, 72
        %v2038 = vpop.permute.xlu0 %2037
        %v2040 = vsel %vm736, %v2036, 0
        %v2043 = vsel %vm736, %v2038, 0
        %2045 = vmatprep.subr.bf16.mxu0 0
        %2046 = vmatpush1.bf16.xpose.msra.mxu0 0
        %2047 = vmatprep.subr.bf16.mxu0 0
        %2048 = vmatpush1.bf16.xpose.msra.mxu0 0
        %2049 = vmatprep.subr.bf16.mxu0 0
        %2050 = vmatpush1.bf16.xpose.msra.mxu0 0
        %2051 = vmatprep.subr.bf16.mxu0 0
        %2052 = vmatpush1.bf16.xpose.msra.mxu0 0
        %2053 = vmatprep.subr.bf16.mxu0 0
        %2054 = vmatpush1.bf16.xpose.msra.mxu0 0
        %2055 = vmatprep.subr.bf16.mxu0 0
        %2056 = vmatpush1.bf16.xpose.msra.mxu0 0
        %2057 = vmatprep.subr.bf16.mxu0 0
        %2058 = vmatpush1.bf16.xpose.msra.mxu0 0
        %2059 = vmatprep.subr.bf16.mxu0 0
        %2060 = vmatpush1.bf16.xpose.msra.mxu0 %v2043
        %2061 = vmatprep.subr.bf16.mxu0 0
        %2062 = vmatpush2.bf16.xpose.msra.mxu0 0
        %2063 = vmatprep.subr.bf16.mxu0 0
        %2064 = vmatpush2.bf16.xpose.msra.mxu0 0
        %2065 = vmatprep.subr.bf16.mxu0 0
        %2066 = vmatpush2.bf16.xpose.msra.mxu0 0
        %2067 = vmatprep.subr.bf16.mxu0 0
        %2068 = vmatpush2.bf16.xpose.msra.mxu0 0
        %2069 = vmatprep.subr.bf16.mxu0 0
        %2070 = vmatpush2.bf16.xpose.msra.mxu0 0
        %2071 = vmatprep.subr.bf16.mxu0 0
        %2072 = vmatpush2.bf16.xpose.msra.mxu0 0
        %2073 = vmatprep.subr.bf16.mxu0 0
        %2074 = vmatpush2.bf16.xpose.msra.mxu0 0
        %2075 = vmatprep.subr.bf16.mxu0 0
        %2076 = vmatpush2.bf16.xpose.msra.mxu0 0
        %2077 = vmatprep.mubr.bf16.mxu0 0
        %2078 = vmatmul.mubr.bf16.gmra.mxu0 %v2040
        %v2079 = vpop.f32.mrf.mxu0
        %v2080 = vadd.f32 %v631, %v2079
        %v2081 = vpop.f32.mrf.mxu0
        %v2082 = vpop.f32.mrf.mxu0
        %v2083 = vadd.f32 %v631, %v2082
        %v2084 = vpop.f32.mrf.mxu0
        %2085 = vdwg.mxu0
        %v2086 = vsel %vm784, %v2080, -inf
        %2087 = vmax.xlane.f32.xlu0 %v2086
        %v2088 = vpop.xlane.xlu0 %2087
        %v2089 = vsel %vm784, %v2083, -inf
        %2090 = vmax.xlane.f32.xlu0 %v2089
        %v2091 = vpop.xlane.xlu0 %2090
        %v2092 = vsub.f32 %v2080, %v2088
        %v2093 = vsub.f32 %v2083, %v2091
        %v2094 = vmul.f32 %v2092, 1.442695
        %v2095 = vpow.pop %v2094
        %v2096 = vmul.f32 %v2093, 1.442695
        %v2097 = vpow.pop %v2096
        %v2098 = vsel %vm784, %v2095, 0.0
        %2099 = vadd.xlane.f32.xlu0 %v2098
        %v2100 = vpop.xlane.xlu0 %2099
        %v2101 = vsel %vm784, %v2097, 0.0
        %2102 = vadd.xlane.f32.xlu0 %v2101
        %v2103 = vpop.xlane.xlu0 %2102
        %v2104 = vrcp.pop %v2100
        %v2105 = vrcp.pop %v2103
        %v2106 = vmul.f32 %v2095, %v2104
        %v2107 = vmul.f32 %v2097, %v2105
        %v2108 = vpack.c.bf16 %v2107, %v2106
        %2109 = vrot.lane.b32.xlu0 %v1672, 40
        %v2110 = vpop.permute.xlu0 %2109
        %v2113 = vsel %vm784, %v2108, 0
        %2115 = vmatprep.subr.bf16.mxu0 0
        %2116 = vmatpush1.bf16.msra.mxu0 0
        %2117 = vmatprep.subr.bf16.mxu0 0
        %2118 = vmatpush1.bf16.msra.mxu0 0
        %2119 = vmatprep.subr.bf16.mxu0 0
        %2120 = vmatpush1.bf16.msra.mxu0 0
        %2121 = vmatprep.subr.bf16.mxu0 0
        %2122 = vmatpush1.bf16.msra.mxu0 0
        %2123 = vmatprep.subr.bf16.mxu0 0
        %2124 = vmatpush1.bf16.msra.mxu0 0
        %2125 = vmatprep.subr.bf16.mxu0 0
        %2126 = vmatpush1.bf16.msra.mxu0 0
        %2127 = vmatprep.subr.bf16.mxu0 0
        %2128 = vmatpush1.bf16.msra.mxu0 0
        %2129 = vmatprep.subr.bf16.mxu0 0
        %2130 = vmatpush1.bf16.msra.mxu0 %v2110
        %2131 = vmatprep.subr.bf16.mxu0 0
        %2132 = vmatpush2.bf16.msra.mxu0 0
        %2133 = vmatprep.subr.bf16.mxu0 0
        %2134 = vmatpush2.bf16.msra.mxu0 0
        %2135 = vmatprep.subr.bf16.mxu0 0
        %2136 = vmatpush2.bf16.msra.mxu0 0
        %2137 = vmatprep.subr.bf16.mxu0 0
        %2138 = vmatpush2.bf16.msra.mxu0 0
        %2139 = vmatprep.subr.bf16.mxu0 0
        %2140 = vmatpush2.bf16.msra.mxu0 0
        %2141 = vmatprep.subr.bf16.mxu0 0
        %2142 = vmatpush2.bf16.msra.mxu0 0
        %2143 = vmatprep.subr.bf16.mxu0 0
        %2144 = vmatpush2.bf16.msra.mxu0 0
        %2145 = vmatprep.subr.bf16.mxu0 0
        %2146 = vmatpush2.bf16.msra.mxu0 0
        %2147 = vmatprep.mubr.bf16.mxu0 0
        %2148 = vmatmul.mubr.bf16.gmra.mxu0 %v2113
        %v2149 = vpop.f32.mrf.mxu0
        %v2150 = vadd.f32 0.0, %v2149
        %v2151 = vpop.f32.mrf.mxu0
        %v2152 = vpop.f32.mrf.mxu0
        %v2153 = vadd.f32 0.0, %v2152
        %v2154 = vpop.f32.mrf.mxu0
        %2155 = vdwg.mxu0
        %2158 = vrot.lane.b32.xlu0 %v1908, 8
        %v2159 = vpop.permute.xlu0 %2158
        %2160 = vrot.lane.b32.xlu0 %v1911, 8
        %v2161 = vpop.permute.xlu0 %2160
        %2166 = vrot.lane.b32.xlu0 %v2029, 16
        %v2167 = vpop.permute.xlu0 %2166
        %2168 = vrot.lane.b32.xlu0 %v2032, 16
        %v2169 = vpop.permute.xlu0 %2168
        %2174 = vrot.lane.b32.xlu0 %v2150, 24
        %v2175 = vpop.permute.xlu0 %2174
        %2176 = vrot.lane.b32.xlu0 %v2153, 24
        %v2177 = vpop.permute.xlu0 %2176
        %v2180 = vsel %vm736, %v1787, %v2159
        %v2181 = vsel %vm736, %v1790, %v2161
        %v2182 = vsel %vm784, %v2180, %v2167
        %v2183 = vsel %vm784, %v2181, %v2169
        %v2184 = vsel %vm576, %v2182, %v2175
        %v2185 = vsel %vm576, %v2183, %v2177
        %v2186 = vpack.c.bf16 %v2185, %v2184
        %v2188 = vlaneseq
        %v2189 = vshrl.u32 %v2188, 7
        %v2190 = vsub.s32 0, %v2189
        %v2191 = vrot.slane %v1574, %v2190
        %v2197 = vunpack.c.l.b16 %v1569
        %v2198 = vunpack.c.l.b16 %v1570
        %v2199 = vunpack.c.l.b16 %v1571
        %v2200 = vunpack.c.l.b16 %v1572
        %v2201 = vpack.c.b16 %v2198, %v2197
        %v2202 = vpack.c.b16 %v2200, %v2199
        %v2206 = vsel %vm687, %v2186, 0
        %2208 = vmatprep.subr.bf16.mxu0 0
        %2209 = vmatpush1.bf16.msra.mxu0 0
        %2210 = vmatprep.subr.bf16.mxu0 0
        %2211 = vmatpush1.bf16.msra.mxu0 0
        %2212 = vmatprep.subr.bf16.mxu0 0
        %2213 = vmatpush1.bf16.msra.mxu0 0
        %2214 = vmatprep.subr.bf16.mxu0 0
        %2215 = vmatpush1.bf16.msra.mxu0 0
        %2216 = vmatprep.subr.bf16.mxu0 0
        %2217 = vmatpush1.bf16.msra.mxu0 0
        %2218 = vmatprep.subr.bf16.mxu0 0
        %2219 = vmatpush1.bf16.msra.mxu0 0
        %2220 = vmatprep.subr.bf16.mxu0 0
        %2221 = vmatpush1.bf16.msra.mxu0 %v2202
        %2222 = vmatprep.subr.bf16.mxu0 0
        %2223 = vmatpush1.bf16.msra.mxu0 %v2201
        %2224 = vmatprep.subr.bf16.mxu0 0
        %2225 = vmatpush2.bf16.msra.mxu0 0
        %2226 = vmatprep.subr.bf16.mxu0 0
        %2227 = vmatpush2.bf16.msra.mxu0 0
        %2228 = vmatprep.subr.bf16.mxu0 0
        %2229 = vmatpush2.bf16.msra.mxu0 0
        %2230 = vmatprep.subr.bf16.mxu0 0
        %2231 = vmatpush2.bf16.msra.mxu0 0
        %2232 = vmatprep.subr.bf16.mxu0 0
        %2233 = vmatpush2.bf16.msra.mxu0 0
        %2234 = vmatprep.subr.bf16.mxu0 0
        %2235 = vmatpush2.bf16.msra.mxu0 0
        %2236 = vmatprep.subr.bf16.mxu0 0
        %2237 = vmatpush2.bf16.msra.mxu0 0
        %2238 = vmatprep.subr.bf16.mxu0 0
        %2239 = vmatpush2.bf16.msra.mxu0 0
        %2240 = vmatprep.mubr.bf16.mxu0 0
        %2241 = vmatmul.mubr.bf16.gmra.mxu0 %v2206
        %v2242 = vpop.f32.mrf.mxu0
        %v2243 = vadd.f32 %v2191, %v2242
        %v2244 = vpop.f32.mrf.mxu0
        %v2245 = vpop.f32.mrf.mxu0
        %v2246 = vadd.f32 %v2191, %v2245
        %v2247 = vpop.f32.mrf.mxu0
        %2248 = vdwg.mxu0
        %v2249 = vadd.f32 %v1559, %v2243
        %v2250 = vadd.f32 %v1560, %v2246
        %v2251 = vsel %vm687, %v2249, 0.0
        %2252 = vadd.xlane.f32.xlu0 %v2251
        %v2253 = vpop.xlane.xlu0 %2252
        %v2254 = vsel %vm687, %v2250, 0.0
        %2255 = vadd.xlane.f32.xlu0 %v2254
        %v2256 = vpop.xlane.xlu0 %2255
        %v2257 = vmul.f32 %v2253, %v1319
        %v2258 = vmul.f32 %v2256, %v1319
        %v2259 = vsub.f32 %v2249, %v2257
        %v2260 = vsub.f32 %v2250, %v2258
        %v2261 = vmul.f32 %v2259, %v2259
        %v2262 = vmul.f32 %v2260, %v2260
        %v2263 = vsel %vm687, %v2261, 0.0
        %2264 = vadd.xlane.f32.xlu0 %v2263
        %v2265 = vpop.xlane.xlu0 %2264
        %v2266 = vsel %vm687, %v2262, 0.0
        %2267 = vadd.xlane.f32.xlu0 %v2266
        %v2268 = vpop.xlane.xlu0 %2267
        %v2269 = vmul.f32 %v2265, %v1319
        %v2270 = vmul.f32 %v2268, %v1319
        %v2271 = vadd.f32 %v2269, 1e-05
        %v2272 = vadd.f32 %v2270, 1e-05
        %v2273 = vrsqrt.pop %v2271
        %v2274 = vrsqrt.pop %v2272
        %v2275 = vmul.f32 %v2259, %v2273
        %v2276 = vmul.f32 %v2260, %v2274
        %v2278 = vlaneseq
        %v2279 = vshrl.u32 %v2278, 7
        %v2280 = vsub.s32 0, %v2279
        %v2281 = vrot.slane %v1576, %v2280
        %v2283 = vmul.f32 %v2275, %v2281
        %v2284 = vmul.f32 %v2276, %v2281
        %v2286 = vlaneseq
        %v2287 = vshrl.u32 %v2286, 7
        %v2288 = vsub.s32 0, %v2287
        %v2289 = vrot.slane %v1578, %v2288
        %v2291 = vadd.f32 %v2283, %v2289
        %v2292 = vadd.f32 %v2284, %v2289
        %v2293 = vpack.c.bf16 %v2292, %v2291
        %v2295 = vlaneseq
        %v2296 = vshrl.u32 %v2295, 7
        %v2297 = vsub.s32 0, %v2296
        %v2298 = vrot.slane %v1585, %v2297
        %v2304 = vunpack.c.l.b16 %v1580
        %v2305 = vunpack.c.l.b16 %v1581
        %v2306 = vunpack.c.l.b16 %v1582
        %v2307 = vunpack.c.l.b16 %v1583
        %v2308 = vpack.c.b16 %v2305, %v2304
        %v2309 = vpack.c.b16 %v2307, %v2306
        %v2313 = vsel %vm687, %v2293, 0
        %2315 = vmatprep.subr.bf16.mxu0 0
        %2316 = vmatpush1.bf16.msra.mxu0 0
        %2317 = vmatprep.subr.bf16.mxu0 0
        %2318 = vmatpush1.bf16.msra.mxu0 0
        %2319 = vmatprep.subr.bf16.mxu0 0
        %2320 = vmatpush1.bf16.msra.mxu0 0
        %2321 = vmatprep.subr.bf16.mxu0 0
        %2322 = vmatpush1.bf16.msra.mxu0 0
        %2323 = vmatprep.subr.bf16.mxu0 0
        %2324 = vmatpush1.bf16.msra.mxu0 0
        %2325 = vmatprep.subr.bf16.mxu0 0
        %2326 = vmatpush1.bf16.msra.mxu0 0
        %2327 = vmatprep.subr.bf16.mxu0 0
        %2328 = vmatpush1.bf16.msra.mxu0 %v2309
        %2329 = vmatprep.subr.bf16.mxu0 0
        %2330 = vmatpush1.bf16.msra.mxu0 %v2308
        %2331 = vmatprep.subr.bf16.mxu0 0
        %2332 = vmatpush2.bf16.msra.mxu0 0
        %2333 = vmatprep.subr.bf16.mxu0 0
        %2334 = vmatpush2.bf16.msra.mxu0 0
        %2335 = vmatprep.subr.bf16.mxu0 0
        %2336 = vmatpush2.bf16.msra.mxu0 0
        %2337 = vmatprep.subr.bf16.mxu0 0
        %2338 = vmatpush2.bf16.msra.mxu0 0
        %2339 = vmatprep.subr.bf16.mxu0 0
        %2340 = vmatpush2.bf16.msra.mxu0 0
        %2341 = vmatprep.subr.bf16.mxu0 0
        %2342 = vmatpush2.bf16.msra.mxu0 0
        %2343 = vmatprep.subr.bf16.mxu0 0
        %2344 = vmatpush2.bf16.msra.mxu0 0
        %2345 = vmatprep.subr.bf16.mxu0 0
        %2346 = vmatpush2.bf16.msra.mxu0 0
        %2347 = vmatprep.mubr.bf16.mxu0 0
        %2348 = vmatmul.mubr.bf16.gmra.mxu0 %v2313
        %v2349 = vpop.f32.mrf.mxu0
        %v2350 = vadd.f32 %v2298, %v2349
        %v2351 = vpop.f32.mrf.mxu0
        %v2352 = vpop.f32.mrf.mxu0
        %v2353 = vadd.f32 %v2298, %v2352
        %v2354 = vpop.f32.mrf.mxu0
        %2355 = vdwg.mxu0
        %v2356 = vmax.f32 %v2350, 0.0
        %v2357 = vmax.f32 %v2353, 0.0
        %v2358 = vpack.c.bf16 %v2357, %v2356
        %v2360 = vlaneseq
        %v2361 = vshrl.u32 %v2360, 7
        %v2362 = vsub.s32 0, %v2361
        %v2363 = vrot.slane %v1604, %v2362
        %v2381 = vunpack.c.l.b16 %v1587
        %v2382 = vunpack.c.l.b16 %v1588
        %v2383 = vunpack.c.l.b16 %v1589
        %v2384 = vunpack.c.l.b16 %v1590
        %v2385 = vunpack.c.l.b16 %v1591
        %v2386 = vunpack.c.l.b16 %v1592
        %v2387 = vunpack.c.l.b16 %v1593
        %v2388 = vunpack.c.l.b16 %v1594
        %v2389 = vunpack.c.l.b16 %v1595
        %v2390 = vunpack.c.l.b16 %v1596
        %v2391 = vunpack.c.l.b16 %v1597
        %v2392 = vunpack.c.l.b16 %v1598
        %v2393 = vunpack.c.l.b16 %v1599
        %v2394 = vunpack.c.l.b16 %v1600
        %v2395 = vunpack.c.l.b16 %v1601
        %v2396 = vunpack.c.l.b16 %v1602
        %v2397 = vpack.c.b16 %v2382, %v2381
        %v2398 = vpack.c.b16 %v2384, %v2383
        %v2399 = vpack.c.b16 %v2386, %v2385
        %v2400 = vpack.c.b16 %v2388, %v2387
        %v2401 = vpack.c.b16 %v2390, %v2389
        %v2402 = vpack.c.b16 %v2392, %v2391
        %v2403 = vpack.c.b16 %v2394, %v2393
        %v2404 = vpack.c.b16 %v2396, %v2395
        %2413 = vmatprep.subr.bf16.mxu0 0
        %2414 = vmatpush1.bf16.msra.mxu0 %v2404
        %2415 = vmatprep.subr.bf16.mxu0 0
        %2416 = vmatpush1.bf16.msra.mxu0 %v2403
        %2417 = vmatprep.subr.bf16.mxu0 0
        %2418 = vmatpush1.bf16.msra.mxu0 %v2402
        %2419 = vmatprep.subr.bf16.mxu0 0
        %2420 = vmatpush1.bf16.msra.mxu0 %v2401
        %2421 = vmatprep.subr.bf16.mxu0 0
        %2422 = vmatpush1.bf16.msra.mxu0 %v2400
        %2423 = vmatprep.subr.bf16.mxu0 0
        %2424 = vmatpush1.bf16.msra.mxu0 %v2399
        %2425 = vmatprep.subr.bf16.mxu0 0
        %2426 = vmatpush1.bf16.msra.mxu0 %v2398
        %2427 = vmatprep.subr.bf16.mxu0 0
        %2428 = vmatpush1.bf16.msra.mxu0 %v2397
        %2429 = vmatprep.subr.bf16.mxu0 0
        %2430 = vmatpush2.bf16.msra.mxu0 0
        %2431 = vmatprep.subr.bf16.mxu0 0
        %2432 = vmatpush2.bf16.msra.mxu0 0
        %2433 = vmatprep.subr.bf16.mxu0 0
        %2434 = vmatpush2.bf16.msra.mxu0 0
        %2435 = vmatprep.subr.bf16.mxu0 0
        %2436 = vmatpush2.bf16.msra.mxu0 0
        %2437 = vmatprep.subr.bf16.mxu0 0
        %2438 = vmatpush2.bf16.msra.mxu0 0
        %2439 = vmatprep.subr.bf16.mxu0 0
        %2440 = vmatpush2.bf16.msra.mxu0 0
        %2441 = vmatprep.subr.bf16.mxu0 0
        %2442 = vmatpush2.bf16.msra.mxu0 0
        %2443 = vmatprep.subr.bf16.mxu0 0
        %2444 = vmatpush2.bf16.msra.mxu0 0
        %2445 = vmatprep.mubr.bf16.mxu0 0
        %2446 = vmatmul.mubr.bf16.gmra.mxu0 %v2358
        %v2447 = vpop.f32.mrf.mxu0
        %v2448 = vadd.f32 %v2363, %v2447
        %v2449 = vpop.f32.mrf.mxu0
        %v2450 = vpop.f32.mrf.mxu0
        %v2451 = vadd.f32 %v2363, %v2450
        %v2452 = vpop.f32.mrf.mxu0
        %2453 = vdwg.mxu0
        %v2454 = vadd.f32 %v2291, %v2448
        %v2455 = vadd.f32 %v2292, %v2451
        %v2456 = vsel %vm687, %v2454, 0.0
        %2457 = vadd.xlane.f32.xlu0 %v2456
        %v2458 = vpop.xlane.xlu0 %2457
        %v2459 = vsel %vm687, %v2455, 0.0
        %2460 = vadd.xlane.f32.xlu0 %v2459
        %v2461 = vpop.xlane.xlu0 %2460
        %v2462 = vmul.f32 %v2458, %v1319
        %v2463 = vmul.f32 %v2461, %v1319
        %v2464 = vsub.f32 %v2454, %v2462
        %v2465 = vsub.f32 %v2455, %v2463
        %v2466 = vmul.f32 %v2464, %v2464
        %v2467 = vmul.f32 %v2465, %v2465
        %v2468 = vsel %vm687, %v2466, 0.0
        %2469 = vadd.xlane.f32.xlu0 %v2468
        %v2470 = vpop.xlane.xlu0 %2469
        %v2471 = vsel %vm687, %v2467, 0.0
        %2472 = vadd.xlane.f32.xlu0 %v2471
        %v2473 = vpop.xlane.xlu0 %2472
        %v2474 = vmul.f32 %v2470, %v1319
        %v2475 = vmul.f32 %v2473, %v1319
        %v2476 = vadd.f32 %v2474, 1e-05
        %v2477 = vadd.f32 %v2475, 1e-05
        %v2478 = vrsqrt.pop %v2476
        %v2479 = vrsqrt.pop %v2477
        %v2480 = vmul.f32 %v2464, %v2478
        %v2481 = vmul.f32 %v2465, %v2479
        %v2483 = vlaneseq
        %v2484 = vshrl.u32 %v2483, 7
        %v2485 = vsub.s32 0, %v2484
        %v2486 = vrot.slane %v1606, %v2485
        %v2488 = vmul.f32 %v2480, %v2486
        %v2489 = vmul.f32 %v2481, %v2486
        %v2491 = vlaneseq
        %v2492 = vshrl.u32 %v2491, 7
        %v2493 = vsub.s32 0, %v2492
        %v2494 = vrot.slane %v1608, %v2493
        %v2496 = vadd.f32 %v2488, %v2494
        %v2497 = vadd.f32 %v2489, %v2494
        %2498 = vst.msk [vmem:[%s549] sm:$0xff] %vm687, %v2496
        %vm2499 = vcmask 253952
        %2500 = vst.msk [vmem:[%s542] sm:$0x1] %vm2499, %v2497
        %s2501 = sand.u32 %s384, 1
        %s2502 = scalar_lea.sflag [#allocation3], %s2501
        %s2503 = sand.u32 %s384, 1
        %s2504 = scalar_lea.vmem [#allocation2], %s2503
        %s2505 = sand.u32 %s410, 1
        %s2506 = scalar_lea.sflag [#allocation5], %s2505
        %s2507 = sand.u32 %s410, 1
        %s2508 = smul.addr %s2507, 8
        %s2509 = scalar_lea.vmem [#allocation4], %s2508
        // Predicated region
        $region85: #{my_av_subnet_forward.1} parent=83 // pred_check
          %p2510 = pneg %p394
        $region86: #{my_av_subnet_forward.1} parent=83 // pred_check_branch
          %2512 = sbr.rel (%p2510) target = $region88
        $region87: #{my_av_subnet_forward.1} parent=83 // pred_region
          %s2514 = ssub.s32 16, 16
          %2515 = vsyncadd %s2502, %s2514
          %s2516 = smul.addr %s35, 16
          %s2517 = scalar_lea.hbm %s16, %s2516
          %s2519 = sshll.u32 %s2504, 4
          %s2520 = int_to_ptr.vmem [resolvable:$true] %s2519
          %2522 = dma.vmem_to_hbm [thread:$0]  %s2520, 16, %s2517, %s2502
        $region88: #{my_av_subnet_forward.1} parent=83 // pred_fallthru
          _
        // Predicated region
        $region89: #{my_av_subnet_forward.1} parent=83 // pred_check
          %p2523 = pneg %p420
        $region90: #{my_av_subnet_forward.1} parent=83 // pred_check_branch
          %2525 = sbr.rel (%p2523) target = $region92
        $region91: #{my_av_subnet_forward.1} parent=83 // pred_region
          %s2527 = ssub.s32 128, 128
          %2528 = vsyncadd %s2506, %s2527
          %s2529 = smul.addr %s35, 128
          %s2530 = scalar_lea.hbm %s17, %s2529
          %s2532 = sshll.u32 %s2509, 4
          %s2533 = int_to_ptr.vmem [resolvable:$true] %s2532
          %2535 = dma.vmem_to_hbm [thread:$0]  %s2533, 128, %s2530, %s2506
        $region92: #{my_av_subnet_forward.1} parent=83 // pred_fallthru
          _
      $region84: #{my_av_subnet_forward.1} parent=5 // pred_fallthru
        _
      %p2536 = scmp.le.s32.totalorder 2, %s30
      // Predicated region
      $region93: #{my_av_subnet_forward.1} parent=5 // pred_check
        %p2537 = pneg %p2536
      $region94: #{my_av_subnet_forward.1} parent=5 // pred_check_branch
        %2539 = sbr.rel (%p2537) target = $region96
      $region95: #{my_av_subnet_forward.1} parent=5 // pred_region
        %s2540 = ssub.s32 %s30, 2
        // Predicated region
        $region97: #{my_av_subnet_forward.1} parent=95 // pred_check
          %p2541 = pneg %p400
        $region98: #{my_av_subnet_forward.1} parent=95 // pred_check_branch
          %2543 = sbr.rel (%p2541) target = $region100
        $region99: #{my_av_subnet_forward.1} parent=95 // pred_region
          %s2544 = sand.u32 %s385, 1
          %s2545 = scalar_lea.sflag [#allocation3], %s2544
          %s2546 = sand.u32 %s385, 1
          %s2547 = scalar_lea.vmem [#allocation2], %s2546
          %2548 = dma.done %s2545, 16
        $region100: #{my_av_subnet_forward.1} parent=95 // pred_fallthru
          _
        // Predicated region
        $region101: #{my_av_subnet_forward.1} parent=95 // pred_check
          %p2549 = pneg %p426
        $region102: #{my_av_subnet_forward.1} parent=95 // pred_check_branch
          %2551 = sbr.rel (%p2549) target = $region104
        $region103: #{my_av_subnet_forward.1} parent=95 // pred_region
          %s2552 = sand.u32 %s411, 1
          %s2553 = scalar_lea.sflag [#allocation5], %s2552
          %s2554 = sand.u32 %s411, 1
          %s2555 = smul.addr %s2554, 8
          %s2556 = scalar_lea.vmem [#allocation4], %s2555
          %2557 = dma.done %s2553, 128
        $region104: #{my_av_subnet_forward.1} parent=95 // pred_fallthru
          _
      $region96: #{my_av_subnet_forward.1} parent=5 // pred_fallthru
        _
    $region6: #{my_av_subnet_forward.1} parent=1 // loop_footer
      %s34 = sadd.s32 1, %s30
    $region7: #{my_av_subnet_forward.1} parent=1 // loop_footer_branch
      %29 = sbr.rel target = $region3
    $region8: #{my_av_subnet_forward.1} parent=1 // loop_exit
      _
    %2558 = vsyncpa [#allocation3], 1
    %s2559 = scalar_lea.sflag [#allocation3], 1
    %2560 = vsyncpa %s2559, 1
    %2561 = vsyncpa [#allocation5], 1
    %s2562 = scalar_lea.sflag [#allocation5], 1
    %2563 = vsyncpa %s2562, 1

</llo_original>
